<compile_context>
chip_gen: v7x
topology: tpu7x:2x2x1
jax: 0.10.0
libtpu: 0.0.40
codegen_flags: <defaults>
</compile_context>

<pallas_src>
import jax
import jax.numpy as jnp
import numpy as np
from jax import lax
from jax.experimental import pallas as pl
from jax.experimental.pallas import tpu as pltpu

EPS = 1e-5  # nn.InstanceNorm2d default eps


# ---------------------------------------------------------------------------
# Fused kernel: Conv2d(128->64,k3,p1) + InstanceNorm2d + ReLU + 3-layer MLP
# ---------------------------------------------------------------------------
def fused_disc_kernel(xpad_ref, wconv_ref, w0_ref, b0_ref, w1_ref, b1_ref,
                      w2_ref, b2_ref, out_ref, rowsT_ref):
    # xpad_ref : (NB, H+2, W+2, Cin) f32     wconv_ref: (9*Cin, Cout)  bf16
    # w0_ref   : (128, W)  bf16              b0_ref   : (128, 1) f32
    # w1_ref   : (128, 128) bf16             b1_ref   : (128, 1) f32
    # w2_ref   : (1, 128)  bf16              b2_ref   : (1, 1) f32 in SMEM
    # out_ref  : (1, 1, NB*H*Cout) f32
    # rowsT_ref: (W, NB*H*Cout) bf16 VMEM scratch (transposed MLP operand)
    NB = xpad_ref.shape[0]
    Hp2, Wp2, Cin = xpad_ref.shape[1], xpad_ref.shape[2], xpad_ref.shape[3]
    H, W = Hp2 - 2, Wp2 - 2
    Cout = wconv_ref.shape[1]
    HW = H * W
    inv_hw = 1.0 / float(HW)

    for b in range(NB):
        # -- 1. conv: 3 retiled kx-copies, 9 bf16 MXU matmuls into an f32 acc --
        acc = None
        for kx in range(3):
            col = (xpad_ref[b, :, kx:kx + W, :]
                   .reshape((H + 2) * W, Cin).astype(jnp.bfloat16))
            for ky in range(3):
                tap = ky * 3 + kx
                part = jnp.dot(col[ky * W:ky * W + HW, :],
                               wconv_ref[tap * Cin:(tap + 1) * Cin, :],
                               preferred_element_type=jnp.float32)
                acc = part if acc is None else acc + part
        # conv bias intentionally dropped: exact no-op under InstanceNorm.

        # -- 2. InstanceNorm2d (biased var, no affine) + ReLU, one stats pass --
        mean = jnp.sum(acc, axis=0, keepdims=True) * inv_hw
        ex2 = jnp.sum(acc * acc, axis=0, keepdims=True) * inv_hw
        var = ex2 - mean * mean
        y_bf = jnp.maximum((acc - mean) * lax.rsqrt(var + EPS),
                           0.0).astype(jnp.bfloat16)        # (H*W, Cout)

        # -- 3. transposed MLP operand: plain block copies, no transposes ------
        for h in range(H):
            rowsT_ref[:, (b * H + h) * Cout:(b * H + h + 1) * Cout] = (
                y_bf[h * W:(h + 1) * W, :])

    # -- 4. 3-layer MLP fully in transposed form (all outputs lane-dense) ------
    h0 = jnp.dot(w0_ref[...], rowsT_ref[...],
                 preferred_element_type=jnp.float32) + b0_ref[...]
    h0 = jnp.maximum(h0, 0.0).astype(jnp.bfloat16)           # (128, NB*H*Cout)
    h1 = jnp.dot(w1_ref[...], h0,
                 preferred_element_type=jnp.float32) + b1_ref[...]
    h1 = jnp.maximum(h1, 0.0).astype(jnp.bfloat16)           # (128, NB*H*Cout)
    out_ref[0] = (jnp.dot(w2_ref[...], h1,
                          preferred_element_type=jnp.float32) + b2_ref[0, 0])


# ---------------------------------------------------------------------------
# Wrapper
# ---------------------------------------------------------------------------
@jax.jit
def mglobal_discriminator(x1, x2, params):
    """x1, x2: NCHW float32 with 64 channels each (PyTorch convention)."""
    N, _, H, W = x1.shape
    x = jnp.concatenate([x1, x2], axis=1)                 # (N, 128, H, W)
    Cin = x.shape[1]
    Cout = params["wconv_flat"].shape[1]

    # Shape-specialization guards (layout cliffs otherwise).
    assert Cin == 128 and Cout == 64
    assert (H * W) % 8 == 0 and (H * Cout) % 128 == 0 and W % 8 == 0
    assert params["w0"].shape[1] == W                      # sz == W

    # Batch blocking: NB images per grid step.
    NB = 1
    for cand in (4, 2):
        if N % cand == 0:
            NB = cand
            break

    # Glue: NCHW -> NHWC + zero halo for the 3x3 / pad=1 conv.
    x_nhwc = jnp.transpose(x, (0, 2, 3, 1))               # (N, H, W, 128)
    x_pad = jnp.pad(x_nhwc, ((0, 0), (1, 1), (1, 1), (0, 0)))

    out_flat = pl.pallas_call(
        fused_disc_kernel,
        out_shape=jax.ShapeDtypeStruct((N // NB, 1, NB * H * Cout), jnp.float32),
        grid=(N // NB,),
        in_specs=[
            pl.BlockSpec((NB, H + 2, W + 2, Cin), lambda n: (n, 0, 0, 0)),
            pl.BlockSpec((9 * Cin, Cout), lambda n: (0, 0)),
            pl.BlockSpec((128, W), lambda n: (0, 0)),
            pl.BlockSpec((128, 1), lambda n: (0, 0)),
            pl.BlockSpec((128, 128), lambda n: (0, 0)),
            pl.BlockSpec((128, 1), lambda n: (0, 0)),
            pl.BlockSpec((1, 128), lambda n: (0, 0)),
            pl.BlockSpec(memory_space=pltpu.MemorySpace.SMEM),   # b2 scalar
        ],
        out_specs=pl.BlockSpec((1, 1, NB * H * Cout), lambda n: (n, 0, 0)),
        scratch_shapes=[
            pltpu.VMEM((W, NB * H * Cout), jnp.bfloat16),   # transposed MLP rows
        ],
        compiler_params=pltpu.CompilerParams(
            dimension_semantics=("parallel",),
            vmem_limit_bytes=32 * 1024 * 1024),
    )(x_pad, params["wconv_flat"], params["w0"], params["b0col"],
      params["w1"], params["b1col"], params["w2"], params["b2"])

    # (N//NB, 1, NB*H*Cout) -> (N, Cout, H, 1); metadata-level reshape/transpose.
    out = out_flat.reshape(N, H, Cout)
    return jnp.transpose(out, (0, 2, 1)).reshape(N, Cout, H, 1)


# ---------------------------------------------------------------------------
# Deterministic parameter init (shapes from the module's __init__)
# ---------------------------------------------------------------------------
def init_params(key, sz, cin=128, cout=64):
    ks = jax.random.split(key, 8)
    wconv_oihw = jax.random.normal(ks[0], (cout, cin, 3, 3), jnp.float32) * 0.05
    bconv = jax.random.normal(ks[1], (cout,), jnp.float32) * 0.05
    W0 = jax.random.normal(ks[2], (128, sz), jnp.float32) * 0.10   # nn.Linear(sz,128)
    b0 = jax.random.normal(ks[3], (128,), jnp.float32) * 0.10
    W1 = jax.random.normal(ks[4], (128, 128), jnp.float32) * 0.10  # nn.Linear(128,128)
    b1 = jax.random.normal(ks[5], (128,), jnp.float32) * 0.10
    W2 = jax.random.normal(ks[6], (1, 128), jnp.float32) * 0.10    # nn.Linear(128,1)
    b2 = jax.random.normal(ks[7], (1,), jnp.float32) * 0.10
    return dict(
        # reference-side (PyTorch orientation, f32)
        wconv_oihw=wconv_oihw, bconv=bconv,
        W0=W0, b0=b0, W1=W1, b1=b1, W2=W2, b2vec=b2,
        # kernel-side (bf16 matmul operands, transposed-MLP orientation).
        # (ky,kx,cin,cout) flattened to (9*cin, cout) to match the tap slicing.
        wconv_flat=jnp.transpose(wconv_oihw, (2, 3, 1, 0))
                      .reshape(9 * cin, cout).astype(jnp.bfloat16),
        w0=W0.astype(jnp.bfloat16),            # (128, sz)
        b0col=b0.reshape(128, 1),              # column bias for transposed form
        w1=W1.astype(jnp.bfloat16),            # (128, 128)
        b1col=b1.reshape(128, 1),
        w2=W2.astype(jnp.bfloat16),            # (1, 128) lane-dense final row
        b2=b2.reshape(1, 1),                   # SMEM scalar
    )


# ---------------------------------------------------------------------------
# Pure-JAX reference (mirrors the PyTorch forward, all f32)
# ---------------------------------------------------------------------------
def reference(x1, x2, params):
    x = jnp.concatenate([x1, x2], axis=1)                 # (N, 128, H, W)
    y = lax.conv_general_dilated(
        x, params["wconv_oihw"], window_strides=(1, 1), padding="SAME",
        dimension_numbers=("NCHW", "OIHW", "NCHW"))
    y = y + params["bconv"].reshape(1, -1, 1, 1)
    mean = jnp.mean(y, axis=(2, 3), keepdims=True)
    var = jnp.mean((y - mean) ** 2, axis=(2, 3), keepdims=True)
    y = jnp.maximum((y - mean) / jnp.sqrt(var + EPS), 0.0)
    h = jnp.maximum(jnp.einsum("nchw,kw->nchk", y, params["W0"]) + params["b0"], 0.0)
    h = jnp.maximum(jnp.einsum("nchk,lk->nchl", h, params["W1"]) + params["b1"], 0.0)
    return jnp.einsum("nchk,lk->nchl", h, params["W2"]) + params["b2vec"]


if __name__ == "__main__":
    N, C_half, H, W = 2, 64, 8, 16   # x1/x2: (N, 64, H, W); sz == W
    sz = W
    key = jax.random.PRNGKey(0)
    k1, k2, kp = jax.random.split(key, 3)
    x1 = jax.random.normal(k1, (N, C_half, H, W), jnp.float32)
    x2 = jax.random.normal(k2, (N, C_half, H, W), jnp.float32)
    params = init_params(kp, sz)

    out = jax.block_until_ready(mglobal_discriminator(x1, x2, params))
    assert out.shape == (N, 64, H, 1), out.shape

    ref = reference(x1, x2, params)
    # bf16 matmul operands (f32 accumulation) vs f32 reference -> looser tol.
    np.testing.assert_allclose(np.asarray(out), np.asarray(ref),
                               rtol=2e-2, atol=3e-2)
    print("KERNEL_OK")
</pallas_src>

<mosaic_0001>
module attributes {stable_mosaic.version = 11 : i64} {
  func.func @fused_disc_kernel(%arg0: i32, %arg1: memref<2x10x18x128xf32, #tpu.memory_space<vmem>>, %arg2: memref<1152x64xbf16, #tpu.memory_space<vmem>>, %arg3: memref<128x16xbf16, #tpu.memory_space<vmem>>, %arg4: memref<128x1xf32, #tpu.memory_space<vmem>>, %arg5: memref<128x128xbf16, #tpu.memory_space<vmem>>, %arg6: memref<128x1xf32, #tpu.memory_space<vmem>>, %arg7: memref<1x128xbf16, #tpu.memory_space<vmem>>, %arg8: memref<1x1xf32, #tpu.memory_space<smem>>, %arg9: memref<1x1x1024xf32, #tpu.memory_space<vmem>>, %arg10: memref<16x1024xbf16, #tpu.memory_space<vmem>>) attributes {dimension_semantics = [#tpu.dimension_semantics<parallel>], iteration_bounds = array<i64: 1>, scalar_prefetch = 0 : i64, scratch_operands = 1 : i64, tpu.core_type = #tpu.core_type<tc>, window_params = [{transform_indices = @transform_0, window_bounds = array<i64: 2, 10, 18, 128>}, {pipeline_mode = #tpu.pipeline_mode<synchronous>, transform_indices = @transform_1, window_bounds = array<i64: 1152, 64>}, {pipeline_mode = #tpu.pipeline_mode<synchronous>, transform_indices = @transform_2, window_bounds = array<i64: 128, 16>}, {pipeline_mode = #tpu.pipeline_mode<synchronous>, transform_indices = @transform_3, window_bounds = array<i64: 128, 1>}, {pipeline_mode = #tpu.pipeline_mode<synchronous>, transform_indices = @transform_4, window_bounds = array<i64: 128, 128>}, {pipeline_mode = #tpu.pipeline_mode<synchronous>, transform_indices = @transform_5, window_bounds = array<i64: 128, 1>}, {pipeline_mode = #tpu.pipeline_mode<synchronous>, transform_indices = @transform_6, window_bounds = array<i64: 1, 128>}, {transform_indices = @transform_7, window_bounds = array<i64: 1, 1>}, {transform_indices = @transform_8, window_bounds = array<i64: 1, 1, 1024>}]} {
    %c0 = arith.constant 0 : index
    %c0_0 = arith.constant 0 : index
    %c0_1 = arith.constant 0 : index
    %c0_2 = arith.constant 0 : index
    %0 = vector.load %arg1[%c0, %c0_0, %c0_1, %c0_2] : memref<2x10x18x128xf32, #tpu.memory_space<vmem>>, vector<1x10x16x128xf32>
    %1 = vector.shape_cast %0 : vector<1x10x16x128xf32> to vector<10x16x128xf32>
    %2 = vector.shape_cast %1 : vector<10x16x128xf32> to vector<160x128xf32>
    %3 = arith.truncf %2 : vector<160x128xf32> to vector<160x128xbf16>
    %4 = vector.extract_strided_slice %3 {offsets = [0, 0], sizes = [128, 128], strides = [1, 1]} : vector<160x128xbf16> to vector<128x128xbf16>
    %c0_3 = arith.constant 0 : index
    %c0_4 = arith.constant 0 : index
    %5 = vector.load %arg2[%c0_3, %c0_4] : memref<1152x64xbf16, #tpu.memory_space<vmem>>, vector<128x64xbf16>
    %cst = arith.constant dense<0.000000e+00> : vector<128x64xf32>
    %6 = tpu.matmul %4, %5, %cst {dimension_numbers = #tpu.dot_dimension_numbers<[1], [0], [0], [1], [0, 0, 1, 1], [], []>} : vector<128x128xbf16>, vector<128x64xbf16>, vector<128x64xf32> -> vector<128x64xf32>
    %7 = vector.extract_strided_slice %3 {offsets = [16, 0], sizes = [128, 128], strides = [1, 1]} : vector<160x128xbf16> to vector<128x128xbf16>
    %c384 = arith.constant 384 : index
    %c0_5 = arith.constant 0 : index
    %8 = vector.load %arg2[%c384, %c0_5] : memref<1152x64xbf16, #tpu.memory_space<vmem>>, vector<128x64xbf16>
    %cst_6 = arith.constant dense<0.000000e+00> : vector<128x64xf32>
    %9 = tpu.matmul %7, %8, %cst_6 {dimension_numbers = #tpu.dot_dimension_numbers<[1], [0], [0], [1], [0, 0, 1, 1], [], []>} : vector<128x128xbf16>, vector<128x64xbf16>, vector<128x64xf32> -> vector<128x64xf32>
    %10 = arith.addf %6, %9 : vector<128x64xf32>
    %11 = vector.extract_strided_slice %3 {offsets = [32, 0], sizes = [128, 128], strides = [1, 1]} : vector<160x128xbf16> to vector<128x128xbf16>
    %c768 = arith.constant 768 : index
    %c0_7 = arith.constant 0 : index
    %12 = vector.load %arg2[%c768, %c0_7] : memref<1152x64xbf16, #tpu.memory_space<vmem>>, vector<128x64xbf16>
    %cst_8 = arith.constant dense<0.000000e+00> : vector<128x64xf32>
    %13 = tpu.matmul %11, %12, %cst_8 {dimension_numbers = #tpu.dot_dimension_numbers<[1], [0], [0], [1], [0, 0, 1, 1], [], []>} : vector<128x128xbf16>, vector<128x64xbf16>, vector<128x64xf32> -> vector<128x64xf32>
    %14 = arith.addf %10, %13 : vector<128x64xf32>
    %c0_9 = arith.constant 0 : index
    %c0_10 = arith.constant 0 : index
    %c1 = arith.constant 1 : index
    %c0_11 = arith.constant 0 : index
    %15 = vector.load %arg1[%c0_9, %c0_10, %c1, %c0_11] : memref<2x10x18x128xf32, #tpu.memory_space<vmem>>, vector<1x10x16x128xf32>
    %16 = vector.shape_cast %15 : vector<1x10x16x128xf32> to vector<10x16x128xf32>
    %17 = vector.shape_cast %16 : vector<10x16x128xf32> to vector<160x128xf32>
    %18 = arith.truncf %17 : vector<160x128xf32> to vector<160x128xbf16>
    %19 = vector.extract_strided_slice %18 {offsets = [0, 0], sizes = [128, 128], strides = [1, 1]} : vector<160x128xbf16> to vector<128x128xbf16>
    %c128 = arith.constant 128 : index
    %c0_12 = arith.constant 0 : index
    %20 = vector.load %arg2[%c128, %c0_12] : memref<1152x64xbf16, #tpu.memory_space<vmem>>, vector<128x64xbf16>
    %cst_13 = arith.constant dense<0.000000e+00> : vector<128x64xf32>
    %21 = tpu.matmul %19, %20, %cst_13 {dimension_numbers = #tpu.dot_dimension_numbers<[1], [0], [0], [1], [0, 0, 1, 1], [], []>} : vector<128x128xbf16>, vector<128x64xbf16>, vector<128x64xf32> -> vector<128x64xf32>
    %22 = arith.addf %14, %21 : vector<128x64xf32>
    %23 = vector.extract_strided_slice %18 {offsets = [16, 0], sizes = [128, 128], strides = [1, 1]} : vector<160x128xbf16> to vector<128x128xbf16>
    %c512 = arith.constant 512 : index
    %c0_14 = arith.constant 0 : index
    %24 = vector.load %arg2[%c512, %c0_14] : memref<1152x64xbf16, #tpu.memory_space<vmem>>, vector<128x64xbf16>
    %cst_15 = arith.constant dense<0.000000e+00> : vector<128x64xf32>
    %25 = tpu.matmul %23, %24, %cst_15 {dimension_numbers = #tpu.dot_dimension_numbers<[1], [0], [0], [1], [0, 0, 1, 1], [], []>} : vector<128x128xbf16>, vector<128x64xbf16>, vector<128x64xf32> -> vector<128x64xf32>
    %26 = arith.addf %22, %25 : vector<128x64xf32>
    %27 = vector.extract_strided_slice %18 {offsets = [32, 0], sizes = [128, 128], strides = [1, 1]} : vector<160x128xbf16> to vector<128x128xbf16>
    %c896 = arith.constant 896 : index
    %c0_16 = arith.constant 0 : index
    %28 = vector.load %arg2[%c896, %c0_16] : memref<1152x64xbf16, #tpu.memory_space<vmem>>, vector<128x64xbf16>
    %cst_17 = arith.constant dense<0.000000e+00> : vector<128x64xf32>
    %29 = tpu.matmul %27, %28, %cst_17 {dimension_numbers = #tpu.dot_dimension_numbers<[1], [0], [0], [1], [0, 0, 1, 1], [], []>} : vector<128x128xbf16>, vector<128x64xbf16>, vector<128x64xf32> -> vector<128x64xf32>
    %30 = arith.addf %26, %29 : vector<128x64xf32>
    %c0_18 = arith.constant 0 : index
    %c0_19 = arith.constant 0 : index
    %c2 = arith.constant 2 : index
    %c0_20 = arith.constant 0 : index
    %31 = vector.load %arg1[%c0_18, %c0_19, %c2, %c0_20] : memref<2x10x18x128xf32, #tpu.memory_space<vmem>>, vector<1x10x16x128xf32>
    %32 = vector.shape_cast %31 : vector<1x10x16x128xf32> to vector<10x16x128xf32>
    %33 = vector.shape_cast %32 : vector<10x16x128xf32> to vector<160x128xf32>
    %34 = arith.truncf %33 : vector<160x128xf32> to vector<160x128xbf16>
    %35 = vector.extract_strided_slice %34 {offsets = [0, 0], sizes = [128, 128], strides = [1, 1]} : vector<160x128xbf16> to vector<128x128xbf16>
    %c256 = arith.constant 256 : index
    %c0_21 = arith.constant 0 : index
    %36 = vector.load %arg2[%c256, %c0_21] : memref<1152x64xbf16, #tpu.memory_space<vmem>>, vector<128x64xbf16>
    %cst_22 = arith.constant dense<0.000000e+00> : vector<128x64xf32>
    %37 = tpu.matmul %35, %36, %cst_22 {dimension_numbers = #tpu.dot_dimension_numbers<[1], [0], [0], [1], [0, 0, 1, 1], [], []>} : vector<128x128xbf16>, vector<128x64xbf16>, vector<128x64xf32> -> vector<128x64xf32>
    %38 = arith.addf %30, %37 : vector<128x64xf32>
    %39 = vector.extract_strided_slice %34 {offsets = [16, 0], sizes = [128, 128], strides = [1, 1]} : vector<160x128xbf16> to vector<128x128xbf16>
    %c640 = arith.constant 640 : index
    %c0_23 = arith.constant 0 : index
    %40 = vector.load %arg2[%c640, %c0_23] : memref<1152x64xbf16, #tpu.memory_space<vmem>>, vector<128x64xbf16>
    %cst_24 = arith.constant dense<0.000000e+00> : vector<128x64xf32>
    %41 = tpu.matmul %39, %40, %cst_24 {dimension_numbers = #tpu.dot_dimension_numbers<[1], [0], [0], [1], [0, 0, 1, 1], [], []>} : vector<128x128xbf16>, vector<128x64xbf16>, vector<128x64xf32> -> vector<128x64xf32>
    %42 = arith.addf %38, %41 : vector<128x64xf32>
    %43 = vector.extract_strided_slice %34 {offsets = [32, 0], sizes = [128, 128], strides = [1, 1]} : vector<160x128xbf16> to vector<128x128xbf16>
    %c1024 = arith.constant 1024 : index
    %c0_25 = arith.constant 0 : index
    %44 = vector.load %arg2[%c1024, %c0_25] : memref<1152x64xbf16, #tpu.memory_space<vmem>>, vector<128x64xbf16>
    %cst_26 = arith.constant dense<0.000000e+00> : vector<128x64xf32>
    %45 = tpu.matmul %43, %44, %cst_26 {dimension_numbers = #tpu.dot_dimension_numbers<[1], [0], [0], [1], [0, 0, 1, 1], [], []>} : vector<128x128xbf16>, vector<128x64xbf16>, vector<128x64xf32> -> vector<128x64xf32>
    %46 = arith.addf %42, %45 : vector<128x64xf32>
    %cst_27 = arith.constant dense<0.000000e+00> : vector<64xf32>
    %47 = vector.multi_reduction <add>, %46, %cst_27 [0] : vector<128x64xf32> to vector<64xf32>
    %48 = vector.shape_cast %47 : vector<64xf32> to vector<1x64xf32>
    %cst_28 = arith.constant 7.812500e-03 : f32
    %49 = vector.broadcast %cst_28 : f32 to vector<1x64xf32>
    %50 = arith.mulf %48, %49 : vector<1x64xf32>
    %51 = arith.mulf %46, %46 : vector<128x64xf32>
    %cst_29 = arith.constant dense<0.000000e+00> : vector<64xf32>
    %52 = vector.multi_reduction <add>, %51, %cst_29 [0] : vector<128x64xf32> to vector<64xf32>
    %53 = vector.shape_cast %52 : vector<64xf32> to vector<1x64xf32>
    %cst_30 = arith.constant 7.812500e-03 : f32
    %54 = vector.broadcast %cst_30 : f32 to vector<1x64xf32>
    %55 = arith.mulf %53, %54 : vector<1x64xf32>
    %56 = arith.mulf %50, %50 : vector<1x64xf32>
    %57 = arith.subf %55, %56 : vector<1x64xf32>
    %58 = vector.broadcast %50 : vector<1x64xf32> to vector<128x64xf32>
    %59 = arith.subf %46, %58 : vector<128x64xf32>
    %cst_31 = arith.constant 9.99999974E-6 : f32
    %60 = vector.broadcast %cst_31 : f32 to vector<1x64xf32>
    %61 = arith.addf %57, %60 : vector<1x64xf32>
    %62 = math.rsqrt %61 : vector<1x64xf32>
    %63 = vector.broadcast %62 : vector<1x64xf32> to vector<128x64xf32>
    %64 = arith.mulf %59, %63 : vector<128x64xf32>
    %cst_32 = arith.constant 0.000000e+00 : f32
    %65 = vector.broadcast %cst_32 : f32 to vector<128x64xf32>
    %66 = arith.maximumf %64, %65 : vector<128x64xf32>
    %67 = arith.truncf %66 : vector<128x64xf32> to vector<128x64xbf16>
    %68 = vector.extract_strided_slice %67 {offsets = [0, 0], sizes = [16, 64], strides = [1, 1]} : vector<128x64xbf16> to vector<16x64xbf16>
    %c0_33 = arith.constant 0 : index
    %c0_34 = arith.constant 0 : index
    %69 = vector.load %arg10[%c0_33, %c0_34] : memref<16x1024xbf16, #tpu.memory_space<vmem>>, vector<16x64xbf16>
    tpu.vector_store %arg10[%c0_33, %c0_34], %68 {strides = array<i32>} : memref<16x1024xbf16, #tpu.memory_space<vmem>>, vector<16x64xbf16>,
    %70 = vector.extract_strided_slice %67 {offsets = [16, 0], sizes = [16, 64], strides = [1, 1]} : vector<128x64xbf16> to vector<16x64xbf16>
    %c0_35 = arith.constant 0 : index
    %c64 = arith.constant 64 : index
    %71 = vector.load %arg10[%c0_35, %c64] : memref<16x1024xbf16, #tpu.memory_space<vmem>>, vector<16x64xbf16>
    tpu.vector_store %arg10[%c0_35, %c64], %70 {strides = array<i32>} : memref<16x1024xbf16, #tpu.memory_space<vmem>>, vector<16x64xbf16>,
    %72 = vector.extract_strided_slice %67 {offsets = [32, 0], sizes = [16, 64], strides = [1, 1]} : vector<128x64xbf16> to vector<16x64xbf16>
    %c0_36 = arith.constant 0 : index
    %c128_37 = arith.constant 128 : index
    %73 = vector.load %arg10[%c0_36, %c128_37] : memref<16x1024xbf16, #tpu.memory_space<vmem>>, vector<16x64xbf16>
    tpu.vector_store %arg10[%c0_36, %c128_37], %72 {strides = array<i32>} : memref<16x1024xbf16, #tpu.memory_space<vmem>>, vector<16x64xbf16>,
    %74 = vector.extract_strided_slice %67 {offsets = [48, 0], sizes = [16, 64], strides = [1, 1]} : vector<128x64xbf16> to vector<16x64xbf16>
    %c0_38 = arith.constant 0 : index
    %c192 = arith.constant 192 : index
    %75 = vector.load %arg10[%c0_38, %c192] : memref<16x1024xbf16, #tpu.memory_space<vmem>>, vector<16x64xbf16>
    tpu.vector_store %arg10[%c0_38, %c192], %74 {strides = array<i32>} : memref<16x1024xbf16, #tpu.memory_space<vmem>>, vector<16x64xbf16>,
    %76 = vector.extract_strided_slice %67 {offsets = [64, 0], sizes = [16, 64], strides = [1, 1]} : vector<128x64xbf16> to vector<16x64xbf16>
    %c0_39 = arith.constant 0 : index
    %c256_40 = arith.constant 256 : index
    %77 = vector.load %arg10[%c0_39, %c256_40] : memref<16x1024xbf16, #tpu.memory_space<vmem>>, vector<16x64xbf16>
    tpu.vector_store %arg10[%c0_39, %c256_40], %76 {strides = array<i32>} : memref<16x1024xbf16, #tpu.memory_space<vmem>>, vector<16x64xbf16>,
    %78 = vector.extract_strided_slice %67 {offsets = [80, 0], sizes = [16, 64], strides = [1, 1]} : vector<128x64xbf16> to vector<16x64xbf16>
    %c0_41 = arith.constant 0 : index
    %c320 = arith.constant 320 : index
    %79 = vector.load %arg10[%c0_41, %c320] : memref<16x1024xbf16, #tpu.memory_space<vmem>>, vector<16x64xbf16>
    tpu.vector_store %arg10[%c0_41, %c320], %78 {strides = array<i32>} : memref<16x1024xbf16, #tpu.memory_space<vmem>>, vector<16x64xbf16>,
    %80 = vector.extract_strided_slice %67 {offsets = [96, 0], sizes = [16, 64], strides = [1, 1]} : vector<128x64xbf16> to vector<16x64xbf16>
    %c0_42 = arith.constant 0 : index
    %c384_43 = arith.constant 384 : index
    %81 = vector.load %arg10[%c0_42, %c384_43] : memref<16x1024xbf16, #tpu.memory_space<vmem>>, vector<16x64xbf16>
    tpu.vector_store %arg10[%c0_42, %c384_43], %80 {strides = array<i32>} : memref<16x1024xbf16, #tpu.memory_space<vmem>>, vector<16x64xbf16>,
    %82 = vector.extract_strided_slice %67 {offsets = [112, 0], sizes = [16, 64], strides = [1, 1]} : vector<128x64xbf16> to vector<16x64xbf16>
    %c0_44 = arith.constant 0 : index
    %c448 = arith.constant 448 : index
    %83 = vector.load %arg10[%c0_44, %c448] : memref<16x1024xbf16, #tpu.memory_space<vmem>>, vector<16x64xbf16>
    tpu.vector_store %arg10[%c0_44, %c448], %82 {strides = array<i32>} : memref<16x1024xbf16, #tpu.memory_space<vmem>>, vector<16x64xbf16>,
    %c1_45 = arith.constant 1 : index
    %c0_46 = arith.constant 0 : index
    %c0_47 = arith.constant 0 : index
    %c0_48 = arith.constant 0 : index
    %84 = vector.load %arg1[%c1_45, %c0_46, %c0_47, %c0_48] : memref<2x10x18x128xf32, #tpu.memory_space<vmem>>, vector<1x10x16x128xf32>
    %85 = vector.shape_cast %84 : vector<1x10x16x128xf32> to vector<10x16x128xf32>
    %86 = vector.shape_cast %85 : vector<10x16x128xf32> to vector<160x128xf32>
    %87 = arith.truncf %86 : vector<160x128xf32> to vector<160x128xbf16>
    %88 = vector.extract_strided_slice %87 {offsets = [0, 0], sizes = [128, 128], strides = [1, 1]} : vector<160x128xbf16> to vector<128x128xbf16>
    %c0_49 = arith.constant 0 : index
    %c0_50 = arith.constant 0 : index
    %89 = vector.load %arg2[%c0_49, %c0_50] : memref<1152x64xbf16, #tpu.memory_space<vmem>>, vector<128x64xbf16>
    %cst_51 = arith.constant dense<0.000000e+00> : vector<128x64xf32>
    %90 = tpu.matmul %88, %89, %cst_51 {dimension_numbers = #tpu.dot_dimension_numbers<[1], [0], [0], [1], [0, 0, 1, 1], [], []>} : vector<128x128xbf16>, vector<128x64xbf16>, vector<128x64xf32> -> vector<128x64xf32>
    %91 = vector.extract_strided_slice %87 {offsets = [16, 0], sizes = [128, 128], strides = [1, 1]} : vector<160x128xbf16> to vector<128x128xbf16>
    %c384_52 = arith.constant 384 : index
    %c0_53 = arith.constant 0 : index
    %92 = vector.load %arg2[%c384_52, %c0_53] : memref<1152x64xbf16, #tpu.memory_space<vmem>>, vector<128x64xbf16>
    %cst_54 = arith.constant dense<0.000000e+00> : vector<128x64xf32>
    %93 = tpu.matmul %91, %92, %cst_54 {dimension_numbers = #tpu.dot_dimension_numbers<[1], [0], [0], [1], [0, 0, 1, 1], [], []>} : vector<128x128xbf16>, vector<128x64xbf16>, vector<128x64xf32> -> vector<128x64xf32>
    %94 = arith.addf %90, %93 : vector<128x64xf32>
    %95 = vector.extract_strided_slice %87 {offsets = [32, 0], sizes = [128, 128], strides = [1, 1]} : vector<160x128xbf16> to vector<128x128xbf16>
    %c768_55 = arith.constant 768 : index
    %c0_56 = arith.constant 0 : index
    %96 = vector.load %arg2[%c768_55, %c0_56] : memref<1152x64xbf16, #tpu.memory_space<vmem>>, vector<128x64xbf16>
    %cst_57 = arith.constant dense<0.000000e+00> : vector<128x64xf32>
    %97 = tpu.matmul %95, %96, %cst_57 {dimension_numbers = #tpu.dot_dimension_numbers<[1], [0], [0], [1], [0, 0, 1, 1], [], []>} : vector<128x128xbf16>, vector<128x64xbf16>, vector<128x64xf32> -> vector<128x64xf32>
    %98 = arith.addf %94, %97 : vector<128x64xf32>
    %c1_58 = arith.constant 1 : index
    %c0_59 = arith.constant 0 : index
    %c1_60 = arith.constant 1 : index
    %c0_61 = arith.constant 0 : index
    %99 = vector.load %arg1[%c1_58, %c0_59, %c1_60, %c0_61] : memref<2x10x18x128xf32, #tpu.memory_space<vmem>>, vector<1x10x16x128xf32>
    %100 = vector.shape_cast %99 : vector<1x10x16x128xf32> to vector<10x16x128xf32>
    %101 = vector.shape_cast %100 : vector<10x16x128xf32> to vector<160x128xf32>
    %102 = arith.truncf %101 : vector<160x128xf32> to vector<160x128xbf16>
    %103 = vector.extract_strided_slice %102 {offsets = [0, 0], sizes = [128, 128], strides = [1, 1]} : vector<160x128xbf16> to vector<128x128xbf16>
    %c128_62 = arith.constant 128 : index
    %c0_63 = arith.constant 0 : index
    %104 = vector.load %arg2[%c128_62, %c0_63] : memref<1152x64xbf16, #tpu.memory_space<vmem>>, vector<128x64xbf16>
    %cst_64 = arith.constant dense<0.000000e+00> : vector<128x64xf32>
    %105 = tpu.matmul %103, %104, %cst_64 {dimension_numbers = #tpu.dot_dimension_numbers<[1], [0], [0], [1], [0, 0, 1, 1], [], []>} : vector<128x128xbf16>, vector<128x64xbf16>, vector<128x64xf32> -> vector<128x64xf32>
    %106 = arith.addf %98, %105 : vector<128x64xf32>
    %107 = vector.extract_strided_slice %102 {offsets = [16, 0], sizes = [128, 128], strides = [1, 1]} : vector<160x128xbf16> to vector<128x128xbf16>
    %c512_65 = arith.constant 512 : index
    %c0_66 = arith.constant 0 : index
    %108 = vector.load %arg2[%c512_65, %c0_66] : memref<1152x64xbf16, #tpu.memory_space<vmem>>, vector<128x64xbf16>
    %cst_67 = arith.constant dense<0.000000e+00> : vector<128x64xf32>
    %109 = tpu.matmul %107, %108, %cst_67 {dimension_numbers = #tpu.dot_dimension_numbers<[1], [0], [0], [1], [0, 0, 1, 1], [], []>} : vector<128x128xbf16>, vector<128x64xbf16>, vector<128x64xf32> -> vector<128x64xf32>
    %110 = arith.addf %106, %109 : vector<128x64xf32>
    %111 = vector.extract_strided_slice %102 {offsets = [32, 0], sizes = [128, 128], strides = [1, 1]} : vector<160x128xbf16> to vector<128x128xbf16>
    %c896_68 = arith.constant 896 : index
    %c0_69 = arith.constant 0 : index
    %112 = vector.load %arg2[%c896_68, %c0_69] : memref<1152x64xbf16, #tpu.memory_space<vmem>>, vector<128x64xbf16>
    %cst_70 = arith.constant dense<0.000000e+00> : vector<128x64xf32>
    %113 = tpu.matmul %111, %112, %cst_70 {dimension_numbers = #tpu.dot_dimension_numbers<[1], [0], [0], [1], [0, 0, 1, 1], [], []>} : vector<128x128xbf16>, vector<128x64xbf16>, vector<128x64xf32> -> vector<128x64xf32>
    %114 = arith.addf %110, %113 : vector<128x64xf32>
    %c1_71 = arith.constant 1 : index
    %c0_72 = arith.constant 0 : index
    %c2_73 = arith.constant 2 : index
    %c0_74 = arith.constant 0 : index
    %115 = vector.load %arg1[%c1_71, %c0_72, %c2_73, %c0_74] : memref<2x10x18x128xf32, #tpu.memory_space<vmem>>, vector<1x10x16x128xf32>
    %116 = vector.shape_cast %115 : vector<1x10x16x128xf32> to vector<10x16x128xf32>
    %117 = vector.shape_cast %116 : vector<10x16x128xf32> to vector<160x128xf32>
    %118 = arith.truncf %117 : vector<160x128xf32> to vector<160x128xbf16>
    %119 = vector.extract_strided_slice %118 {offsets = [0, 0], sizes = [128, 128], strides = [1, 1]} : vector<160x128xbf16> to vector<128x128xbf16>
    %c256_75 = arith.constant 256 : index
    %c0_76 = arith.constant 0 : index
    %120 = vector.load %arg2[%c256_75, %c0_76] : memref<1152x64xbf16, #tpu.memory_space<vmem>>, vector<128x64xbf16>
    %cst_77 = arith.constant dense<0.000000e+00> : vector<128x64xf32>
    %121 = tpu.matmul %119, %120, %cst_77 {dimension_numbers = #tpu.dot_dimension_numbers<[1], [0], [0], [1], [0, 0, 1, 1], [], []>} : vector<128x128xbf16>, vector<128x64xbf16>, vector<128x64xf32> -> vector<128x64xf32>
    %122 = arith.addf %114, %121 : vector<128x64xf32>
    %123 = vector.extract_strided_slice %118 {offsets = [16, 0], sizes = [128, 128], strides = [1, 1]} : vector<160x128xbf16> to vector<128x128xbf16>
    %c640_78 = arith.constant 640 : index
    %c0_79 = arith.constant 0 : index
    %124 = vector.load %arg2[%c640_78, %c0_79] : memref<1152x64xbf16, #tpu.memory_space<vmem>>, vector<128x64xbf16>
    %cst_80 = arith.constant dense<0.000000e+00> : vector<128x64xf32>
    %125 = tpu.matmul %123, %124, %cst_80 {dimension_numbers = #tpu.dot_dimension_numbers<[1], [0], [0], [1], [0, 0, 1, 1], [], []>} : vector<128x128xbf16>, vector<128x64xbf16>, vector<128x64xf32> -> vector<128x64xf32>
    %126 = arith.addf %122, %125 : vector<128x64xf32>
    %127 = vector.extract_strided_slice %118 {offsets = [32, 0], sizes = [128, 128], strides = [1, 1]} : vector<160x128xbf16> to vector<128x128xbf16>
    %c1024_81 = arith.constant 1024 : index
    %c0_82 = arith.constant 0 : index
    %128 = vector.load %arg2[%c1024_81, %c0_82] : memref<1152x64xbf16, #tpu.memory_space<vmem>>, vector<128x64xbf16>
    %cst_83 = arith.constant dense<0.000000e+00> : vector<128x64xf32>
    %129 = tpu.matmul %127, %128, %cst_83 {dimension_numbers = #tpu.dot_dimension_numbers<[1], [0], [0], [1], [0, 0, 1, 1], [], []>} : vector<128x128xbf16>, vector<128x64xbf16>, vector<128x64xf32> -> vector<128x64xf32>
    %130 = arith.addf %126, %129 : vector<128x64xf32>
    %cst_84 = arith.constant dense<0.000000e+00> : vector<64xf32>
    %131 = vector.multi_reduction <add>, %130, %cst_84 [0] : vector<128x64xf32> to vector<64xf32>
    %132 = vector.shape_cast %131 : vector<64xf32> to vector<1x64xf32>
    %cst_85 = arith.constant 7.812500e-03 : f32
    %133 = vector.broadcast %cst_85 : f32 to vector<1x64xf32>
    %134 = arith.mulf %132, %133 : vector<1x64xf32>
    %135 = arith.mulf %130, %130 : vector<128x64xf32>
    %cst_86 = arith.constant dense<0.000000e+00> : vector<64xf32>
    %136 = vector.multi_reduction <add>, %135, %cst_86 [0] : vector<128x64xf32> to vector<64xf32>
    %137 = vector.shape_cast %136 : vector<64xf32> to vector<1x64xf32>
    %cst_87 = arith.constant 7.812500e-03 : f32
    %138 = vector.broadcast %cst_87 : f32 to vector<1x64xf32>
    %139 = arith.mulf %137, %138 : vector<1x64xf32>
    %140 = arith.mulf %134, %134 : vector<1x64xf32>
    %141 = arith.subf %139, %140 : vector<1x64xf32>
    %142 = vector.broadcast %134 : vector<1x64xf32> to vector<128x64xf32>
    %143 = arith.subf %130, %142 : vector<128x64xf32>
    %cst_88 = arith.constant 9.99999974E-6 : f32
    %144 = vector.broadcast %cst_88 : f32 to vector<1x64xf32>
    %145 = arith.addf %141, %144 : vector<1x64xf32>
    %146 = math.rsqrt %145 : vector<1x64xf32>
    %147 = vector.broadcast %146 : vector<1x64xf32> to vector<128x64xf32>
    %148 = arith.mulf %143, %147 : vector<128x64xf32>
    %cst_89 = arith.constant 0.000000e+00 : f32
    %149 = vector.broadcast %cst_89 : f32 to vector<128x64xf32>
    %150 = arith.maximumf %148, %149 : vector<128x64xf32>
    %151 = arith.truncf %150 : vector<128x64xf32> to vector<128x64xbf16>
    %152 = vector.extract_strided_slice %151 {offsets = [0, 0], sizes = [16, 64], strides = [1, 1]} : vector<128x64xbf16> to vector<16x64xbf16>
    %c0_90 = arith.constant 0 : index
    %c512_91 = arith.constant 512 : index
    %153 = vector.load %arg10[%c0_90, %c512_91] : memref<16x1024xbf16, #tpu.memory_space<vmem>>, vector<16x64xbf16>
    tpu.vector_store %arg10[%c0_90, %c512_91], %152 {strides = array<i32>} : memref<16x1024xbf16, #tpu.memory_space<vmem>>, vector<16x64xbf16>,
    %154 = vector.extract_strided_slice %151 {offsets = [16, 0], sizes = [16, 64], strides = [1, 1]} : vector<128x64xbf16> to vector<16x64xbf16>
    %c0_92 = arith.constant 0 : index
    %c576 = arith.constant 576 : index
    %155 = vector.load %arg10[%c0_92, %c576] : memref<16x1024xbf16, #tpu.memory_space<vmem>>, vector<16x64xbf16>
    tpu.vector_store %arg10[%c0_92, %c576], %154 {strides = array<i32>} : memref<16x1024xbf16, #tpu.memory_space<vmem>>, vector<16x64xbf16>,
    %156 = vector.extract_strided_slice %151 {offsets = [32, 0], sizes = [16, 64], strides = [1, 1]} : vector<128x64xbf16> to vector<16x64xbf16>
    %c0_93 = arith.constant 0 : index
    %c640_94 = arith.constant 640 : index
    %157 = vector.load %arg10[%c0_93, %c640_94] : memref<16x1024xbf16, #tpu.memory_space<vmem>>, vector<16x64xbf16>
    tpu.vector_store %arg10[%c0_93, %c640_94], %156 {strides = array<i32>} : memref<16x1024xbf16, #tpu.memory_space<vmem>>, vector<16x64xbf16>,
    %158 = vector.extract_strided_slice %151 {offsets = [48, 0], sizes = [16, 64], strides = [1, 1]} : vector<128x64xbf16> to vector<16x64xbf16>
    %c0_95 = arith.constant 0 : index
    %c704 = arith.constant 704 : index
    %159 = vector.load %arg10[%c0_95, %c704] : memref<16x1024xbf16, #tpu.memory_space<vmem>>, vector<16x64xbf16>
    tpu.vector_store %arg10[%c0_95, %c704], %158 {strides = array<i32>} : memref<16x1024xbf16, #tpu.memory_space<vmem>>, vector<16x64xbf16>,
    %160 = vector.extract_strided_slice %151 {offsets = [64, 0], sizes = [16, 64], strides = [1, 1]} : vector<128x64xbf16> to vector<16x64xbf16>
    %c0_96 = arith.constant 0 : index
    %c768_97 = arith.constant 768 : index
    %161 = vector.load %arg10[%c0_96, %c768_97] : memref<16x1024xbf16, #tpu.memory_space<vmem>>, vector<16x64xbf16>
    tpu.vector_store %arg10[%c0_96, %c768_97], %160 {strides = array<i32>} : memref<16x1024xbf16, #tpu.memory_space<vmem>>, vector<16x64xbf16>,
    %162 = vector.extract_strided_slice %151 {offsets = [80, 0], sizes = [16, 64], strides = [1, 1]} : vector<128x64xbf16> to vector<16x64xbf16>
    %c0_98 = arith.constant 0 : index
    %c832 = arith.constant 832 : index
    %163 = vector.load %arg10[%c0_98, %c832] : memref<16x1024xbf16, #tpu.memory_space<vmem>>, vector<16x64xbf16>
    tpu.vector_store %arg10[%c0_98, %c832], %162 {strides = array<i32>} : memref<16x1024xbf16, #tpu.memory_space<vmem>>, vector<16x64xbf16>,
    %164 = vector.extract_strided_slice %151 {offsets = [96, 0], sizes = [16, 64], strides = [1, 1]} : vector<128x64xbf16> to vector<16x64xbf16>
    %c0_99 = arith.constant 0 : index
    %c896_100 = arith.constant 896 : index
    %165 = vector.load %arg10[%c0_99, %c896_100] : memref<16x1024xbf16, #tpu.memory_space<vmem>>, vector<16x64xbf16>
    tpu.vector_store %arg10[%c0_99, %c896_100], %164 {strides = array<i32>} : memref<16x1024xbf16, #tpu.memory_space<vmem>>, vector<16x64xbf16>,
    %166 = vector.extract_strided_slice %151 {offsets = [112, 0], sizes = [16, 64], strides = [1, 1]} : vector<128x64xbf16> to vector<16x64xbf16>
    %c0_101 = arith.constant 0 : index
    %c960 = arith.constant 960 : index
    %167 = vector.load %arg10[%c0_101, %c960] : memref<16x1024xbf16, #tpu.memory_space<vmem>>, vector<16x64xbf16>
    tpu.vector_store %arg10[%c0_101, %c960], %166 {strides = array<i32>} : memref<16x1024xbf16, #tpu.memory_space<vmem>>, vector<16x64xbf16>,
    %c0_102 = arith.constant 0 : index
    %c0_103 = arith.constant 0 : index
    %168 = vector.load %arg3[%c0_102, %c0_103] : memref<128x16xbf16, #tpu.memory_space<vmem>>, vector<128x16xbf16>
    %c0_104 = arith.constant 0 : index
    %c0_105 = arith.constant 0 : index
    %169 = vector.load %arg10[%c0_104, %c0_105] : memref<16x1024xbf16, #tpu.memory_space<vmem>>, vector<16x1024xbf16>
    %cst_106 = arith.constant dense<0.000000e+00> : vector<128x1024xf32>
    %170 = tpu.matmul %168, %169, %cst_106 {dimension_numbers = #tpu.dot_dimension_numbers<[1], [0], [0], [1], [0, 0, 1, 1], [], []>} : vector<128x16xbf16>, vector<16x1024xbf16>, vector<128x1024xf32> -> vector<128x1024xf32>
    %c0_107 = arith.constant 0 : index
    %c0_108 = arith.constant 0 : index
    %171 = vector.load %arg4[%c0_107, %c0_108] : memref<128x1xf32, #tpu.memory_space<vmem>>, vector<128x1xf32>
    %172 = vector.broadcast %171 : vector<128x1xf32> to vector<128x1024xf32>
    %173 = arith.addf %170, %172 : vector<128x1024xf32>
    %cst_109 = arith.constant 0.000000e+00 : f32
    %174 = vector.broadcast %cst_109 : f32 to vector<128x1024xf32>
    %175 = arith.maximumf %173, %174 : vector<128x1024xf32>
    %176 = arith.truncf %175 : vector<128x1024xf32> to vector<128x1024xbf16>
    %c0_110 = arith.constant 0 : index
    %c0_111 = arith.constant 0 : index
    %177 = vector.load %arg5[%c0_110, %c0_111] : memref<128x128xbf16, #tpu.memory_space<vmem>>, vector<128x128xbf16>
    %cst_112 = arith.constant dense<0.000000e+00> : vector<128x1024xf32>
    %178 = tpu.matmul %177, %176, %cst_112 {dimension_numbers = #tpu.dot_dimension_numbers<[1], [0], [0], [1], [0, 0, 1, 1], [], []>} : vector<128x128xbf16>, vector<128x1024xbf16>, vector<128x1024xf32> -> vector<128x1024xf32>
    %c0_113 = arith.constant 0 : index
    %c0_114 = arith.constant 0 : index
    %179 = vector.load %arg6[%c0_113, %c0_114] : memref<128x1xf32, #tpu.memory_space<vmem>>, vector<128x1xf32>
    %180 = vector.broadcast %179 : vector<128x1xf32> to vector<128x1024xf32>
    %181 = arith.addf %178, %180 : vector<128x1024xf32>
    %cst_115 = arith.constant 0.000000e+00 : f32
    %182 = vector.broadcast %cst_115 : f32 to vector<128x1024xf32>
    %183 = arith.maximumf %181, %182 : vector<128x1024xf32>
    %184 = arith.truncf %183 : vector<128x1024xf32> to vector<128x1024xbf16>
    %c0_116 = arith.constant 0 : index
    %c0_117 = arith.constant 0 : index
    %185 = vector.load %arg7[%c0_116, %c0_117] : memref<1x128xbf16, #tpu.memory_space<vmem>>, vector<1x128xbf16>
    %cst_118 = arith.constant dense<0.000000e+00> : vector<1x1024xf32>
    %186 = tpu.matmul %185, %184, %cst_118 {dimension_numbers = #tpu.dot_dimension_numbers<[1], [0], [0], [1], [0, 0, 1, 1], [], []>} : vector<1x128xbf16>, vector<128x1024xbf16>, vector<1x1024xf32> -> vector<1x1024xf32>
    %c0_119 = arith.constant 0 : index
    %c0_120 = arith.constant 0 : index
    %187 = memref.load %arg8[%c0_119, %c0_120] : memref<1x1xf32, #tpu.memory_space<smem>>
    %188 = vector.broadcast %187 : f32 to vector<1x1024xf32>
    %189 = arith.addf %186, %188 : vector<1x1024xf32>
    %c0_121 = arith.constant 0 : index
    %c0_122 = arith.constant 0 : index
    %c0_123 = arith.constant 0 : index
    %190 = vector.load %arg9[%c0_121, %c0_122, %c0_123] : memref<1x1x1024xf32, #tpu.memory_space<vmem>>, vector<1x1x1024xf32>
    %191 = vector.shape_cast %190 : vector<1x1x1024xf32> to vector<1x1024xf32>
    %192 = vector.shape_cast %189 : vector<1x1024xf32> to vector<1x1x1024xf32>
    tpu.vector_store %arg9[%c0_121, %c0_122, %c0_123], %192 {strides = array<i32>} : memref<1x1x1024xf32, #tpu.memory_space<vmem>>, vector<1x1x1024xf32>,
    return
  }
  func.func @transform_0(%arg0: i32) -> (i32, i32, i32, i32) {
    %c0_i32 = arith.constant 0 : i32
    %c0_i32_0 = arith.constant 0 : i32
    %c0_i32_1 = arith.constant 0 : i32
    %c0_i32_2 = arith.constant 0 : i32
    return %arg0, %c0_i32, %c0_i32_0, %c0_i32_1 : i32, i32, i32, i32
  }
  func.func @transform_1(%arg0: i32) -> (i32, i32) {
    %c0_i32 = arith.constant 0 : i32
    %c0_i32_0 = arith.constant 0 : i32
    %c0_i32_1 = arith.constant 0 : i32
    return %c0_i32, %c0_i32_0 : i32, i32
  }
  func.func @transform_2(%arg0: i32) -> (i32, i32) {
    %c0_i32 = arith.constant 0 : i32
    %c0_i32_0 = arith.constant 0 : i32
    %c0_i32_1 = arith.constant 0 : i32
    return %c0_i32, %c0_i32_0 : i32, i32
  }
  func.func @transform_3(%arg0: i32) -> (i32, i32) {
    %c0_i32 = arith.constant 0 : i32
    %c0_i32_0 = arith.constant 0 : i32
    %c0_i32_1 = arith.constant 0 : i32
    return %c0_i32, %c0_i32_0 : i32, i32
  }
  func.func @transform_4(%arg0: i32) -> (i32, i32) {
    %c0_i32 = arith.constant 0 : i32
    %c0_i32_0 = arith.constant 0 : i32
    %c0_i32_1 = arith.constant 0 : i32
    return %c0_i32, %c0_i32_0 : i32, i32
  }
  func.func @transform_5(%arg0: i32) -> (i32, i32) {
    %c0_i32 = arith.constant 0 : i32
    %c0_i32_0 = arith.constant 0 : i32
    %c0_i32_1 = arith.constant 0 : i32
    return %c0_i32, %c0_i32_0 : i32, i32
  }
  func.func @transform_6(%arg0: i32) -> (i32, i32) {
    %c0_i32 = arith.constant 0 : i32
    %c0_i32_0 = arith.constant 0 : i32
    %c0_i32_1 = arith.constant 0 : i32
    return %c0_i32, %c0_i32_0 : i32, i32
  }
  func.func @transform_7(%arg0: i32) -> (i32, i32) {
    %c0_i32 = arith.constant 0 : i32
    %c0_i32_0 = arith.constant 0 : i32
    %c0_i32_1 = arith.constant 0 : i32
    return %c0_i32, %c0_i32_0 : i32, i32
  }
  func.func @transform_8(%arg0: i32) -> (i32, i32, i32) {
    %c0_i32 = arith.constant 0 : i32
    %c0_i32_0 = arith.constant 0 : i32
    %c0_i32_1 = arith.constant 0 : i32
    return %arg0, %c0_i32, %c0_i32_0 : i32, i32, i32
  }
}

</mosaic_0001>

<llo_original>
// kernel: mglobal_discriminator.1
$region0: #{mglobal_discriminator.1}
  #allocation0 [shape = 'u32[]', space=smem, size = 0x4, offset = 0x4, fixed_abs, tag = 'smem constant byte address 0x4 - core index']
  #allocation1 [shape = 'u32[144,128]{1,0:T(1,128)}', space=vmem, size = 0x12000, scoped, tag = 'internal scratch']
  #allocation2 [shape = 'bf16[16,1024]{1,0:T(16,128)(2,1)}', space=vmem, size = 0x8000, scoped, tag = 'scratch operand']
  #allocation3 [shape = 'f32[1,1]{1,0:T(1,128)S(6)}', space=smem, size = 0x200, scoped, tag = 'scoped memory for mglobal_discriminator.1']
  %s0 = inlined_call_operand.vmem [shape: f32[2,10,18,128], index: 0, kind: input, shape index: {}]
  %s1 = inlined_call_operand.vmem [shape: bf16[1152,64], index: 1, kind: input, shape index: {}]
  %s2 = inlined_call_operand.vmem [shape: bf16[128,16], index: 2, kind: input, shape index: {}]
  %s3 = inlined_call_operand.vmem [shape: f32[128,1], index: 3, kind: input, shape index: {}]
  %s4 = inlined_call_operand.vmem [shape: bf16[128,128], index: 4, kind: input, shape index: {}]
  %s5 = inlined_call_operand.vmem [shape: f32[128,1], index: 5, kind: input, shape index: {}]
  %s6 = inlined_call_operand.vmem [shape: bf16[1,128], index: 6, kind: input, shape index: {}]
  %s7 = inlined_call_operand.<no memory space> [shape: f32[1,1], index: 7, kind: input, shape index: {}]
  %s8 = inlined_call_operand.vmem [shape: f32[1,1,1024], index: 8, kind: output, shape index: {}]
  %s9 = sld [smem:[#allocation0]]
  $region42: #{mglobal_discriminator.1} parent=0
    _
  %s11 = ssub.s32 1, %s9
  %s12 = scalar_select 0, %s11, %s9
  %13 = sst [smem:[#allocation3]] %s7
  // Predicated region
  $region2: #{mglobal_discriminator.1} parent=0 // pred_check
    _
  $region3: #{mglobal_discriminator.1} parent=0 // pred_check_branch
    %15 = sbr.rel (0) target = $region5
  $region4: #{mglobal_discriminator.1} parent=0 // pred_region
    _
  $region5: #{mglobal_discriminator.1} parent=0 // pred_fallthru
    _
  // Predicated region
  $region6: #{mglobal_discriminator.1} parent=0 // pred_check
    _
  $region7: #{mglobal_discriminator.1} parent=0 // pred_check_branch
    %17 = sbr.rel (0) target = $region9
  $region8: #{mglobal_discriminator.1} parent=0 // pred_region
    _
  $region9: #{mglobal_discriminator.1} parent=0 // pred_fallthru
    _
  // Predicated region
  $region10: #{mglobal_discriminator.1} parent=0 // pred_check
    _
  $region11: #{mglobal_discriminator.1} parent=0 // pred_check_branch
    %19 = sbr.rel (0) target = $region13
  $region12: #{mglobal_discriminator.1} parent=0 // pred_region
    _
  $region13: #{mglobal_discriminator.1} parent=0 // pred_fallthru
    _
  // Predicated region
  $region14: #{mglobal_discriminator.1} parent=0 // pred_check
    _
  $region15: #{mglobal_discriminator.1} parent=0 // pred_check_branch
    %21 = sbr.rel (0) target = $region17
  $region16: #{mglobal_discriminator.1} parent=0 // pred_region
    _
  $region17: #{mglobal_discriminator.1} parent=0 // pred_fallthru
    _
  // Predicated region
  $region18: #{mglobal_discriminator.1} parent=0 // pred_check
    _
  $region19: #{mglobal_discriminator.1} parent=0 // pred_check_branch
    %23 = sbr.rel (0) target = $region21
  $region20: #{mglobal_discriminator.1} parent=0 // pred_region
    _
  $region21: #{mglobal_discriminator.1} parent=0 // pred_fallthru
    _
  // Predicated region
  $region22: #{mglobal_discriminator.1} parent=0 // pred_check
    _
  $region23: #{mglobal_discriminator.1} parent=0 // pred_check_branch
    %25 = sbr.rel (0) target = $region25
  $region24: #{mglobal_discriminator.1} parent=0 // pred_region
    _
  $region25: #{mglobal_discriminator.1} parent=0 // pred_fallthru
    _
  // Predicated region
  $region26: #{mglobal_discriminator.1} parent=0 // pred_check
    _
  $region27: #{mglobal_discriminator.1} parent=0 // pred_check_branch
    %27 = sbr.rel (0) target = $region29
  $region28: #{mglobal_discriminator.1} parent=0 // pred_region
    _
  $region29: #{mglobal_discriminator.1} parent=0 // pred_fallthru
    _
  // Predicated region
  $region30: #{mglobal_discriminator.1} parent=0 // pred_check
    _
  $region31: #{mglobal_discriminator.1} parent=0 // pred_check_branch
    %29 = sbr.rel (0) target = $region33
  $region32: #{mglobal_discriminator.1} parent=0 // pred_region
    _
  $region33: #{mglobal_discriminator.1} parent=0 // pred_fallthru
    _
  %v31 = vld [vmem:[%s0] sm:$0xff]
  %v32 = vld [vmem:[%s0 + $0x8] sm:$0xff]
  %v33 = vld [vmem:[%s0 + $0x18] sm:$0xff]
  %v34 = vld [vmem:[%s0 + $0x20] sm:$0xff]
  %v35 = vld [vmem:[%s0 + $0x30] sm:$0xff]
  %v36 = vld [vmem:[%s0 + $0x38] sm:$0xff]
  %v37 = vld [vmem:[%s0 + $0x48] sm:$0xff]
  %v38 = vld [vmem:[%s0 + $0x50] sm:$0xff]
  %v39 = vld [vmem:[%s0 + $0x60] sm:$0xff]
  %v40 = vld [vmem:[%s0 + $0x68] sm:$0xff]
  %v41 = vld [vmem:[%s0 + $0x78] sm:$0xff]
  %v42 = vld [vmem:[%s0 + $0x80] sm:$0xff]
  %v43 = vld [vmem:[%s0 + $0x90] sm:$0xff]
  %v44 = vld [vmem:[%s0 + $0x98] sm:$0xff]
  %v45 = vld [vmem:[%s0 + $0xa8] sm:$0xff]
  %v46 = vld [vmem:[%s0 + $0xb0] sm:$0xff]
  %v47 = vld [vmem:[%s0 + $0xc0] sm:$0xff]
  %v48 = vld [vmem:[%s0 + $0xc8] sm:$0xff]
  %v49 = vld [vmem:[%s0 + $0xd8] sm:$0xff]
  %v50 = vld [vmem:[%s0 + $0xe0] sm:$0xff]
  %v51 = vpack.c.bf16 %v32, %v31
  %v52 = vpack.c.bf16 %v34, %v33
  %v53 = vpack.c.bf16 %v36, %v35
  %v54 = vpack.c.bf16 %v38, %v37
  %v55 = vpack.c.bf16 %v40, %v39
  %v56 = vpack.c.bf16 %v42, %v41
  %v57 = vpack.c.bf16 %v44, %v43
  %v58 = vpack.c.bf16 %v46, %v45
  %v59 = vpack.c.bf16 %v48, %v47
  %v60 = vpack.c.bf16 %v50, %v49
  %v61 = vld [vmem:[%s1] sm:$0xf]
  %v62 = vld [vmem:[%s1 + $0x4] sm:$0xf]
  %v63 = vld [vmem:[%s1 + $0x8] sm:$0xf]
  %v64 = vld [vmem:[%s1 + $0xc] sm:$0xf]
  %v65 = vld [vmem:[%s1 + $0x10] sm:$0xf]
  %v66 = vld [vmem:[%s1 + $0x14] sm:$0xf]
  %v67 = vld [vmem:[%s1 + $0x18] sm:$0xf]
  %v68 = vld [vmem:[%s1 + $0x1c] sm:$0xf]
  %v69 = vld [vmem:[%s1 + $0x20] sm:$0xf]
  %v70 = vld [vmem:[%s1 + $0x24] sm:$0xf]
  %v71 = vld [vmem:[%s1 + $0x28] sm:$0xf]
  %v72 = vld [vmem:[%s1 + $0x2c] sm:$0xf]
  %v73 = vld [vmem:[%s1 + $0x30] sm:$0xf]
  %v74 = vld [vmem:[%s1 + $0x34] sm:$0xf]
  %v75 = vld [vmem:[%s1 + $0x38] sm:$0xf]
  %v76 = vld [vmem:[%s1 + $0x3c] sm:$0xf]
  %v77 = vld [vmem:[%s1 + $0xc0] sm:$0xf]
  %v78 = vld [vmem:[%s1 + $0xc4] sm:$0xf]
  %v79 = vld [vmem:[%s1 + $0xc8] sm:$0xf]
  %v80 = vld [vmem:[%s1 + $0xcc] sm:$0xf]
  %v81 = vld [vmem:[%s1 + $0xd0] sm:$0xf]
  %v82 = vld [vmem:[%s1 + $0xd4] sm:$0xf]
  %v83 = vld [vmem:[%s1 + $0xd8] sm:$0xf]
  %v84 = vld [vmem:[%s1 + $0xdc] sm:$0xf]
  %v85 = vld [vmem:[%s1 + $0xe0] sm:$0xf]
  %v86 = vld [vmem:[%s1 + $0xe4] sm:$0xf]
  %v87 = vld [vmem:[%s1 + $0xe8] sm:$0xf]
  %v88 = vld [vmem:[%s1 + $0xec] sm:$0xf]
  %v89 = vld [vmem:[%s1 + $0xf0] sm:$0xf]
  %v90 = vld [vmem:[%s1 + $0xf4] sm:$0xf]
  %v91 = vld [vmem:[%s1 + $0xf8] sm:$0xf]
  %v92 = vld [vmem:[%s1 + $0xfc] sm:$0xf]
  %v109 = vunpack.c.l.b16 %v77
  %v110 = vunpack.c.l.b16 %v78
  %v111 = vunpack.c.l.b16 %v79
  %v112 = vunpack.c.l.b16 %v80
  %v113 = vunpack.c.l.b16 %v81
  %v114 = vunpack.c.l.b16 %v82
  %v115 = vunpack.c.l.b16 %v83
  %v116 = vunpack.c.l.b16 %v84
  %v117 = vunpack.c.l.b16 %v85
  %v118 = vunpack.c.l.b16 %v86
  %v119 = vunpack.c.l.b16 %v87
  %v120 = vunpack.c.l.b16 %v88
  %v121 = vunpack.c.l.b16 %v89
  %v122 = vunpack.c.l.b16 %v90
  %v123 = vunpack.c.l.b16 %v91
  %v124 = vunpack.c.l.b16 %v92
  %v125 = vpack.c.b16 %v110, %v109
  %v126 = vpack.c.b16 %v112, %v111
  %v127 = vpack.c.b16 %v114, %v113
  %v128 = vpack.c.b16 %v116, %v115
  %v129 = vpack.c.b16 %v118, %v117
  %v130 = vpack.c.b16 %v120, %v119
  %v131 = vpack.c.b16 %v122, %v121
  %v132 = vpack.c.b16 %v124, %v123
  %141 = vmatprep.subr.bf16.mxu0 0
  %142 = vmatpush1.bf16.msra.mxu0 %v125
  %143 = vmatprep.subr.bf16.mxu0 0
  %144 = vmatpush1.bf16.msra.mxu0 %v126
  %145 = vmatprep.subr.bf16.mxu0 0
  %146 = vmatpush1.bf16.msra.mxu0 %v127
  %147 = vmatprep.subr.bf16.mxu0 0
  %148 = vmatpush1.bf16.msra.mxu0 %v128
  %149 = vmatprep.subr.bf16.mxu0 0
  %150 = vmatpush1.bf16.msra.mxu0 %v129
  %151 = vmatprep.subr.bf16.mxu0 0
  %152 = vmatpush1.bf16.msra.mxu0 %v130
  %153 = vmatprep.subr.bf16.mxu0 0
  %154 = vmatpush1.bf16.msra.mxu0 %v131
  %155 = vmatprep.subr.bf16.mxu0 0
  %156 = vmatpush1.bf16.msra.mxu0 %v132
  %157 = vmatprep.subr.bf16.mxu0 0
  %158 = vmatpush1.bf16.msra.mxu0 0
  %159 = vmatprep.subr.bf16.mxu0 0
  %160 = vmatpush1.bf16.msra.mxu0 0
  %161 = vmatprep.subr.bf16.mxu0 0
  %162 = vmatpush1.bf16.msra.mxu0 0
  %163 = vmatprep.subr.bf16.mxu0 0
  %164 = vmatpush1.bf16.msra.mxu0 0
  %165 = vmatprep.subr.bf16.mxu0 0
  %166 = vmatpush1.bf16.msra.mxu0 0
  %167 = vmatprep.subr.bf16.mxu0 0
  %168 = vmatpush1.bf16.msra.mxu0 0
  %169 = vmatprep.subr.bf16.mxu0 0
  %170 = vmatpush1.bf16.msra.mxu0 0
  %171 = vmatprep.subr.bf16.mxu0 0
  %172 = vmatpush1.bf16.msra.mxu0 0
  %173 = vmatprep.mubr.bf16.mxu0 0
  %174 = vmatmul.mubr.bf16.gmra.mrb[0].mxu0 %v52
  %v175 = vpop.f32.mrb[0].mxu0
  %v176 = vadd.f32 0.0, %v175
  %v177 = vpop.f32.mrb[0].mxu0
  %v178 = vpop.f32.mrb[0].mxu0
  %v179 = vadd.f32 0.0, %v178
  %v180 = vpop.f32.mrb[0].mxu0
  %181 = vmatprep.mubr.bf16.mxu0 0
  %182 = vmatmul.mubr.bf16.gmra.mrb[0].mxu0 %v53
  %v183 = vpop.f32.mrb[0].mxu0
  %v184 = vadd.f32 0.0, %v183
  %v185 = vpop.f32.mrb[0].mxu0
  %v186 = vpop.f32.mrb[0].mxu0
  %v187 = vadd.f32 0.0, %v186
  %v188 = vpop.f32.mrb[0].mxu0
  %189 = vmatprep.mubr.bf16.mxu0 0
  %190 = vmatmul.mubr.bf16.gmra.mrb[0].mxu0 %v54
  %v191 = vpop.f32.mrb[0].mxu0
  %v192 = vadd.f32 0.0, %v191
  %v193 = vpop.f32.mrb[0].mxu0
  %v194 = vpop.f32.mrb[0].mxu0
  %v195 = vadd.f32 0.0, %v194
  %v196 = vpop.f32.mrb[0].mxu0
  %197 = vmatprep.mubr.bf16.mxu0 0
  %198 = vmatmul.mubr.bf16.gmra.mrb[0].mxu0 %v55
  %v199 = vpop.f32.mrb[0].mxu0
  %v200 = vadd.f32 0.0, %v199
  %v201 = vpop.f32.mrb[0].mxu0
  %v202 = vpop.f32.mrb[0].mxu0
  %v203 = vadd.f32 0.0, %v202
  %v204 = vpop.f32.mrb[0].mxu0
  %205 = vmatprep.mubr.bf16.mxu0 0
  %206 = vmatmul.mubr.bf16.gmra.mrb[0].mxu0 %v56
  %v207 = vpop.f32.mrb[0].mxu0
  %v208 = vadd.f32 0.0, %v207
  %v209 = vpop.f32.mrb[0].mxu0
  %v210 = vpop.f32.mrb[0].mxu0
  %v211 = vadd.f32 0.0, %v210
  %v212 = vpop.f32.mrb[0].mxu0
  %213 = vmatprep.mubr.bf16.mxu0 0
  %214 = vmatmul.mubr.bf16.gmra.mrb[0].mxu0 %v57
  %v215 = vpop.f32.mrb[0].mxu0
  %v216 = vadd.f32 0.0, %v215
  %v217 = vpop.f32.mrb[0].mxu0
  %v218 = vpop.f32.mrb[0].mxu0
  %v219 = vadd.f32 0.0, %v218
  %v220 = vpop.f32.mrb[0].mxu0
  %221 = vmatprep.mubr.bf16.mxu0 0
  %222 = vmatmul.mubr.bf16.gmra.mrb[0].mxu0 %v58
  %v223 = vpop.f32.mrb[0].mxu0
  %v224 = vadd.f32 0.0, %v223
  %v225 = vpop.f32.mrb[0].mxu0
  %v226 = vpop.f32.mrb[0].mxu0
  %v227 = vadd.f32 0.0, %v226
  %v228 = vpop.f32.mrb[0].mxu0
  %229 = vmatprep.mubr.bf16.mxu0 0
  %230 = vmatmul.mubr.bf16.gmra.mrb[0].mxu0 %v59
  %v231 = vpop.f32.mrb[0].mxu0
  %v232 = vadd.f32 0.0, %v231
  %v233 = vpop.f32.mrb[0].mxu0
  %v234 = vpop.f32.mrb[0].mxu0
  %v235 = vadd.f32 0.0, %v234
  %v236 = vpop.f32.mrb[0].mxu0
  %237 = vdwg.mxu0
  %v254 = vunpack.c.l.b16 %v61
  %v255 = vunpack.c.l.b16 %v62
  %v256 = vunpack.c.l.b16 %v63
  %v257 = vunpack.c.l.b16 %v64
  %v258 = vunpack.c.l.b16 %v65
  %v259 = vunpack.c.l.b16 %v66
  %v260 = vunpack.c.l.b16 %v67
  %v261 = vunpack.c.l.b16 %v68
  %v262 = vunpack.c.l.b16 %v69
  %v263 = vunpack.c.l.b16 %v70
  %v264 = vunpack.c.l.b16 %v71
  %v265 = vunpack.c.l.b16 %v72
  %v266 = vunpack.c.l.b16 %v73
  %v267 = vunpack.c.l.b16 %v74
  %v268 = vunpack.c.l.b16 %v75
  %v269 = vunpack.c.l.b16 %v76
  %v270 = vpack.c.b16 %v255, %v254
  %v271 = vpack.c.b16 %v257, %v256
  %v272 = vpack.c.b16 %v259, %v258
  %v273 = vpack.c.b16 %v261, %v260
  %v274 = vpack.c.b16 %v263, %v262
  %v275 = vpack.c.b16 %v265, %v264
  %v276 = vpack.c.b16 %v267, %v266
  %v277 = vpack.c.b16 %v269, %v268
  %286 = vmatprep.subr.bf16.mxu0 0
  %287 = vmatpush1.bf16.msra.mxu0 %v270
  %288 = vmatprep.subr.bf16.mxu0 0
  %289 = vmatpush1.bf16.msra.mxu0 %v271
  %290 = vmatprep.subr.bf16.mxu0 0
  %291 = vmatpush1.bf16.msra.mxu0 %v272
  %292 = vmatprep.subr.bf16.mxu0 0
  %293 = vmatpush1.bf16.msra.mxu0 %v273
  %294 = vmatprep.subr.bf16.mxu0 0
  %295 = vmatpush1.bf16.msra.mxu0 %v274
  %296 = vmatprep.subr.bf16.mxu0 0
  %297 = vmatpush1.bf16.msra.mxu0 %v275
  %298 = vmatprep.subr.bf16.mxu0 0
  %299 = vmatpush1.bf16.msra.mxu0 %v276
  %300 = vmatprep.subr.bf16.mxu0 0
  %301 = vmatpush1.bf16.msra.mxu0 %v277
  %302 = vmatprep.subr.bf16.mxu0 0
  %303 = vmatpush1.bf16.msra.mxu0 0
  %304 = vmatprep.subr.bf16.mxu0 0
  %305 = vmatpush1.bf16.msra.mxu0 0
  %306 = vmatprep.subr.bf16.mxu0 0
  %307 = vmatpush1.bf16.msra.mxu0 0
  %308 = vmatprep.subr.bf16.mxu0 0
  %309 = vmatpush1.bf16.msra.mxu0 0
  %310 = vmatprep.subr.bf16.mxu0 0
  %311 = vmatpush1.bf16.msra.mxu0 0
  %312 = vmatprep.subr.bf16.mxu0 0
  %313 = vmatpush1.bf16.msra.mxu0 0
  %314 = vmatprep.subr.bf16.mxu0 0
  %315 = vmatpush1.bf16.msra.mxu0 0
  %316 = vmatprep.subr.bf16.mxu0 0
  %317 = vmatpush1.bf16.msra.mxu0 0
  %318 = vmatprep.mubr.bf16.mxu0 0
  %319 = vmatmul.mubr.bf16.gmra.mrb[0].mxu0 %v51
  %v320 = vpop.f32.mrb[0].mxu0
  %v321 = vadd.f32 %v176, %v320
  %v322 = vpop.f32.mrb[0].mxu0
  %v323 = vpop.f32.mrb[0].mxu0
  %v324 = vadd.f32 %v179, %v323
  %v325 = vpop.f32.mrb[0].mxu0
  %326 = vmatprep.mubr.bf16.mxu0 0
  %327 = vmatmul.mubr.bf16.gmra.mrb[0].mxu0 %v52
  %v328 = vpop.f32.mrb[0].mxu0
  %v329 = vadd.f32 %v184, %v328
  %v330 = vpop.f32.mrb[0].mxu0
  %v331 = vpop.f32.mrb[0].mxu0
  %v332 = vadd.f32 %v187, %v331
  %v333 = vpop.f32.mrb[0].mxu0
  %334 = vmatprep.mubr.bf16.mxu0 0
  %335 = vmatmul.mubr.bf16.gmra.mrb[0].mxu0 %v53
  %v336 = vpop.f32.mrb[0].mxu0
  %v337 = vadd.f32 %v192, %v336
  %v338 = vpop.f32.mrb[0].mxu0
  %v339 = vpop.f32.mrb[0].mxu0
  %v340 = vadd.f32 %v195, %v339
  %v341 = vpop.f32.mrb[0].mxu0
  %342 = vmatprep.mubr.bf16.mxu0 0
  %343 = vmatmul.mubr.bf16.gmra.mrb[0].mxu0 %v54
  %v344 = vpop.f32.mrb[0].mxu0
  %v345 = vadd.f32 %v200, %v344
  %v346 = vpop.f32.mrb[0].mxu0
  %v347 = vpop.f32.mrb[0].mxu0
  %v348 = vadd.f32 %v203, %v347
  %v349 = vpop.f32.mrb[0].mxu0
  %350 = vmatprep.mubr.bf16.mxu0 0
  %351 = vmatmul.mubr.bf16.gmra.mrb[0].mxu0 %v55
  %v352 = vpop.f32.mrb[0].mxu0
  %v353 = vadd.f32 %v208, %v352
  %v354 = vpop.f32.mrb[0].mxu0
  %v355 = vpop.f32.mrb[0].mxu0
  %v356 = vadd.f32 %v211, %v355
  %v357 = vpop.f32.mrb[0].mxu0
  %358 = vmatprep.mubr.bf16.mxu0 0
  %359 = vmatmul.mubr.bf16.gmra.mrb[0].mxu0 %v56
  %v360 = vpop.f32.mrb[0].mxu0
  %v361 = vadd.f32 %v216, %v360
  %v362 = vpop.f32.mrb[0].mxu0
  %v363 = vpop.f32.mrb[0].mxu0
  %v364 = vadd.f32 %v219, %v363
  %v365 = vpop.f32.mrb[0].mxu0
  %366 = vmatprep.mubr.bf16.mxu0 0
  %367 = vmatmul.mubr.bf16.gmra.mrb[0].mxu0 %v57
  %v368 = vpop.f32.mrb[0].mxu0
  %v369 = vadd.f32 %v224, %v368
  %v370 = vpop.f32.mrb[0].mxu0
  %v371 = vpop.f32.mrb[0].mxu0
  %v372 = vadd.f32 %v227, %v371
  %v373 = vpop.f32.mrb[0].mxu0
  %374 = vmatprep.mubr.bf16.mxu0 0
  %375 = vmatmul.mubr.bf16.gmra.mrb[0].mxu0 %v58
  %v376 = vpop.f32.mrb[0].mxu0
  %v377 = vadd.f32 %v232, %v376
  %v378 = vpop.f32.mrb[0].mxu0
  %v379 = vpop.f32.mrb[0].mxu0
  %v380 = vadd.f32 %v235, %v379
  %v381 = vpop.f32.mrb[0].mxu0
  %382 = vdwg.mxu0
  %v383 = vld [vmem:[%s1 + $0x180] sm:$0xf]
  %v384 = vld [vmem:[%s1 + $0x184] sm:$0xf]
  %v385 = vld [vmem:[%s1 + $0x188] sm:$0xf]
  %v386 = vld [vmem:[%s1 + $0x18c] sm:$0xf]
  %v387 = vld [vmem:[%s1 + $0x190] sm:$0xf]
  %v388 = vld [vmem:[%s1 + $0x194] sm:$0xf]
  %v389 = vld [vmem:[%s1 + $0x198] sm:$0xf]
  %v390 = vld [vmem:[%s1 + $0x19c] sm:$0xf]
  %v391 = vld [vmem:[%s1 + $0x1a0] sm:$0xf]
  %v392 = vld [vmem:[%s1 + $0x1a4] sm:$0xf]
  %v393 = vld [vmem:[%s1 + $0x1a8] sm:$0xf]
  %v394 = vld [vmem:[%s1 + $0x1ac] sm:$0xf]
  %v395 = vld [vmem:[%s1 + $0x1b0] sm:$0xf]
  %v396 = vld [vmem:[%s1 + $0x1b4] sm:$0xf]
  %v397 = vld [vmem:[%s1 + $0x1b8] sm:$0xf]
  %v398 = vld [vmem:[%s1 + $0x1bc] sm:$0xf]
  %v415 = vunpack.c.l.b16 %v383
  %v416 = vunpack.c.l.b16 %v384
  %v417 = vunpack.c.l.b16 %v385
  %v418 = vunpack.c.l.b16 %v386
  %v419 = vunpack.c.l.b16 %v387
  %v420 = vunpack.c.l.b16 %v388
  %v421 = vunpack.c.l.b16 %v389
  %v422 = vunpack.c.l.b16 %v390
  %v423 = vunpack.c.l.b16 %v391
  %v424 = vunpack.c.l.b16 %v392
  %v425 = vunpack.c.l.b16 %v393
  %v426 = vunpack.c.l.b16 %v394
  %v427 = vunpack.c.l.b16 %v395
  %v428 = vunpack.c.l.b16 %v396
  %v429 = vunpack.c.l.b16 %v397
  %v430 = vunpack.c.l.b16 %v398
  %v431 = vpack.c.b16 %v416, %v415
  %v432 = vpack.c.b16 %v418, %v417
  %v433 = vpack.c.b16 %v420, %v419
  %v434 = vpack.c.b16 %v422, %v421
  %v435 = vpack.c.b16 %v424, %v423
  %v436 = vpack.c.b16 %v426, %v425
  %v437 = vpack.c.b16 %v428, %v427
  %v438 = vpack.c.b16 %v430, %v429
  %447 = vmatprep.subr.bf16.mxu0 0
  %448 = vmatpush1.bf16.msra.mxu0 %v431
  %449 = vmatprep.subr.bf16.mxu0 0
  %450 = vmatpush1.bf16.msra.mxu0 %v432
  %451 = vmatprep.subr.bf16.mxu0 0
  %452 = vmatpush1.bf16.msra.mxu0 %v433
  %453 = vmatprep.subr.bf16.mxu0 0
  %454 = vmatpush1.bf16.msra.mxu0 %v434
  %455 = vmatprep.subr.bf16.mxu0 0
  %456 = vmatpush1.bf16.msra.mxu0 %v435
  %457 = vmatprep.subr.bf16.mxu0 0
  %458 = vmatpush1.bf16.msra.mxu0 %v436
  %459 = vmatprep.subr.bf16.mxu0 0
  %460 = vmatpush1.bf16.msra.mxu0 %v437
  %461 = vmatprep.subr.bf16.mxu0 0
  %462 = vmatpush1.bf16.msra.mxu0 %v438
  %463 = vmatprep.subr.bf16.mxu0 0
  %464 = vmatpush1.bf16.msra.mxu0 0
  %465 = vmatprep.subr.bf16.mxu0 0
  %466 = vmatpush1.bf16.msra.mxu0 0
  %467 = vmatprep.subr.bf16.mxu0 0
  %468 = vmatpush1.bf16.msra.mxu0 0
  %469 = vmatprep.subr.bf16.mxu0 0
  %470 = vmatpush1.bf16.msra.mxu0 0
  %471 = vmatprep.subr.bf16.mxu0 0
  %472 = vmatpush1.bf16.msra.mxu0 0
  %473 = vmatprep.subr.bf16.mxu0 0
  %474 = vmatpush1.bf16.msra.mxu0 0
  %475 = vmatprep.subr.bf16.mxu0 0
  %476 = vmatpush1.bf16.msra.mxu0 0
  %477 = vmatprep.subr.bf16.mxu0 0
  %478 = vmatpush1.bf16.msra.mxu0 0
  %479 = vmatprep.mubr.bf16.mxu0 0
  %480 = vmatmul.mubr.bf16.gmra.mrb[0].mxu0 %v53
  %v481 = vpop.f32.mrb[0].mxu0
  %v482 = vadd.f32 0.0, %v481
  %v483 = vpop.f32.mrb[0].mxu0
  %v484 = vpop.f32.mrb[0].mxu0
  %v485 = vadd.f32 0.0, %v484
  %v486 = vpop.f32.mrb[0].mxu0
  %487 = vmatprep.mubr.bf16.mxu0 0
  %488 = vmatmul.mubr.bf16.gmra.mrb[0].mxu0 %v54
  %v489 = vpop.f32.mrb[0].mxu0
  %v490 = vadd.f32 0.0, %v489
  %v491 = vpop.f32.mrb[0].mxu0
  %v492 = vpop.f32.mrb[0].mxu0
  %v493 = vadd.f32 0.0, %v492
  %v494 = vpop.f32.mrb[0].mxu0
  %495 = vmatprep.mubr.bf16.mxu0 0
  %496 = vmatmul.mubr.bf16.gmra.mrb[0].mxu0 %v55
  %v497 = vpop.f32.mrb[0].mxu0
  %v498 = vadd.f32 0.0, %v497
  %v499 = vpop.f32.mrb[0].mxu0
  %v500 = vpop.f32.mrb[0].mxu0
  %v501 = vadd.f32 0.0, %v500
  %v502 = vpop.f32.mrb[0].mxu0
  %503 = vmatprep.mubr.bf16.mxu0 0
  %504 = vmatmul.mubr.bf16.gmra.mrb[0].mxu0 %v56
  %v505 = vpop.f32.mrb[0].mxu0
  %v506 = vadd.f32 0.0, %v505
  %v507 = vpop.f32.mrb[0].mxu0
  %v508 = vpop.f32.mrb[0].mxu0
  %v509 = vadd.f32 0.0, %v508
  %v510 = vpop.f32.mrb[0].mxu0
  %511 = vmatprep.mubr.bf16.mxu0 0
  %512 = vmatmul.mubr.bf16.gmra.mrb[0].mxu0 %v57
  %v513 = vpop.f32.mrb[0].mxu0
  %v514 = vadd.f32 0.0, %v513
  %v515 = vpop.f32.mrb[0].mxu0
  %v516 = vpop.f32.mrb[0].mxu0
  %v517 = vadd.f32 0.0, %v516
  %v518 = vpop.f32.mrb[0].mxu0
  %519 = vmatprep.mubr.bf16.mxu0 0
  %520 = vmatmul.mubr.bf16.gmra.mrb[0].mxu0 %v58
  %v521 = vpop.f32.mrb[0].mxu0
  %v522 = vadd.f32 0.0, %v521
  %v523 = vpop.f32.mrb[0].mxu0
  %v524 = vpop.f32.mrb[0].mxu0
  %v525 = vadd.f32 0.0, %v524
  %v526 = vpop.f32.mrb[0].mxu0
  %527 = vmatprep.mubr.bf16.mxu0 0
  %528 = vmatmul.mubr.bf16.gmra.mrb[0].mxu0 %v59
  %v529 = vpop.f32.mrb[0].mxu0
  %v530 = vadd.f32 0.0, %v529
  %v531 = vpop.f32.mrb[0].mxu0
  %v532 = vpop.f32.mrb[0].mxu0
  %v533 = vadd.f32 0.0, %v532
  %v534 = vpop.f32.mrb[0].mxu0
  %535 = vmatprep.mubr.bf16.mxu0 0
  %536 = vmatmul.mubr.bf16.gmra.mrb[0].mxu0 %v60
  %v537 = vpop.f32.mrb[0].mxu0
  %v538 = vadd.f32 0.0, %v537
  %v539 = vpop.f32.mrb[0].mxu0
  %v540 = vpop.f32.mrb[0].mxu0
  %v541 = vadd.f32 0.0, %v540
  %v542 = vpop.f32.mrb[0].mxu0
  %543 = vdwg.mxu0
  %v544 = vadd.f32 %v321, %v482
  %v545 = vadd.f32 %v324, %v485
  %v546 = vadd.f32 %v329, %v490
  %v547 = vadd.f32 %v332, %v493
  %v548 = vadd.f32 %v337, %v498
  %v549 = vadd.f32 %v340, %v501
  %v550 = vadd.f32 %v345, %v506
  %v551 = vadd.f32 %v348, %v509
  %v552 = vadd.f32 %v353, %v514
  %v553 = vadd.f32 %v356, %v517
  %v554 = vadd.f32 %v361, %v522
  %v555 = vadd.f32 %v364, %v525
  %v556 = vadd.f32 %v369, %v530
  %v557 = vadd.f32 %v372, %v533
  %v558 = vadd.f32 %v377, %v538
  %v559 = vadd.f32 %v380, %v541
  %v560 = vld [vmem:[%s0 + $0x1] sm:$0xff]
  %v561 = vld [vmem:[%s0 + $0x9] sm:$0xff]
  %v562 = vld [vmem:[%s0 + $0x19] sm:$0xff]
  %v563 = vld [vmem:[%s0 + $0x21] sm:$0xff]
  %v564 = vld [vmem:[%s0 + $0x31] sm:$0xff]
  %v565 = vld [vmem:[%s0 + $0x39] sm:$0xff]
  %v566 = vld [vmem:[%s0 + $0x49] sm:$0xff]
  %v567 = vld [vmem:[%s0 + $0x51] sm:$0xff]
  %v568 = vld [vmem:[%s0 + $0x61] sm:$0xff]
  %v569 = vld [vmem:[%s0 + $0x69] sm:$0xff]
  %v570 = vld [vmem:[%s0 + $0x79] sm:$0xff]
  %v571 = vld [vmem:[%s0 + $0x81] sm:$0xff]
  %v572 = vld [vmem:[%s0 + $0x91] sm:$0xff]
  %v573 = vld [vmem:[%s0 + $0x99] sm:$0xff]
  %v574 = vld [vmem:[%s0 + $0xa9] sm:$0xff]
  %v575 = vld [vmem:[%s0 + $0xb1] sm:$0xff]
  %v576 = vld [vmem:[%s0 + $0xc1] sm:$0xff]
  %v577 = vld [vmem:[%s0 + $0xc9] sm:$0xff]
  %v578 = vld [vmem:[%s0 + $0xd9] sm:$0xff]
  %v579 = vld [vmem:[%s0 + $0xe1] sm:$0xff]
  %v580 = vpack.c.bf16 %v561, %v560
  %v581 = vpack.c.bf16 %v563, %v562
  %v582 = vpack.c.bf16 %v565, %v564
  %v583 = vpack.c.bf16 %v567, %v566
  %v584 = vpack.c.bf16 %v569, %v568
  %v585 = vpack.c.bf16 %v571, %v570
  %v586 = vpack.c.bf16 %v573, %v572
  %v587 = vpack.c.bf16 %v575, %v574
  %v588 = vpack.c.bf16 %v577, %v576
  %v589 = vpack.c.bf16 %v579, %v578
  %v590 = vld [vmem:[%s1 + $0x40] sm:$0xf]
  %v591 = vld [vmem:[%s1 + $0x44] sm:$0xf]
  %v592 = vld [vmem:[%s1 + $0x48] sm:$0xf]
  %v593 = vld [vmem:[%s1 + $0x4c] sm:$0xf]
  %v594 = vld [vmem:[%s1 + $0x50] sm:$0xf]
  %v595 = vld [vmem:[%s1 + $0x54] sm:$0xf]
  %v596 = vld [vmem:[%s1 + $0x58] sm:$0xf]
  %v597 = vld [vmem:[%s1 + $0x5c] sm:$0xf]
  %v598 = vld [vmem:[%s1 + $0x60] sm:$0xf]
  %v599 = vld [vmem:[%s1 + $0x64] sm:$0xf]
  %v600 = vld [vmem:[%s1 + $0x68] sm:$0xf]
  %v601 = vld [vmem:[%s1 + $0x6c] sm:$0xf]
  %v602 = vld [vmem:[%s1 + $0x70] sm:$0xf]
  %v603 = vld [vmem:[%s1 + $0x74] sm:$0xf]
  %v604 = vld [vmem:[%s1 + $0x78] sm:$0xf]
  %v605 = vld [vmem:[%s1 + $0x7c] sm:$0xf]
  %v622 = vunpack.c.l.b16 %v590
  %v623 = vunpack.c.l.b16 %v591
  %v624 = vunpack.c.l.b16 %v592
  %v625 = vunpack.c.l.b16 %v593
  %v626 = vunpack.c.l.b16 %v594
  %v627 = vunpack.c.l.b16 %v595
  %v628 = vunpack.c.l.b16 %v596
  %v629 = vunpack.c.l.b16 %v597
  %v630 = vunpack.c.l.b16 %v598
  %v631 = vunpack.c.l.b16 %v599
  %v632 = vunpack.c.l.b16 %v600
  %v633 = vunpack.c.l.b16 %v601
  %v634 = vunpack.c.l.b16 %v602
  %v635 = vunpack.c.l.b16 %v603
  %v636 = vunpack.c.l.b16 %v604
  %v637 = vunpack.c.l.b16 %v605
  %v638 = vpack.c.b16 %v623, %v622
  %v639 = vpack.c.b16 %v625, %v624
  %v640 = vpack.c.b16 %v627, %v626
  %v641 = vpack.c.b16 %v629, %v628
  %v642 = vpack.c.b16 %v631, %v630
  %v643 = vpack.c.b16 %v633, %v632
  %v644 = vpack.c.b16 %v635, %v634
  %v645 = vpack.c.b16 %v637, %v636
  %654 = vmatprep.subr.bf16.mxu0 0
  %655 = vmatpush1.bf16.msra.mxu0 %v638
  %656 = vmatprep.subr.bf16.mxu0 0
  %657 = vmatpush1.bf16.msra.mxu0 %v639
  %658 = vmatprep.subr.bf16.mxu0 0
  %659 = vmatpush1.bf16.msra.mxu0 %v640
  %660 = vmatprep.subr.bf16.mxu0 0
  %661 = vmatpush1.bf16.msra.mxu0 %v641
  %662 = vmatprep.subr.bf16.mxu0 0
  %663 = vmatpush1.bf16.msra.mxu0 %v642
  %664 = vmatprep.subr.bf16.mxu0 0
  %665 = vmatpush1.bf16.msra.mxu0 %v643
  %666 = vmatprep.subr.bf16.mxu0 0
  %667 = vmatpush1.bf16.msra.mxu0 %v644
  %668 = vmatprep.subr.bf16.mxu0 0
  %669 = vmatpush1.bf16.msra.mxu0 %v645
  %670 = vmatprep.subr.bf16.mxu0 0
  %671 = vmatpush1.bf16.msra.mxu0 0
  %672 = vmatprep.subr.bf16.mxu0 0
  %673 = vmatpush1.bf16.msra.mxu0 0
  %674 = vmatprep.subr.bf16.mxu0 0
  %675 = vmatpush1.bf16.msra.mxu0 0
  %676 = vmatprep.subr.bf16.mxu0 0
  %677 = vmatpush1.bf16.msra.mxu0 0
  %678 = vmatprep.subr.bf16.mxu0 0
  %679 = vmatpush1.bf16.msra.mxu0 0
  %680 = vmatprep.subr.bf16.mxu0 0
  %681 = vmatpush1.bf16.msra.mxu0 0
  %682 = vmatprep.subr.bf16.mxu0 0
  %683 = vmatpush1.bf16.msra.mxu0 0
  %684 = vmatprep.subr.bf16.mxu0 0
  %685 = vmatpush1.bf16.msra.mxu0 0
  %686 = vmatprep.mubr.bf16.mxu0 0
  %687 = vmatmul.mubr.bf16.gmra.mrb[0].mxu0 %v580
  %v688 = vpop.f32.mrb[0].mxu0
  %v689 = vadd.f32 0.0, %v688
  %v690 = vpop.f32.mrb[0].mxu0
  %v691 = vpop.f32.mrb[0].mxu0
  %v692 = vadd.f32 0.0, %v691
  %v693 = vpop.f32.mrb[0].mxu0
  %694 = vmatprep.mubr.bf16.mxu0 0
  %695 = vmatmul.mubr.bf16.gmra.mrb[0].mxu0 %v581
  %v696 = vpop.f32.mrb[0].mxu0
  %v697 = vadd.f32 0.0, %v696
  %v698 = vpop.f32.mrb[0].mxu0
  %v699 = vpop.f32.mrb[0].mxu0
  %v700 = vadd.f32 0.0, %v699
  %v701 = vpop.f32.mrb[0].mxu0
  %702 = vmatprep.mubr.bf16.mxu0 0
  %703 = vmatmul.mubr.bf16.gmra.mrb[0].mxu0 %v582
  %v704 = vpop.f32.mrb[0].mxu0
  %v705 = vadd.f32 0.0, %v704
  %v706 = vpop.f32.mrb[0].mxu0
  %v707 = vpop.f32.mrb[0].mxu0
  %v708 = vadd.f32 0.0, %v707
  %v709 = vpop.f32.mrb[0].mxu0
  %710 = vmatprep.mubr.bf16.mxu0 0
  %711 = vmatmul.mubr.bf16.gmra.mrb[0].mxu0 %v583
  %v712 = vpop.f32.mrb[0].mxu0
  %v713 = vadd.f32 0.0, %v712
  %v714 = vpop.f32.mrb[0].mxu0
  %v715 = vpop.f32.mrb[0].mxu0
  %v716 = vadd.f32 0.0, %v715
  %v717 = vpop.f32.mrb[0].mxu0
  %718 = vmatprep.mubr.bf16.mxu0 0
  %719 = vmatmul.mubr.bf16.gmra.mrb[0].mxu0 %v584
  %v720 = vpop.f32.mrb[0].mxu0
  %v721 = vadd.f32 0.0, %v720
  %v722 = vpop.f32.mrb[0].mxu0
  %v723 = vpop.f32.mrb[0].mxu0
  %v724 = vadd.f32 0.0, %v723
  %v725 = vpop.f32.mrb[0].mxu0
  %726 = vmatprep.mubr.bf16.mxu0 0
  %727 = vmatmul.mubr.bf16.gmra.mrb[0].mxu0 %v585
  %v728 = vpop.f32.mrb[0].mxu0
  %v729 = vadd.f32 0.0, %v728
  %v730 = vpop.f32.mrb[0].mxu0
  %v731 = vpop.f32.mrb[0].mxu0
  %v732 = vadd.f32 0.0, %v731
  %v733 = vpop.f32.mrb[0].mxu0
  %734 = vmatprep.mubr.bf16.mxu0 0
  %735 = vmatmul.mubr.bf16.gmra.mrb[0].mxu0 %v586
  %v736 = vpop.f32.mrb[0].mxu0
  %v737 = vadd.f32 0.0, %v736
  %v738 = vpop.f32.mrb[0].mxu0
  %v739 = vpop.f32.mrb[0].mxu0
  %v740 = vadd.f32 0.0, %v739
  %v741 = vpop.f32.mrb[0].mxu0
  %742 = vmatprep.mubr.bf16.mxu0 0
  %743 = vmatmul.mubr.bf16.gmra.mrb[0].mxu0 %v587
  %v744 = vpop.f32.mrb[0].mxu0
  %v745 = vadd.f32 0.0, %v744
  %v746 = vpop.f32.mrb[0].mxu0
  %v747 = vpop.f32.mrb[0].mxu0
  %v748 = vadd.f32 0.0, %v747
  %v749 = vpop.f32.mrb[0].mxu0
  %750 = vdwg.mxu0
  %v751 = vadd.f32 %v544, %v689
  %v752 = vadd.f32 %v545, %v692
  %v753 = vadd.f32 %v546, %v697
  %v754 = vadd.f32 %v547, %v700
  %v755 = vadd.f32 %v548, %v705
  %v756 = vadd.f32 %v549, %v708
  %v757 = vadd.f32 %v550, %v713
  %v758 = vadd.f32 %v551, %v716
  %v759 = vadd.f32 %v552, %v721
  %v760 = vadd.f32 %v553, %v724
  %v761 = vadd.f32 %v554, %v729
  %v762 = vadd.f32 %v555, %v732
  %v763 = vadd.f32 %v556, %v737
  %v764 = vadd.f32 %v557, %v740
  %v765 = vadd.f32 %v558, %v745
  %v766 = vadd.f32 %v559, %v748
  %v767 = vld [vmem:[%s1 + $0x100] sm:$0xf]
  %v768 = vld [vmem:[%s1 + $0x104] sm:$0xf]
  %v769 = vld [vmem:[%s1 + $0x108] sm:$0xf]
  %v770 = vld [vmem:[%s1 + $0x10c] sm:$0xf]
  %v771 = vld [vmem:[%s1 + $0x110] sm:$0xf]
  %v772 = vld [vmem:[%s1 + $0x114] sm:$0xf]
  %v773 = vld [vmem:[%s1 + $0x118] sm:$0xf]
  %v774 = vld [vmem:[%s1 + $0x11c] sm:$0xf]
  %v775 = vld [vmem:[%s1 + $0x120] sm:$0xf]
  %v776 = vld [vmem:[%s1 + $0x124] sm:$0xf]
  %v777 = vld [vmem:[%s1 + $0x128] sm:$0xf]
  %v778 = vld [vmem:[%s1 + $0x12c] sm:$0xf]
  %v779 = vld [vmem:[%s1 + $0x130] sm:$0xf]
  %v780 = vld [vmem:[%s1 + $0x134] sm:$0xf]
  %v781 = vld [vmem:[%s1 + $0x138] sm:$0xf]
  %v782 = vld [vmem:[%s1 + $0x13c] sm:$0xf]
  %v799 = vunpack.c.l.b16 %v767
  %v800 = vunpack.c.l.b16 %v768
  %v801 = vunpack.c.l.b16 %v769
  %v802 = vunpack.c.l.b16 %v770
  %v803 = vunpack.c.l.b16 %v771
  %v804 = vunpack.c.l.b16 %v772
  %v805 = vunpack.c.l.b16 %v773
  %v806 = vunpack.c.l.b16 %v774
  %v807 = vunpack.c.l.b16 %v775
  %v808 = vunpack.c.l.b16 %v776
  %v809 = vunpack.c.l.b16 %v777
  %v810 = vunpack.c.l.b16 %v778
  %v811 = vunpack.c.l.b16 %v779
  %v812 = vunpack.c.l.b16 %v780
  %v813 = vunpack.c.l.b16 %v781
  %v814 = vunpack.c.l.b16 %v782
  %v815 = vpack.c.b16 %v800, %v799
  %v816 = vpack.c.b16 %v802, %v801
  %v817 = vpack.c.b16 %v804, %v803
  %v818 = vpack.c.b16 %v806, %v805
  %v819 = vpack.c.b16 %v808, %v807
  %v820 = vpack.c.b16 %v810, %v809
  %v821 = vpack.c.b16 %v812, %v811
  %v822 = vpack.c.b16 %v814, %v813
  %831 = vmatprep.subr.bf16.mxu0 0
  %832 = vmatpush1.bf16.msra.mxu0 %v815
  %833 = vmatprep.subr.bf16.mxu0 0
  %834 = vmatpush1.bf16.msra.mxu0 %v816
  %835 = vmatprep.subr.bf16.mxu0 0
  %836 = vmatpush1.bf16.msra.mxu0 %v817
  %837 = vmatprep.subr.bf16.mxu0 0
  %838 = vmatpush1.bf16.msra.mxu0 %v818
  %839 = vmatprep.subr.bf16.mxu0 0
  %840 = vmatpush1.bf16.msra.mxu0 %v819
  %841 = vmatprep.subr.bf16.mxu0 0
  %842 = vmatpush1.bf16.msra.mxu0 %v820
  %843 = vmatprep.subr.bf16.mxu0 0
  %844 = vmatpush1.bf16.msra.mxu0 %v821
  %845 = vmatprep.subr.bf16.mxu0 0
  %846 = vmatpush1.bf16.msra.mxu0 %v822
  %847 = vmatprep.subr.bf16.mxu0 0
  %848 = vmatpush1.bf16.msra.mxu0 0
  %849 = vmatprep.subr.bf16.mxu0 0
  %850 = vmatpush1.bf16.msra.mxu0 0
  %851 = vmatprep.subr.bf16.mxu0 0
  %852 = vmatpush1.bf16.msra.mxu0 0
  %853 = vmatprep.subr.bf16.mxu0 0
  %854 = vmatpush1.bf16.msra.mxu0 0
  %855 = vmatprep.subr.bf16.mxu0 0
  %856 = vmatpush1.bf16.msra.mxu0 0
  %857 = vmatprep.subr.bf16.mxu0 0
  %858 = vmatpush1.bf16.msra.mxu0 0
  %859 = vmatprep.subr.bf16.mxu0 0
  %860 = vmatpush1.bf16.msra.mxu0 0
  %861 = vmatprep.subr.bf16.mxu0 0
  %862 = vmatpush1.bf16.msra.mxu0 0
  %863 = vmatprep.mubr.bf16.mxu0 0
  %864 = vmatmul.mubr.bf16.gmra.mrb[0].mxu0 %v581
  %v865 = vpop.f32.mrb[0].mxu0
  %v866 = vadd.f32 0.0, %v865
  %v867 = vpop.f32.mrb[0].mxu0
  %v868 = vpop.f32.mrb[0].mxu0
  %v869 = vadd.f32 0.0, %v868
  %v870 = vpop.f32.mrb[0].mxu0
  %871 = vmatprep.mubr.bf16.mxu0 0
  %872 = vmatmul.mubr.bf16.gmra.mrb[0].mxu0 %v582
  %v873 = vpop.f32.mrb[0].mxu0
  %v874 = vadd.f32 0.0, %v873
  %v875 = vpop.f32.mrb[0].mxu0
  %v876 = vpop.f32.mrb[0].mxu0
  %v877 = vadd.f32 0.0, %v876
  %v878 = vpop.f32.mrb[0].mxu0
  %879 = vmatprep.mubr.bf16.mxu0 0
  %880 = vmatmul.mubr.bf16.gmra.mrb[0].mxu0 %v583
  %v881 = vpop.f32.mrb[0].mxu0
  %v882 = vadd.f32 0.0, %v881
  %v883 = vpop.f32.mrb[0].mxu0
  %v884 = vpop.f32.mrb[0].mxu0
  %v885 = vadd.f32 0.0, %v884
  %v886 = vpop.f32.mrb[0].mxu0
  %887 = vmatprep.mubr.bf16.mxu0 0
  %888 = vmatmul.mubr.bf16.gmra.mrb[0].mxu0 %v584
  %v889 = vpop.f32.mrb[0].mxu0
  %v890 = vadd.f32 0.0, %v889
  %v891 = vpop.f32.mrb[0].mxu0
  %v892 = vpop.f32.mrb[0].mxu0
  %v893 = vadd.f32 0.0, %v892
  %v894 = vpop.f32.mrb[0].mxu0
  %895 = vmatprep.mubr.bf16.mxu0 0
  %896 = vmatmul.mubr.bf16.gmra.mrb[0].mxu0 %v585
  %v897 = vpop.f32.mrb[0].mxu0
  %v898 = vadd.f32 0.0, %v897
  %v899 = vpop.f32.mrb[0].mxu0
  %v900 = vpop.f32.mrb[0].mxu0
  %v901 = vadd.f32 0.0, %v900
  %v902 = vpop.f32.mrb[0].mxu0
  %903 = vmatprep.mubr.bf16.mxu0 0
  %904 = vmatmul.mubr.bf16.gmra.mrb[0].mxu0 %v586
  %v905 = vpop.f32.mrb[0].mxu0
  %v906 = vadd.f32 0.0, %v905
  %v907 = vpop.f32.mrb[0].mxu0
  %v908 = vpop.f32.mrb[0].mxu0
  %v909 = vadd.f32 0.0, %v908
  %v910 = vpop.f32.mrb[0].mxu0
  %911 = vmatprep.mubr.bf16.mxu0 0
  %912 = vmatmul.mubr.bf16.gmra.mrb[0].mxu0 %v587
  %v913 = vpop.f32.mrb[0].mxu0
  %v914 = vadd.f32 0.0, %v913
  %v915 = vpop.f32.mrb[0].mxu0
  %v916 = vpop.f32.mrb[0].mxu0
  %v917 = vadd.f32 0.0, %v916
  %v918 = vpop.f32.mrb[0].mxu0
  %919 = vmatprep.mubr.bf16.mxu0 0
  %920 = vmatmul.mubr.bf16.gmra.mrb[0].mxu0 %v588
  %v921 = vpop.f32.mrb[0].mxu0
  %v922 = vadd.f32 0.0, %v921
  %v923 = vpop.f32.mrb[0].mxu0
  %v924 = vpop.f32.mrb[0].mxu0
  %v925 = vadd.f32 0.0, %v924
  %v926 = vpop.f32.mrb[0].mxu0
  %927 = vdwg.mxu0
  %v928 = vadd.f32 %v751, %v866
  %v929 = vadd.f32 %v752, %v869
  %v930 = vadd.f32 %v753, %v874
  %v931 = vadd.f32 %v754, %v877
  %v932 = vadd.f32 %v755, %v882
  %v933 = vadd.f32 %v756, %v885
  %v934 = vadd.f32 %v757, %v890
  %v935 = vadd.f32 %v758, %v893
  %v936 = vadd.f32 %v759, %v898
  %v937 = vadd.f32 %v760, %v901
  %v938 = vadd.f32 %v761, %v906
  %v939 = vadd.f32 %v762, %v909
  %v940 = vadd.f32 %v763, %v914
  %v941 = vadd.f32 %v764, %v917
  %v942 = vadd.f32 %v765, %v922
  %v943 = vadd.f32 %v766, %v925
  %v944 = vld [vmem:[%s1 + $0x1c0] sm:$0xf]
  %v945 = vld [vmem:[%s1 + $0x1c4] sm:$0xf]
  %v946 = vld [vmem:[%s1 + $0x1c8] sm:$0xf]
  %v947 = vld [vmem:[%s1 + $0x1cc] sm:$0xf]
  %v948 = vld [vmem:[%s1 + $0x1d0] sm:$0xf]
  %v949 = vld [vmem:[%s1 + $0x1d4] sm:$0xf]
  %v950 = vld [vmem:[%s1 + $0x1d8] sm:$0xf]
  %v951 = vld [vmem:[%s1 + $0x1dc] sm:$0xf]
  %v952 = vld [vmem:[%s1 + $0x1e0] sm:$0xf]
  %v953 = vld [vmem:[%s1 + $0x1e4] sm:$0xf]
  %v954 = vld [vmem:[%s1 + $0x1e8] sm:$0xf]
  %v955 = vld [vmem:[%s1 + $0x1ec] sm:$0xf]
  %v956 = vld [vmem:[%s1 + $0x1f0] sm:$0xf]
  %v957 = vld [vmem:[%s1 + $0x1f4] sm:$0xf]
  %v958 = vld [vmem:[%s1 + $0x1f8] sm:$0xf]
  %v959 = vld [vmem:[%s1 + $0x1fc] sm:$0xf]
  %v976 = vunpack.c.l.b16 %v944
  %v977 = vunpack.c.l.b16 %v945
  %v978 = vunpack.c.l.b16 %v946
  %v979 = vunpack.c.l.b16 %v947
  %v980 = vunpack.c.l.b16 %v948
  %v981 = vunpack.c.l.b16 %v949
  %v982 = vunpack.c.l.b16 %v950
  %v983 = vunpack.c.l.b16 %v951
  %v984 = vunpack.c.l.b16 %v952
  %v985 = vunpack.c.l.b16 %v953
  %v986 = vunpack.c.l.b16 %v954
  %v987 = vunpack.c.l.b16 %v955
  %v988 = vunpack.c.l.b16 %v956
  %v989 = vunpack.c.l.b16 %v957
  %v990 = vunpack.c.l.b16 %v958
  %v991 = vunpack.c.l.b16 %v959
  %v992 = vpack.c.b16 %v977, %v976
  %v993 = vpack.c.b16 %v979, %v978
  %v994 = vpack.c.b16 %v981, %v980
  %v995 = vpack.c.b16 %v983, %v982
  %v996 = vpack.c.b16 %v985, %v984
  %v997 = vpack.c.b16 %v987, %v986
  %v998 = vpack.c.b16 %v989, %v988
  %v999 = vpack.c.b16 %v991, %v990
  %1008 = vmatprep.subr.bf16.mxu0 0
  %1009 = vmatpush1.bf16.msra.mxu0 %v992
  %1010 = vmatprep.subr.bf16.mxu0 0
  %1011 = vmatpush1.bf16.msra.mxu0 %v993
  %1012 = vmatprep.subr.bf16.mxu0 0
  %1013 = vmatpush1.bf16.msra.mxu0 %v994
  %1014 = vmatprep.subr.bf16.mxu0 0
  %1015 = vmatpush1.bf16.msra.mxu0 %v995
  %1016 = vmatprep.subr.bf16.mxu0 0
  %1017 = vmatpush1.bf16.msra.mxu0 %v996
  %1018 = vmatprep.subr.bf16.mxu0 0
  %1019 = vmatpush1.bf16.msra.mxu0 %v997
  %1020 = vmatprep.subr.bf16.mxu0 0
  %1021 = vmatpush1.bf16.msra.mxu0 %v998
  %1022 = vmatprep.subr.bf16.mxu0 0
  %1023 = vmatpush1.bf16.msra.mxu0 %v999
  %1024 = vmatprep.subr.bf16.mxu0 0
  %1025 = vmatpush1.bf16.msra.mxu0 0
  %1026 = vmatprep.subr.bf16.mxu0 0
  %1027 = vmatpush1.bf16.msra.mxu0 0
  %1028 = vmatprep.subr.bf16.mxu0 0
  %1029 = vmatpush1.bf16.msra.mxu0 0
  %1030 = vmatprep.subr.bf16.mxu0 0
  %1031 = vmatpush1.bf16.msra.mxu0 0
  %1032 = vmatprep.subr.bf16.mxu0 0
  %1033 = vmatpush1.bf16.msra.mxu0 0
  %1034 = vmatprep.subr.bf16.mxu0 0
  %1035 = vmatpush1.bf16.msra.mxu0 0
  %1036 = vmatprep.subr.bf16.mxu0 0
  %1037 = vmatpush1.bf16.msra.mxu0 0
  %1038 = vmatprep.subr.bf16.mxu0 0
  %1039 = vmatpush1.bf16.msra.mxu0 0
  %1040 = vmatprep.mubr.bf16.mxu0 0
  %1041 = vmatmul.mubr.bf16.gmra.mrb[0].mxu0 %v582
  %v1042 = vpop.f32.mrb[0].mxu0
  %v1043 = vadd.f32 0.0, %v1042
  %v1044 = vpop.f32.mrb[0].mxu0
  %v1045 = vpop.f32.mrb[0].mxu0
  %v1046 = vadd.f32 0.0, %v1045
  %v1047 = vpop.f32.mrb[0].mxu0
  %1048 = vmatprep.mubr.bf16.mxu0 0
  %1049 = vmatmul.mubr.bf16.gmra.mrb[0].mxu0 %v583
  %v1050 = vpop.f32.mrb[0].mxu0
  %v1051 = vadd.f32 0.0, %v1050
  %v1052 = vpop.f32.mrb[0].mxu0
  %v1053 = vpop.f32.mrb[0].mxu0
  %v1054 = vadd.f32 0.0, %v1053
  %v1055 = vpop.f32.mrb[0].mxu0
  %1056 = vmatprep.mubr.bf16.mxu0 0
  %1057 = vmatmul.mubr.bf16.gmra.mrb[0].mxu0 %v584
  %v1058 = vpop.f32.mrb[0].mxu0
  %v1059 = vadd.f32 0.0, %v1058
  %v1060 = vpop.f32.mrb[0].mxu0
  %v1061 = vpop.f32.mrb[0].mxu0
  %v1062 = vadd.f32 0.0, %v1061
  %v1063 = vpop.f32.mrb[0].mxu0
  %1064 = vmatprep.mubr.bf16.mxu0 0
  %1065 = vmatmul.mubr.bf16.gmra.mrb[0].mxu0 %v585
  %v1066 = vpop.f32.mrb[0].mxu0
  %v1067 = vadd.f32 0.0, %v1066
  %v1068 = vpop.f32.mrb[0].mxu0
  %v1069 = vpop.f32.mrb[0].mxu0
  %v1070 = vadd.f32 0.0, %v1069
  %v1071 = vpop.f32.mrb[0].mxu0
  %1072 = vmatprep.mubr.bf16.mxu0 0
  %1073 = vmatmul.mubr.bf16.gmra.mrb[0].mxu0 %v586
  %v1074 = vpop.f32.mrb[0].mxu0
  %v1075 = vadd.f32 0.0, %v1074
  %v1076 = vpop.f32.mrb[0].mxu0
  %v1077 = vpop.f32.mrb[0].mxu0
  %v1078 = vadd.f32 0.0, %v1077
  %v1079 = vpop.f32.mrb[0].mxu0
  %1080 = vmatprep.mubr.bf16.mxu0 0
  %1081 = vmatmul.mubr.bf16.gmra.mrb[0].mxu0 %v587
  %v1082 = vpop.f32.mrb[0].mxu0
  %v1083 = vadd.f32 0.0, %v1082
  %v1084 = vpop.f32.mrb[0].mxu0
  %v1085 = vpop.f32.mrb[0].mxu0
  %v1086 = vadd.f32 0.0, %v1085
  %v1087 = vpop.f32.mrb[0].mxu0
  %1088 = vmatprep.mubr.bf16.mxu0 0
  %1089 = vmatmul.mubr.bf16.gmra.mrb[0].mxu0 %v588
  %v1090 = vpop.f32.mrb[0].mxu0
  %v1091 = vadd.f32 0.0, %v1090
  %v1092 = vpop.f32.mrb[0].mxu0
  %v1093 = vpop.f32.mrb[0].mxu0
  %v1094 = vadd.f32 0.0, %v1093
  %v1095 = vpop.f32.mrb[0].mxu0
  %1096 = vmatprep.mubr.bf16.mxu0 0
  %1097 = vmatmul.mubr.bf16.gmra.mrb[0].mxu0 %v589
  %v1098 = vpop.f32.mrb[0].mxu0
  %v1099 = vadd.f32 0.0, %v1098
  %v1100 = vpop.f32.mrb[0].mxu0
  %v1101 = vpop.f32.mrb[0].mxu0
  %v1102 = vadd.f32 0.0, %v1101
  %v1103 = vpop.f32.mrb[0].mxu0
  %1104 = vdwg.mxu0
  %v1105 = vadd.f32 %v928, %v1043
  %v1106 = vadd.f32 %v929, %v1046
  %v1107 = vadd.f32 %v930, %v1051
  %v1108 = vadd.f32 %v931, %v1054
  %v1109 = vadd.f32 %v932, %v1059
  %v1110 = vadd.f32 %v933, %v1062
  %v1111 = vadd.f32 %v934, %v1067
  %v1112 = vadd.f32 %v935, %v1070
  %v1113 = vadd.f32 %v936, %v1075
  %v1114 = vadd.f32 %v937, %v1078
  %v1115 = vadd.f32 %v938, %v1083
  %v1116 = vadd.f32 %v939, %v1086
  %v1117 = vadd.f32 %v940, %v1091
  %v1118 = vadd.f32 %v941, %v1094
  %v1119 = vadd.f32 %v942, %v1099
  %v1120 = vadd.f32 %v943, %v1102
  %v1121 = vld [vmem:[%s0 + $0x2] sm:$0xff]
  %v1122 = vld [vmem:[%s0 + $0xa] sm:$0xff]
  %v1123 = vld [vmem:[%s0 + $0x1a] sm:$0xff]
  %v1124 = vld [vmem:[%s0 + $0x22] sm:$0xff]
  %v1125 = vld [vmem:[%s0 + $0x32] sm:$0xff]
  %v1126 = vld [vmem:[%s0 + $0x3a] sm:$0xff]
  %v1127 = vld [vmem:[%s0 + $0x4a] sm:$0xff]
  %v1128 = vld [vmem:[%s0 + $0x52] sm:$0xff]
  %v1129 = vld [vmem:[%s0 + $0x62] sm:$0xff]
  %v1130 = vld [vmem:[%s0 + $0x6a] sm:$0xff]
  %v1131 = vld [vmem:[%s0 + $0x7a] sm:$0xff]
  %v1132 = vld [vmem:[%s0 + $0x82] sm:$0xff]
  %v1133 = vld [vmem:[%s0 + $0x92] sm:$0xff]
  %v1134 = vld [vmem:[%s0 + $0x9a] sm:$0xff]
  %v1135 = vld [vmem:[%s0 + $0xaa] sm:$0xff]
  %v1136 = vld [vmem:[%s0 + $0xb2] sm:$0xff]
  %v1137 = vld [vmem:[%s0 + $0xc2] sm:$0xff]
  %v1138 = vld [vmem:[%s0 + $0xca] sm:$0xff]
  %v1139 = vld [vmem:[%s0 + $0xda] sm:$0xff]
  %v1140 = vld [vmem:[%s0 + $0xe2] sm:$0xff]
  %v1141 = vpack.c.bf16 %v1122, %v1121
  %v1142 = vpack.c.bf16 %v1124, %v1123
  %v1143 = vpack.c.bf16 %v1126, %v1125
  %v1144 = vpack.c.bf16 %v1128, %v1127
  %v1145 = vpack.c.bf16 %v1130, %v1129
  %v1146 = vpack.c.bf16 %v1132, %v1131
  %v1147 = vpack.c.bf16 %v1134, %v1133
  %v1148 = vpack.c.bf16 %v1136, %v1135
  %v1149 = vpack.c.bf16 %v1138, %v1137
  %v1150 = vpack.c.bf16 %v1140, %v1139
  %v1151 = vld [vmem:[%s1 + $0x80] sm:$0xf]
  %v1152 = vld [vmem:[%s1 + $0x84] sm:$0xf]
  %v1153 = vld [vmem:[%s1 + $0x88] sm:$0xf]
  %v1154 = vld [vmem:[%s1 + $0x8c] sm:$0xf]
  %v1155 = vld [vmem:[%s1 + $0x90] sm:$0xf]
  %v1156 = vld [vmem:[%s1 + $0x94] sm:$0xf]
  %v1157 = vld [vmem:[%s1 + $0x98] sm:$0xf]
  %v1158 = vld [vmem:[%s1 + $0x9c] sm:$0xf]
  %v1159 = vld [vmem:[%s1 + $0xa0] sm:$0xf]
  %v1160 = vld [vmem:[%s1 + $0xa4] sm:$0xf]
  %v1161 = vld [vmem:[%s1 + $0xa8] sm:$0xf]
  %v1162 = vld [vmem:[%s1 + $0xac] sm:$0xf]
  %v1163 = vld [vmem:[%s1 + $0xb0] sm:$0xf]
  %v1164 = vld [vmem:[%s1 + $0xb4] sm:$0xf]
  %v1165 = vld [vmem:[%s1 + $0xb8] sm:$0xf]
  %v1166 = vld [vmem:[%s1 + $0xbc] sm:$0xf]
  %v1183 = vunpack.c.l.b16 %v1151
  %v1184 = vunpack.c.l.b16 %v1152
  %v1185 = vunpack.c.l.b16 %v1153
  %v1186 = vunpack.c.l.b16 %v1154
  %v1187 = vunpack.c.l.b16 %v1155
  %v1188 = vunpack.c.l.b16 %v1156
  %v1189 = vunpack.c.l.b16 %v1157
  %v1190 = vunpack.c.l.b16 %v1158
  %v1191 = vunpack.c.l.b16 %v1159
  %v1192 = vunpack.c.l.b16 %v1160
  %v1193 = vunpack.c.l.b16 %v1161
  %v1194 = vunpack.c.l.b16 %v1162
  %v1195 = vunpack.c.l.b16 %v1163
  %v1196 = vunpack.c.l.b16 %v1164
  %v1197 = vunpack.c.l.b16 %v1165
  %v1198 = vunpack.c.l.b16 %v1166
  %v1199 = vpack.c.b16 %v1184, %v1183
  %v1200 = vpack.c.b16 %v1186, %v1185
  %v1201 = vpack.c.b16 %v1188, %v1187
  %v1202 = vpack.c.b16 %v1190, %v1189
  %v1203 = vpack.c.b16 %v1192, %v1191
  %v1204 = vpack.c.b16 %v1194, %v1193
  %v1205 = vpack.c.b16 %v1196, %v1195
  %v1206 = vpack.c.b16 %v1198, %v1197
  %1215 = vmatprep.subr.bf16.mxu0 0
  %1216 = vmatpush1.bf16.msra.mxu0 %v1199
  %1217 = vmatprep.subr.bf16.mxu0 0
  %1218 = vmatpush1.bf16.msra.mxu0 %v1200
  %1219 = vmatprep.subr.bf16.mxu0 0
  %1220 = vmatpush1.bf16.msra.mxu0 %v1201
  %1221 = vmatprep.subr.bf16.mxu0 0
  %1222 = vmatpush1.bf16.msra.mxu0 %v1202
  %1223 = vmatprep.subr.bf16.mxu0 0
  %1224 = vmatpush1.bf16.msra.mxu0 %v1203
  %1225 = vmatprep.subr.bf16.mxu0 0
  %1226 = vmatpush1.bf16.msra.mxu0 %v1204
  %1227 = vmatprep.subr.bf16.mxu0 0
  %1228 = vmatpush1.bf16.msra.mxu0 %v1205
  %1229 = vmatprep.subr.bf16.mxu0 0
  %1230 = vmatpush1.bf16.msra.mxu0 %v1206
  %1231 = vmatprep.subr.bf16.mxu0 0
  %1232 = vmatpush1.bf16.msra.mxu0 0
  %1233 = vmatprep.subr.bf16.mxu0 0
  %1234 = vmatpush1.bf16.msra.mxu0 0
  %1235 = vmatprep.subr.bf16.mxu0 0
  %1236 = vmatpush1.bf16.msra.mxu0 0
  %1237 = vmatprep.subr.bf16.mxu0 0
  %1238 = vmatpush1.bf16.msra.mxu0 0
  %1239 = vmatprep.subr.bf16.mxu0 0
  %1240 = vmatpush1.bf16.msra.mxu0 0
  %1241 = vmatprep.subr.bf16.mxu0 0
  %1242 = vmatpush1.bf16.msra.mxu0 0
  %1243 = vmatprep.subr.bf16.mxu0 0
  %1244 = vmatpush1.bf16.msra.mxu0 0
  %1245 = vmatprep.subr.bf16.mxu0 0
  %1246 = vmatpush1.bf16.msra.mxu0 0
  %1247 = vmatprep.mubr.bf16.mxu0 0
  %1248 = vmatmul.mubr.bf16.gmra.mrb[0].mxu0 %v1141
  %v1249 = vpop.f32.mrb[0].mxu0
  %v1250 = vadd.f32 0.0, %v1249
  %v1251 = vpop.f32.mrb[0].mxu0
  %v1252 = vpop.f32.mrb[0].mxu0
  %v1253 = vadd.f32 0.0, %v1252
  %v1254 = vpop.f32.mrb[0].mxu0
  %1255 = vmatprep.mubr.bf16.mxu0 0
  %1256 = vmatmul.mubr.bf16.gmra.mrb[0].mxu0 %v1142
  %v1257 = vpop.f32.mrb[0].mxu0
  %v1258 = vadd.f32 0.0, %v1257
  %v1259 = vpop.f32.mrb[0].mxu0
  %v1260 = vpop.f32.mrb[0].mxu0
  %v1261 = vadd.f32 0.0, %v1260
  %v1262 = vpop.f32.mrb[0].mxu0
  %1263 = vmatprep.mubr.bf16.mxu0 0
  %1264 = vmatmul.mubr.bf16.gmra.mrb[0].mxu0 %v1143
  %v1265 = vpop.f32.mrb[0].mxu0
  %v1266 = vadd.f32 0.0, %v1265
  %v1267 = vpop.f32.mrb[0].mxu0
  %v1268 = vpop.f32.mrb[0].mxu0
  %v1269 = vadd.f32 0.0, %v1268
  %v1270 = vpop.f32.mrb[0].mxu0
  %1271 = vmatprep.mubr.bf16.mxu0 0
  %1272 = vmatmul.mubr.bf16.gmra.mrb[0].mxu0 %v1144
  %v1273 = vpop.f32.mrb[0].mxu0
  %v1274 = vadd.f32 0.0, %v1273
  %v1275 = vpop.f32.mrb[0].mxu0
  %v1276 = vpop.f32.mrb[0].mxu0
  %v1277 = vadd.f32 0.0, %v1276
  %v1278 = vpop.f32.mrb[0].mxu0
  %1279 = vmatprep.mubr.bf16.mxu0 0
  %1280 = vmatmul.mubr.bf16.gmra.mrb[0].mxu0 %v1145
  %v1281 = vpop.f32.mrb[0].mxu0
  %v1282 = vadd.f32 0.0, %v1281
  %v1283 = vpop.f32.mrb[0].mxu0
  %v1284 = vpop.f32.mrb[0].mxu0
  %v1285 = vadd.f32 0.0, %v1284
  %v1286 = vpop.f32.mrb[0].mxu0
  %1287 = vmatprep.mubr.bf16.mxu0 0
  %1288 = vmatmul.mubr.bf16.gmra.mrb[0].mxu0 %v1146
  %v1289 = vpop.f32.mrb[0].mxu0
  %v1290 = vadd.f32 0.0, %v1289
  %v1291 = vpop.f32.mrb[0].mxu0
  %v1292 = vpop.f32.mrb[0].mxu0
  %v1293 = vadd.f32 0.0, %v1292
  %v1294 = vpop.f32.mrb[0].mxu0
  %1295 = vmatprep.mubr.bf16.mxu0 0
  %1296 = vmatmul.mubr.bf16.gmra.mrb[0].mxu0 %v1147
  %v1297 = vpop.f32.mrb[0].mxu0
  %v1298 = vadd.f32 0.0, %v1297
  %v1299 = vpop.f32.mrb[0].mxu0
  %v1300 = vpop.f32.mrb[0].mxu0
  %v1301 = vadd.f32 0.0, %v1300
  %v1302 = vpop.f32.mrb[0].mxu0
  %1303 = vmatprep.mubr.bf16.mxu0 0
  %1304 = vmatmul.mubr.bf16.gmra.mrb[0].mxu0 %v1148
  %v1305 = vpop.f32.mrb[0].mxu0
  %v1306 = vadd.f32 0.0, %v1305
  %v1307 = vpop.f32.mrb[0].mxu0
  %v1308 = vpop.f32.mrb[0].mxu0
  %v1309 = vadd.f32 0.0, %v1308
  %v1310 = vpop.f32.mrb[0].mxu0
  %1311 = vdwg.mxu0
  %v1312 = vadd.f32 %v1105, %v1250
  %v1313 = vadd.f32 %v1106, %v1253
  %v1314 = vadd.f32 %v1107, %v1258
  %v1315 = vadd.f32 %v1108, %v1261
  %v1316 = vadd.f32 %v1109, %v1266
  %v1317 = vadd.f32 %v1110, %v1269
  %v1318 = vadd.f32 %v1111, %v1274
  %v1319 = vadd.f32 %v1112, %v1277
  %v1320 = vadd.f32 %v1113, %v1282
  %v1321 = vadd.f32 %v1114, %v1285
  %v1322 = vadd.f32 %v1115, %v1290
  %v1323 = vadd.f32 %v1116, %v1293
  %v1324 = vadd.f32 %v1117, %v1298
  %v1325 = vadd.f32 %v1118, %v1301
  %v1326 = vadd.f32 %v1119, %v1306
  %v1327 = vadd.f32 %v1120, %v1309
  %v1328 = vld [vmem:[%s1 + $0x140] sm:$0xf]
  %v1329 = vld [vmem:[%s1 + $0x144] sm:$0xf]
  %v1330 = vld [vmem:[%s1 + $0x148] sm:$0xf]
  %v1331 = vld [vmem:[%s1 + $0x14c] sm:$0xf]
  %v1332 = vld [vmem:[%s1 + $0x150] sm:$0xf]
  %v1333 = vld [vmem:[%s1 + $0x154] sm:$0xf]
  %v1334 = vld [vmem:[%s1 + $0x158] sm:$0xf]
  %v1335 = vld [vmem:[%s1 + $0x15c] sm:$0xf]
  %v1336 = vld [vmem:[%s1 + $0x160] sm:$0xf]
  %v1337 = vld [vmem:[%s1 + $0x164] sm:$0xf]
  %v1338 = vld [vmem:[%s1 + $0x168] sm:$0xf]
  %v1339 = vld [vmem:[%s1 + $0x16c] sm:$0xf]
  %v1340 = vld [vmem:[%s1 + $0x170] sm:$0xf]
  %v1341 = vld [vmem:[%s1 + $0x174] sm:$0xf]
  %v1342 = vld [vmem:[%s1 + $0x178] sm:$0xf]
  %v1343 = vld [vmem:[%s1 + $0x17c] sm:$0xf]
  %v1360 = vunpack.c.l.b16 %v1328
  %v1361 = vunpack.c.l.b16 %v1329
  %v1362 = vunpack.c.l.b16 %v1330
  %v1363 = vunpack.c.l.b16 %v1331
  %v1364 = vunpack.c.l.b16 %v1332
  %v1365 = vunpack.c.l.b16 %v1333
  %v1366 = vunpack.c.l.b16 %v1334
  %v1367 = vunpack.c.l.b16 %v1335
  %v1368 = vunpack.c.l.b16 %v1336
  %v1369 = vunpack.c.l.b16 %v1337
  %v1370 = vunpack.c.l.b16 %v1338
  %v1371 = vunpack.c.l.b16 %v1339
  %v1372 = vunpack.c.l.b16 %v1340
  %v1373 = vunpack.c.l.b16 %v1341
  %v1374 = vunpack.c.l.b16 %v1342
  %v1375 = vunpack.c.l.b16 %v1343
  %v1376 = vpack.c.b16 %v1361, %v1360
  %v1377 = vpack.c.b16 %v1363, %v1362
  %v1378 = vpack.c.b16 %v1365, %v1364
  %v1379 = vpack.c.b16 %v1367, %v1366
  %v1380 = vpack.c.b16 %v1369, %v1368
  %v1381 = vpack.c.b16 %v1371, %v1370
  %v1382 = vpack.c.b16 %v1373, %v1372
  %v1383 = vpack.c.b16 %v1375, %v1374
  %1392 = vmatprep.subr.bf16.mxu0 0
  %1393 = vmatpush1.bf16.msra.mxu0 %v1376
  %1394 = vmatprep.subr.bf16.mxu0 0
  %1395 = vmatpush1.bf16.msra.mxu0 %v1377
  %1396 = vmatprep.subr.bf16.mxu0 0
  %1397 = vmatpush1.bf16.msra.mxu0 %v1378
  %1398 = vmatprep.subr.bf16.mxu0 0
  %1399 = vmatpush1.bf16.msra.mxu0 %v1379
  %1400 = vmatprep.subr.bf16.mxu0 0
  %1401 = vmatpush1.bf16.msra.mxu0 %v1380
  %1402 = vmatprep.subr.bf16.mxu0 0
  %1403 = vmatpush1.bf16.msra.mxu0 %v1381
  %1404 = vmatprep.subr.bf16.mxu0 0
  %1405 = vmatpush1.bf16.msra.mxu0 %v1382
  %1406 = vmatprep.subr.bf16.mxu0 0
  %1407 = vmatpush1.bf16.msra.mxu0 %v1383
  %1408 = vmatprep.subr.bf16.mxu0 0
  %1409 = vmatpush1.bf16.msra.mxu0 0
  %1410 = vmatprep.subr.bf16.mxu0 0
  %1411 = vmatpush1.bf16.msra.mxu0 0
  %1412 = vmatprep.subr.bf16.mxu0 0
  %1413 = vmatpush1.bf16.msra.mxu0 0
  %1414 = vmatprep.subr.bf16.mxu0 0
  %1415 = vmatpush1.bf16.msra.mxu0 0
  %1416 = vmatprep.subr.bf16.mxu0 0
  %1417 = vmatpush1.bf16.msra.mxu0 0
  %1418 = vmatprep.subr.bf16.mxu0 0
  %1419 = vmatpush1.bf16.msra.mxu0 0
  %1420 = vmatprep.subr.bf16.mxu0 0
  %1421 = vmatpush1.bf16.msra.mxu0 0
  %1422 = vmatprep.subr.bf16.mxu0 0
  %1423 = vmatpush1.bf16.msra.mxu0 0
  %1424 = vmatprep.mubr.bf16.mxu0 0
  %1425 = vmatmul.mubr.bf16.gmra.mrb[0].mxu0 %v1142
  %v1426 = vpop.f32.mrb[0].mxu0
  %v1427 = vadd.f32 0.0, %v1426
  %v1428 = vpop.f32.mrb[0].mxu0
  %v1429 = vpop.f32.mrb[0].mxu0
  %v1430 = vadd.f32 0.0, %v1429
  %v1431 = vpop.f32.mrb[0].mxu0
  %1432 = vmatprep.mubr.bf16.mxu0 0
  %1433 = vmatmul.mubr.bf16.gmra.mrb[0].mxu0 %v1143
  %v1434 = vpop.f32.mrb[0].mxu0
  %v1435 = vadd.f32 0.0, %v1434
  %v1436 = vpop.f32.mrb[0].mxu0
  %v1437 = vpop.f32.mrb[0].mxu0
  %v1438 = vadd.f32 0.0, %v1437
  %v1439 = vpop.f32.mrb[0].mxu0
  %1440 = vmatprep.mubr.bf16.mxu0 0
  %1441 = vmatmul.mubr.bf16.gmra.mrb[0].mxu0 %v1144
  %v1442 = vpop.f32.mrb[0].mxu0
  %v1443 = vadd.f32 0.0, %v1442
  %v1444 = vpop.f32.mrb[0].mxu0
  %v1445 = vpop.f32.mrb[0].mxu0
  %v1446 = vadd.f32 0.0, %v1445
  %v1447 = vpop.f32.mrb[0].mxu0
  %1448 = vmatprep.mubr.bf16.mxu0 0
  %1449 = vmatmul.mubr.bf16.gmra.mrb[0].mxu0 %v1145
  %v1450 = vpop.f32.mrb[0].mxu0
  %v1451 = vadd.f32 0.0, %v1450
  %v1452 = vpop.f32.mrb[0].mxu0
  %v1453 = vpop.f32.mrb[0].mxu0
  %v1454 = vadd.f32 0.0, %v1453
  %v1455 = vpop.f32.mrb[0].mxu0
  %1456 = vmatprep.mubr.bf16.mxu0 0
  %1457 = vmatmul.mubr.bf16.gmra.mrb[0].mxu0 %v1146
  %v1458 = vpop.f32.mrb[0].mxu0
  %v1459 = vadd.f32 0.0, %v1458
  %v1460 = vpop.f32.mrb[0].mxu0
  %v1461 = vpop.f32.mrb[0].mxu0
  %v1462 = vadd.f32 0.0, %v1461
  %v1463 = vpop.f32.mrb[0].mxu0
  %1464 = vmatprep.mubr.bf16.mxu0 0
  %1465 = vmatmul.mubr.bf16.gmra.mrb[0].mxu0 %v1147
  %v1466 = vpop.f32.mrb[0].mxu0
  %v1467 = vadd.f32 0.0, %v1466
  %v1468 = vpop.f32.mrb[0].mxu0
  %v1469 = vpop.f32.mrb[0].mxu0
  %v1470 = vadd.f32 0.0, %v1469
  %v1471 = vpop.f32.mrb[0].mxu0
  %1472 = vmatprep.mubr.bf16.mxu0 0
  %1473 = vmatmul.mubr.bf16.gmra.mrb[0].mxu0 %v1148
  %v1474 = vpop.f32.mrb[0].mxu0
  %v1475 = vadd.f32 0.0, %v1474
  %v1476 = vpop.f32.mrb[0].mxu0
  %v1477 = vpop.f32.mrb[0].mxu0
  %v1478 = vadd.f32 0.0, %v1477
  %v1479 = vpop.f32.mrb[0].mxu0
  %1480 = vmatprep.mubr.bf16.mxu0 0
  %1481 = vmatmul.mubr.bf16.gmra.mrb[0].mxu0 %v1149
  %v1482 = vpop.f32.mrb[0].mxu0
  %v1483 = vadd.f32 0.0, %v1482
  %v1484 = vpop.f32.mrb[0].mxu0
  %v1485 = vpop.f32.mrb[0].mxu0
  %v1486 = vadd.f32 0.0, %v1485
  %v1487 = vpop.f32.mrb[0].mxu0
  %1488 = vdwg.mxu0
  %v1489 = vadd.f32 %v1312, %v1427
  %v1490 = vadd.f32 %v1313, %v1430
  %v1491 = vadd.f32 %v1314, %v1435
  %v1492 = vadd.f32 %v1315, %v1438
  %v1493 = vadd.f32 %v1316, %v1443
  %v1494 = vadd.f32 %v1317, %v1446
  %v1495 = vadd.f32 %v1318, %v1451
  %v1496 = vadd.f32 %v1319, %v1454
  %v1497 = vadd.f32 %v1320, %v1459
  %v1498 = vadd.f32 %v1321, %v1462
  %v1499 = vadd.f32 %v1322, %v1467
  %v1500 = vadd.f32 %v1323, %v1470
  %v1501 = vadd.f32 %v1324, %v1475
  %v1502 = vadd.f32 %v1325, %v1478
  %v1503 = vadd.f32 %v1326, %v1483
  %v1504 = vadd.f32 %v1327, %v1486
  %v1505 = vld [vmem:[%s1 + $0x200] sm:$0xf]
  %v1506 = vld [vmem:[%s1 + $0x204] sm:$0xf]
  %v1507 = vld [vmem:[%s1 + $0x208] sm:$0xf]
  %v1508 = vld [vmem:[%s1 + $0x20c] sm:$0xf]
  %v1509 = vld [vmem:[%s1 + $0x210] sm:$0xf]
  %v1510 = vld [vmem:[%s1 + $0x214] sm:$0xf]
  %v1511 = vld [vmem:[%s1 + $0x218] sm:$0xf]
  %v1512 = vld [vmem:[%s1 + $0x21c] sm:$0xf]
  %v1513 = vld [vmem:[%s1 + $0x220] sm:$0xf]
  %v1514 = vld [vmem:[%s1 + $0x224] sm:$0xf]
  %v1515 = vld [vmem:[%s1 + $0x228] sm:$0xf]
  %v1516 = vld [vmem:[%s1 + $0x22c] sm:$0xf]
  %v1517 = vld [vmem:[%s1 + $0x230] sm:$0xf]
  %v1518 = vld [vmem:[%s1 + $0x234] sm:$0xf]
  %v1519 = vld [vmem:[%s1 + $0x238] sm:$0xf]
  %v1520 = vld [vmem:[%s1 + $0x23c] sm:$0xf]
  %v1537 = vunpack.c.l.b16 %v1505
  %v1538 = vunpack.c.l.b16 %v1506
  %v1539 = vunpack.c.l.b16 %v1507
  %v1540 = vunpack.c.l.b16 %v1508
  %v1541 = vunpack.c.l.b16 %v1509
  %v1542 = vunpack.c.l.b16 %v1510
  %v1543 = vunpack.c.l.b16 %v1511
  %v1544 = vunpack.c.l.b16 %v1512
  %v1545 = vunpack.c.l.b16 %v1513
  %v1546 = vunpack.c.l.b16 %v1514
  %v1547 = vunpack.c.l.b16 %v1515
  %v1548 = vunpack.c.l.b16 %v1516
  %v1549 = vunpack.c.l.b16 %v1517
  %v1550 = vunpack.c.l.b16 %v1518
  %v1551 = vunpack.c.l.b16 %v1519
  %v1552 = vunpack.c.l.b16 %v1520
  %v1553 = vpack.c.b16 %v1538, %v1537
  %v1554 = vpack.c.b16 %v1540, %v1539
  %v1555 = vpack.c.b16 %v1542, %v1541
  %v1556 = vpack.c.b16 %v1544, %v1543
  %v1557 = vpack.c.b16 %v1546, %v1545
  %v1558 = vpack.c.b16 %v1548, %v1547
  %v1559 = vpack.c.b16 %v1550, %v1549
  %v1560 = vpack.c.b16 %v1552, %v1551
  %1569 = vmatprep.subr.bf16.mxu0 0
  %1570 = vmatpush1.bf16.msra.mxu0 %v1553
  %1571 = vmatprep.subr.bf16.mxu0 0
  %1572 = vmatpush1.bf16.msra.mxu0 %v1554
  %1573 = vmatprep.subr.bf16.mxu0 0
  %1574 = vmatpush1.bf16.msra.mxu0 %v1555
  %1575 = vmatprep.subr.bf16.mxu0 0
  %1576 = vmatpush1.bf16.msra.mxu0 %v1556
  %1577 = vmatprep.subr.bf16.mxu0 0
  %1578 = vmatpush1.bf16.msra.mxu0 %v1557
  %1579 = vmatprep.subr.bf16.mxu0 0
  %1580 = vmatpush1.bf16.msra.mxu0 %v1558
  %1581 = vmatprep.subr.bf16.mxu0 0
  %1582 = vmatpush1.bf16.msra.mxu0 %v1559
  %1583 = vmatprep.subr.bf16.mxu0 0
  %1584 = vmatpush1.bf16.msra.mxu0 %v1560
  %1585 = vmatprep.subr.bf16.mxu0 0
  %1586 = vmatpush1.bf16.msra.mxu0 0
  %1587 = vmatprep.subr.bf16.mxu0 0
  %1588 = vmatpush1.bf16.msra.mxu0 0
  %1589 = vmatprep.subr.bf16.mxu0 0
  %1590 = vmatpush1.bf16.msra.mxu0 0
  %1591 = vmatprep.subr.bf16.mxu0 0
  %1592 = vmatpush1.bf16.msra.mxu0 0
  %1593 = vmatprep.subr.bf16.mxu0 0
  %1594 = vmatpush1.bf16.msra.mxu0 0
  %1595 = vmatprep.subr.bf16.mxu0 0
  %1596 = vmatpush1.bf16.msra.mxu0 0
  %1597 = vmatprep.subr.bf16.mxu0 0
  %1598 = vmatpush1.bf16.msra.mxu0 0
  %1599 = vmatprep.subr.bf16.mxu0 0
  %1600 = vmatpush1.bf16.msra.mxu0 0
  %1601 = vmatprep.mubr.bf16.mxu0 0
  %1602 = vmatmul.mubr.bf16.gmra.mrb[0].mxu0 %v1143
  %v1603 = vpop.f32.mrb[0].mxu0
  %v1604 = vadd.f32 0.0, %v1603
  %v1605 = vpop.f32.mrb[0].mxu0
  %v1606 = vpop.f32.mrb[0].mxu0
  %v1607 = vadd.f32 0.0, %v1606
  %v1608 = vpop.f32.mrb[0].mxu0
  %1609 = vmatprep.mubr.bf16.mxu0 0
  %1610 = vmatmul.mubr.bf16.gmra.mrb[0].mxu0 %v1144
  %v1611 = vpop.f32.mrb[0].mxu0
  %v1612 = vadd.f32 0.0, %v1611
  %v1613 = vpop.f32.mrb[0].mxu0
  %v1614 = vpop.f32.mrb[0].mxu0
  %v1615 = vadd.f32 0.0, %v1614
  %v1616 = vpop.f32.mrb[0].mxu0
  %1617 = vmatprep.mubr.bf16.mxu0 0
  %1618 = vmatmul.mubr.bf16.gmra.mrb[0].mxu0 %v1145
  %v1619 = vpop.f32.mrb[0].mxu0
  %v1620 = vadd.f32 0.0, %v1619
  %v1621 = vpop.f32.mrb[0].mxu0
  %v1622 = vpop.f32.mrb[0].mxu0
  %v1623 = vadd.f32 0.0, %v1622
  %v1624 = vpop.f32.mrb[0].mxu0
  %1625 = vmatprep.mubr.bf16.mxu0 0
  %1626 = vmatmul.mubr.bf16.gmra.mrb[0].mxu0 %v1146
  %v1627 = vpop.f32.mrb[0].mxu0
  %v1628 = vadd.f32 0.0, %v1627
  %v1629 = vpop.f32.mrb[0].mxu0
  %v1630 = vpop.f32.mrb[0].mxu0
  %v1631 = vadd.f32 0.0, %v1630
  %v1632 = vpop.f32.mrb[0].mxu0
  %1633 = vmatprep.mubr.bf16.mxu0 0
  %1634 = vmatmul.mubr.bf16.gmra.mrb[0].mxu0 %v1147
  %v1635 = vpop.f32.mrb[0].mxu0
  %v1636 = vadd.f32 0.0, %v1635
  %v1637 = vpop.f32.mrb[0].mxu0
  %v1638 = vpop.f32.mrb[0].mxu0
  %v1639 = vadd.f32 0.0, %v1638
  %v1640 = vpop.f32.mrb[0].mxu0
  %1641 = vmatprep.mubr.bf16.mxu0 0
  %1642 = vmatmul.mubr.bf16.gmra.mrb[0].mxu0 %v1148
  %v1643 = vpop.f32.mrb[0].mxu0
  %v1644 = vadd.f32 0.0, %v1643
  %v1645 = vpop.f32.mrb[0].mxu0
  %v1646 = vpop.f32.mrb[0].mxu0
  %v1647 = vadd.f32 0.0, %v1646
  %v1648 = vpop.f32.mrb[0].mxu0
  %1649 = vmatprep.mubr.bf16.mxu0 0
  %1650 = vmatmul.mubr.bf16.gmra.mrb[0].mxu0 %v1149
  %v1651 = vpop.f32.mrb[0].mxu0
  %v1652 = vadd.f32 0.0, %v1651
  %v1653 = vpop.f32.mrb[0].mxu0
  %v1654 = vpop.f32.mrb[0].mxu0
  %v1655 = vadd.f32 0.0, %v1654
  %v1656 = vpop.f32.mrb[0].mxu0
  %1657 = vmatprep.mubr.bf16.mxu0 0
  %1658 = vmatmul.mubr.bf16.gmra.mrb[0].mxu0 %v1150
  %v1659 = vpop.f32.mrb[0].mxu0
  %v1660 = vadd.f32 0.0, %v1659
  %v1661 = vpop.f32.mrb[0].mxu0
  %v1662 = vpop.f32.mrb[0].mxu0
  %v1663 = vadd.f32 0.0, %v1662
  %v1664 = vpop.f32.mrb[0].mxu0
  %1665 = vdwg.mxu0
  %v1666 = vadd.f32 %v1489, %v1604
  %v1667 = vadd.f32 %v1490, %v1607
  %v1668 = vadd.f32 %v1491, %v1612
  %v1669 = vadd.f32 %v1492, %v1615
  %v1670 = vadd.f32 %v1493, %v1620
  %v1671 = vadd.f32 %v1494, %v1623
  %v1672 = vadd.f32 %v1495, %v1628
  %v1673 = vadd.f32 %v1496, %v1631
  %v1674 = vadd.f32 %v1497, %v1636
  %v1675 = vadd.f32 %v1498, %v1639
  %v1676 = vadd.f32 %v1499, %v1644
  %v1677 = vadd.f32 %v1500, %v1647
  %v1678 = vadd.f32 %v1501, %v1652
  %v1679 = vadd.f32 %v1502, %v1655
  %v1680 = vadd.f32 %v1503, %v1660
  %v1681 = vadd.f32 %v1504, %v1663
  %vm1682 = vcmask 523264
  %v1683 = vsel %vm1682, %v1666, 0.0
  %v1684 = vsel %vm1682, %v1667, 0.0
  %v1685 = vadd.f32 %v1683, %v1684
  %v1686 = vsel %vm1682, %v1668, 0.0
  %v1687 = vadd.f32 %v1685, %v1686
  %v1688 = vsel %vm1682, %v1669, 0.0
  %v1689 = vadd.f32 %v1687, %v1688
  %v1690 = vsel %vm1682, %v1670, 0.0
  %v1691 = vadd.f32 %v1689, %v1690
  %v1692 = vsel %vm1682, %v1671, 0.0
  %v1693 = vadd.f32 %v1691, %v1692
  %v1694 = vsel %vm1682, %v1672, 0.0
  %v1695 = vadd.f32 %v1693, %v1694
  %v1696 = vsel %vm1682, %v1673, 0.0
  %v1697 = vadd.f32 %v1695, %v1696
  %v1698 = vsel %vm1682, %v1674, 0.0
  %v1699 = vadd.f32 %v1697, %v1698
  %v1700 = vsel %vm1682, %v1675, 0.0
  %v1701 = vadd.f32 %v1699, %v1700
  %v1702 = vsel %vm1682, %v1676, 0.0
  %v1703 = vadd.f32 %v1701, %v1702
  %v1704 = vsel %vm1682, %v1677, 0.0
  %v1705 = vadd.f32 %v1703, %v1704
  %v1706 = vsel %vm1682, %v1678, 0.0
  %v1707 = vadd.f32 %v1705, %v1706
  %v1708 = vsel %vm1682, %v1679, 0.0
  %v1709 = vadd.f32 %v1707, %v1708
  %v1710 = vsel %vm1682, %v1680, 0.0
  %v1711 = vadd.f32 %v1709, %v1710
  %v1712 = vsel %vm1682, %v1681, 0.0
  %v1713 = vadd.f32 %v1711, %v1712
  %v1714 = vrot.slane %v1713, 4
  %v1715 = vadd.f32 %v1713, %v1714
  %v1716 = vrot.slane %v1715, 2
  %v1717 = vadd.f32 %v1715, %v1716
  %v1718 = vrot.slane %v1717, 1
  %v1719 = vadd.f32 %v1717, %v1718
  %v1720 = vmul.f32 %v1719, 0.0078125
  %v1721 = vmul.f32 %v1666, %v1666
  %v1722 = vmul.f32 %v1667, %v1667
  %v1723 = vmul.f32 %v1668, %v1668
  %v1724 = vmul.f32 %v1669, %v1669
  %v1725 = vmul.f32 %v1670, %v1670
  %v1726 = vmul.f32 %v1671, %v1671
  %v1727 = vmul.f32 %v1672, %v1672
  %v1728 = vmul.f32 %v1673, %v1673
  %v1729 = vmul.f32 %v1674, %v1674
  %v1730 = vmul.f32 %v1675, %v1675
  %v1731 = vmul.f32 %v1676, %v1676
  %v1732 = vmul.f32 %v1677, %v1677
  %v1733 = vmul.f32 %v1678, %v1678
  %v1734 = vmul.f32 %v1679, %v1679
  %v1735 = vmul.f32 %v1680, %v1680
  %v1736 = vmul.f32 %v1681, %v1681
  %v1737 = vsel %vm1682, %v1721, 0.0
  %v1738 = vsel %vm1682, %v1722, 0.0
  %v1739 = vadd.f32 %v1737, %v1738
  %v1740 = vsel %vm1682, %v1723, 0.0
  %v1741 = vadd.f32 %v1739, %v1740
  %v1742 = vsel %vm1682, %v1724, 0.0
  %v1743 = vadd.f32 %v1741, %v1742
  %v1744 = vsel %vm1682, %v1725, 0.0
  %v1745 = vadd.f32 %v1743, %v1744
  %v1746 = vsel %vm1682, %v1726, 0.0
  %v1747 = vadd.f32 %v1745, %v1746
  %v1748 = vsel %vm1682, %v1727, 0.0
  %v1749 = vadd.f32 %v1747, %v1748
  %v1750 = vsel %vm1682, %v1728, 0.0
  %v1751 = vadd.f32 %v1749, %v1750
  %v1752 = vsel %vm1682, %v1729, 0.0
  %v1753 = vadd.f32 %v1751, %v1752
  %v1754 = vsel %vm1682, %v1730, 0.0
  %v1755 = vadd.f32 %v1753, %v1754
  %v1756 = vsel %vm1682, %v1731, 0.0
  %v1757 = vadd.f32 %v1755, %v1756
  %v1758 = vsel %vm1682, %v1732, 0.0
  %v1759 = vadd.f32 %v1757, %v1758
  %v1760 = vsel %vm1682, %v1733, 0.0
  %v1761 = vadd.f32 %v1759, %v1760
  %v1762 = vsel %vm1682, %v1734, 0.0
  %v1763 = vadd.f32 %v1761, %v1762
  %v1764 = vsel %vm1682, %v1735, 0.0
  %v1765 = vadd.f32 %v1763, %v1764
  %v1766 = vsel %vm1682, %v1736, 0.0
  %v1767 = vadd.f32 %v1765, %v1766
  %v1768 = vrot.slane %v1767, 4
  %v1769 = vadd.f32 %v1767, %v1768
  %v1770 = vrot.slane %v1769, 2
  %v1771 = vadd.f32 %v1769, %v1770
  %v1772 = vrot.slane %v1771, 1
  %v1773 = vadd.f32 %v1771, %v1772
  %v1774 = vmul.f32 %v1773, 0.0078125
  %v1775 = vmul.f32 %v1720, %v1720
  %v1776 = vsub.f32 %v1774, %v1775
  %v1777 = vsub.f32 %v1666, %v1720
  %v1778 = vsub.f32 %v1667, %v1720
  %v1779 = vsub.f32 %v1668, %v1720
  %v1780 = vsub.f32 %v1669, %v1720
  %v1781 = vsub.f32 %v1670, %v1720
  %v1782 = vsub.f32 %v1671, %v1720
  %v1783 = vsub.f32 %v1672, %v1720
  %v1784 = vsub.f32 %v1673, %v1720
  %v1785 = vsub.f32 %v1674, %v1720
  %v1786 = vsub.f32 %v1675, %v1720
  %v1787 = vsub.f32 %v1676, %v1720
  %v1788 = vsub.f32 %v1677, %v1720
  %v1789 = vsub.f32 %v1678, %v1720
  %v1790 = vsub.f32 %v1679, %v1720
  %v1791 = vsub.f32 %v1680, %v1720
  %v1792 = vsub.f32 %v1681, %v1720
  %v1793 = vadd.f32 %v1776, 1e-05
  %v1794 = vrsqrt.pop %v1793
  %v1795 = vmul.f32 %v1777, %v1794
  %v1796 = vmul.f32 %v1778, %v1794
  %v1797 = vmul.f32 %v1779, %v1794
  %v1798 = vmul.f32 %v1780, %v1794
  %v1799 = vmul.f32 %v1781, %v1794
  %v1800 = vmul.f32 %v1782, %v1794
  %v1801 = vmul.f32 %v1783, %v1794
  %v1802 = vmul.f32 %v1784, %v1794
  %v1803 = vmul.f32 %v1785, %v1794
  %v1804 = vmul.f32 %v1786, %v1794
  %v1805 = vmul.f32 %v1787, %v1794
  %v1806 = vmul.f32 %v1788, %v1794
  %v1807 = vmul.f32 %v1789, %v1794
  %v1808 = vmul.f32 %v1790, %v1794
  %v1809 = vmul.f32 %v1791, %v1794
  %v1810 = vmul.f32 %v1792, %v1794
  %v1811 = vmax.f32 %v1795, 0.0
  %v1812 = vmax.f32 %v1796, 0.0
  %v1813 = vmax.f32 %v1797, 0.0
  %v1814 = vmax.f32 %v1798, 0.0
  %v1815 = vmax.f32 %v1799, 0.0
  %v1816 = vmax.f32 %v1800, 0.0
  %v1817 = vmax.f32 %v1801, 0.0
  %v1818 = vmax.f32 %v1802, 0.0
  %v1819 = vmax.f32 %v1803, 0.0
  %v1820 = vmax.f32 %v1804, 0.0
  %v1821 = vmax.f32 %v1805, 0.0
  %v1822 = vmax.f32 %v1806, 0.0
  %v1823 = vmax.f32 %v1807, 0.0
  %v1824 = vmax.f32 %v1808, 0.0
  %v1825 = vmax.f32 %v1809, 0.0
  %v1826 = vmax.f32 %v1810, 0.0
  %v1827 = vpack.c.bf16 %v1812, %v1811
  %v1828 = vpack.c.bf16 %v1814, %v1813
  %v1829 = vpack.c.bf16 %v1816, %v1815
  %v1830 = vpack.c.bf16 %v1818, %v1817
  %v1831 = vpack.c.bf16 %v1820, %v1819
  %v1832 = vpack.c.bf16 %v1822, %v1821
  %v1833 = vpack.c.bf16 %v1824, %v1823
  %v1834 = vpack.c.bf16 %v1826, %v1825
  %1835 = vst.msk [vmem:[#allocation2] sm:$0xff] %vm1682, %v1827
  %1837 = vrot.lane.b32.xlu0 %v1828, 64
  %v1838 = vpop.permute.xlu0 %1837
  %vm1840 = vcmask 1048064
  %1841 = vst.msk [vmem:[#allocation2] sm:$0xff] %vm1840, %v1838
  %1842 = vst.msk [vmem:[#allocation2 + $0x8] sm:$0xff] %vm1682, %v1829
  %1844 = vrot.lane.b32.xlu0 %v1830, 64
  %v1845 = vpop.permute.xlu0 %1844
  %1847 = vst.msk [vmem:[#allocation2 + $0x8] sm:$0xff] %vm1840, %v1845
  %1848 = vst.msk [vmem:[#allocation2 + $0x10] sm:$0xff] %vm1682, %v1831
  %1850 = vrot.lane.b32.xlu0 %v1832, 64
  %v1851 = vpop.permute.xlu0 %1850
  %1853 = vst.msk [vmem:[#allocation2 + $0x10] sm:$0xff] %vm1840, %v1851
  %1854 = vst.msk [vmem:[#allocation2 + $0x18] sm:$0xff] %vm1682, %v1833
  %1856 = vrot.lane.b32.xlu0 %v1834, 64
  %v1857 = vpop.permute.xlu0 %1856
  %1859 = vst.msk [vmem:[#allocation2 + $0x18] sm:$0xff] %vm1840, %v1857
  %s1860 = scalar_lea.vmem %s0, 240
  %v1861 = vld [vmem:[%s1860] sm:$0xff]
  %v1862 = vld [vmem:[%s1860 + $0x8] sm:$0xff]
  %v1863 = vld [vmem:[%s1860 + $0x18] sm:$0xff]
  %v1864 = vld [vmem:[%s1860 + $0x20] sm:$0xff]
  %v1865 = vld [vmem:[%s1860 + $0x30] sm:$0xff]
  %v1866 = vld [vmem:[%s1860 + $0x38] sm:$0xff]
  %v1867 = vld [vmem:[%s1860 + $0x48] sm:$0xff]
  %v1868 = vld [vmem:[%s1860 + $0x50] sm:$0xff]
  %v1869 = vld [vmem:[%s1860 + $0x60] sm:$0xff]
  %v1870 = vld [vmem:[%s1860 + $0x68] sm:$0xff]
  %v1871 = vld [vmem:[%s1860 + $0x78] sm:$0xff]
  %v1872 = vld [vmem:[%s1860 + $0x80] sm:$0xff]
  %v1873 = vld [vmem:[%s1860 + $0x90] sm:$0xff]
  %v1874 = vld [vmem:[%s1860 + $0x98] sm:$0xff]
  %v1875 = vld [vmem:[%s1860 + $0xa8] sm:$0xff]
  %v1876 = vld [vmem:[%s1860 + $0xb0] sm:$0xff]
  %v1877 = vld [vmem:[%s1860 + $0xc0] sm:$0xff]
  %v1878 = vld [vmem:[%s1860 + $0xc8] sm:$0xff]
  %v1879 = vld [vmem:[%s1860 + $0xd8] sm:$0xff]
  %v1880 = vld [vmem:[%s1860 + $0xe0] sm:$0xff]
  %v1881 = vpack.c.bf16 %v1862, %v1861
  %v1882 = vpack.c.bf16 %v1864, %v1863
  %v1883 = vpack.c.bf16 %v1866, %v1865
  %v1884 = vpack.c.bf16 %v1868, %v1867
  %v1885 = vpack.c.bf16 %v1870, %v1869
  %v1886 = vpack.c.bf16 %v1872, %v1871
  %v1887 = vpack.c.bf16 %v1874, %v1873
  %v1888 = vpack.c.bf16 %v1876, %v1875
  %v1889 = vpack.c.bf16 %v1878, %v1877
  %v1890 = vpack.c.bf16 %v1880, %v1879
  %v1891 = vld [vmem:[%s1] sm:$0xf]
  %v1892 = vld [vmem:[%s1 + $0x4] sm:$0xf]
  %v1893 = vld [vmem:[%s1 + $0x8] sm:$0xf]
  %v1894 = vld [vmem:[%s1 + $0xc] sm:$0xf]
  %v1895 = vld [vmem:[%s1 + $0x10] sm:$0xf]
  %v1896 = vld [vmem:[%s1 + $0x14] sm:$0xf]
  %v1897 = vld [vmem:[%s1 + $0x18] sm:$0xf]
  %v1898 = vld [vmem:[%s1 + $0x1c] sm:$0xf]
  %v1899 = vld [vmem:[%s1 + $0x20] sm:$0xf]
  %v1900 = vld [vmem:[%s1 + $0x24] sm:$0xf]
  %v1901 = vld [vmem:[%s1 + $0x28] sm:$0xf]
  %v1902 = vld [vmem:[%s1 + $0x2c] sm:$0xf]
  %v1903 = vld [vmem:[%s1 + $0x30] sm:$0xf]
  %v1904 = vld [vmem:[%s1 + $0x34] sm:$0xf]
  %v1905 = vld [vmem:[%s1 + $0x38] sm:$0xf]
  %v1906 = vld [vmem:[%s1 + $0x3c] sm:$0xf]
  %v1907 = vld [vmem:[%s1 + $0xc0] sm:$0xf]
  %v1908 = vld [vmem:[%s1 + $0xc4] sm:$0xf]
  %v1909 = vld [vmem:[%s1 + $0xc8] sm:$0xf]
  %v1910 = vld [vmem:[%s1 + $0xcc] sm:$0xf]
  %v1911 = vld [vmem:[%s1 + $0xd0] sm:$0xf]
  %v1912 = vld [vmem:[%s1 + $0xd4] sm:$0xf]
  %v1913 = vld [vmem:[%s1 + $0xd8] sm:$0xf]
  %v1914 = vld [vmem:[%s1 + $0xdc] sm:$0xf]
  %v1915 = vld [vmem:[%s1 + $0xe0] sm:$0xf]
  %v1916 = vld [vmem:[%s1 + $0xe4] sm:$0xf]
  %v1917 = vld [vmem:[%s1 + $0xe8] sm:$0xf]
  %v1918 = vld [vmem:[%s1 + $0xec] sm:$0xf]
  %v1919 = vld [vmem:[%s1 + $0xf0] sm:$0xf]
  %v1920 = vld [vmem:[%s1 + $0xf4] sm:$0xf]
  %v1921 = vld [vmem:[%s1 + $0xf8] sm:$0xf]
  %v1922 = vld [vmem:[%s1 + $0xfc] sm:$0xf]
  %v1939 = vunpack.c.l.b16 %v1907
  %v1940 = vunpack.c.l.b16 %v1908
  %v1941 = vunpack.c.l.b16 %v1909
  %v1942 = vunpack.c.l.b16 %v1910
  %v1943 = vunpack.c.l.b16 %v1911
  %v1944 = vunpack.c.l.b16 %v1912
  %v1945 = vunpack.c.l.b16 %v1913
  %v1946 = vunpack.c.l.b16 %v1914
  %v1947 = vunpack.c.l.b16 %v1915
  %v1948 = vunpack.c.l.b16 %v1916
  %v1949 = vunpack.c.l.b16 %v1917
  %v1950 = vunpack.c.l.b16 %v1918
  %v1951 = vunpack.c.l.b16 %v1919
  %v1952 = vunpack.c.l.b16 %v1920
  %v1953 = vunpack.c.l.b16 %v1921
  %v1954 = vunpack.c.l.b16 %v1922
  %v1955 = vpack.c.b16 %v1940, %v1939
  %v1956 = vpack.c.b16 %v1942, %v1941
  %v1957 = vpack.c.b16 %v1944, %v1943
  %v1958 = vpack.c.b16 %v1946, %v1945
  %v1959 = vpack.c.b16 %v1948, %v1947
  %v1960 = vpack.c.b16 %v1950, %v1949
  %v1961 = vpack.c.b16 %v1952, %v1951
  %v1962 = vpack.c.b16 %v1954, %v1953
  %1971 = vmatprep.subr.bf16.mxu0 0
  %1972 = vmatpush1.bf16.msra.mxu0 %v1955
  %1973 = vmatprep.subr.bf16.mxu0 0
  %1974 = vmatpush1.bf16.msra.mxu0 %v1956
  %1975 = vmatprep.subr.bf16.mxu0 0
  %1976 = vmatpush1.bf16.msra.mxu0 %v1957
  %1977 = vmatprep.subr.bf16.mxu0 0
  %1978 = vmatpush1.bf16.msra.mxu0 %v1958
  %1979 = vmatprep.subr.bf16.mxu0 0
  %1980 = vmatpush1.bf16.msra.mxu0 %v1959
  %1981 = vmatprep.subr.bf16.mxu0 0
  %1982 = vmatpush1.bf16.msra.mxu0 %v1960
  %1983 = vmatprep.subr.bf16.mxu0 0
  %1984 = vmatpush1.bf16.msra.mxu0 %v1961
  %1985 = vmatprep.subr.bf16.mxu0 0
  %1986 = vmatpush1.bf16.msra.mxu0 %v1962
  %1987 = vmatprep.subr.bf16.mxu0 0
  %1988 = vmatpush1.bf16.msra.mxu0 0
  %1989 = vmatprep.subr.bf16.mxu0 0
  %1990 = vmatpush1.bf16.msra.mxu0 0
  %1991 = vmatprep.subr.bf16.mxu0 0
  %1992 = vmatpush1.bf16.msra.mxu0 0
  %1993 = vmatprep.subr.bf16.mxu0 0
  %1994 = vmatpush1.bf16.msra.mxu0 0
  %1995 = vmatprep.subr.bf16.mxu0 0
  %1996 = vmatpush1.bf16.msra.mxu0 0
  %1997 = vmatprep.subr.bf16.mxu0 0
  %1998 = vmatpush1.bf16.msra.mxu0 0
  %1999 = vmatprep.subr.bf16.mxu0 0
  %2000 = vmatpush1.bf16.msra.mxu0 0
  %2001 = vmatprep.subr.bf16.mxu0 0
  %2002 = vmatpush1.bf16.msra.mxu0 0
  %2003 = vmatprep.mubr.bf16.mxu0 0
  %2004 = vmatmul.mubr.bf16.gmra.mrb[0].mxu0 %v1882
  %v2005 = vpop.f32.mrb[0].mxu0
  %v2006 = vadd.f32 0.0, %v2005
  %v2007 = vpop.f32.mrb[0].mxu0
  %v2008 = vpop.f32.mrb[0].mxu0
  %v2009 = vadd.f32 0.0, %v2008
  %v2010 = vpop.f32.mrb[0].mxu0
  %2011 = vmatprep.mubr.bf16.mxu0 0
  %2012 = vmatmul.mubr.bf16.gmra.mrb[0].mxu0 %v1883
  %v2013 = vpop.f32.mrb[0].mxu0
  %v2014 = vadd.f32 0.0, %v2013
  %v2015 = vpop.f32.mrb[0].mxu0
  %v2016 = vpop.f32.mrb[0].mxu0
  %v2017 = vadd.f32 0.0, %v2016
  %v2018 = vpop.f32.mrb[0].mxu0
  %2019 = vmatprep.mubr.bf16.mxu0 0
  %2020 = vmatmul.mubr.bf16.gmra.mrb[0].mxu0 %v1884
  %v2021 = vpop.f32.mrb[0].mxu0
  %v2022 = vadd.f32 0.0, %v2021
  %v2023 = vpop.f32.mrb[0].mxu0
  %v2024 = vpop.f32.mrb[0].mxu0
  %v2025 = vadd.f32 0.0, %v2024
  %v2026 = vpop.f32.mrb[0].mxu0
  %2027 = vmatprep.mubr.bf16.mxu0 0
  %2028 = vmatmul.mubr.bf16.gmra.mrb[0].mxu0 %v1885
  %v2029 = vpop.f32.mrb[0].mxu0
  %v2030 = vadd.f32 0.0, %v2029
  %v2031 = vpop.f32.mrb[0].mxu0
  %v2032 = vpop.f32.mrb[0].mxu0
  %v2033 = vadd.f32 0.0, %v2032
  %v2034 = vpop.f32.mrb[0].mxu0
  %2035 = vmatprep.mubr.bf16.mxu0 0
  %2036 = vmatmul.mubr.bf16.gmra.mrb[0].mxu0 %v1886
  %v2037 = vpop.f32.mrb[0].mxu0
  %v2038 = vadd.f32 0.0, %v2037
  %v2039 = vpop.f32.mrb[0].mxu0
  %v2040 = vpop.f32.mrb[0].mxu0
  %v2041 = vadd.f32 0.0, %v2040
  %v2042 = vpop.f32.mrb[0].mxu0
  %2043 = vmatprep.mubr.bf16.mxu0 0
  %2044 = vmatmul.mubr.bf16.gmra.mrb[0].mxu0 %v1887
  %v2045 = vpop.f32.mrb[0].mxu0
  %v2046 = vadd.f32 0.0, %v2045
  %v2047 = vpop.f32.mrb[0].mxu0
  %v2048 = vpop.f32.mrb[0].mxu0
  %v2049 = vadd.f32 0.0, %v2048
  %v2050 = vpop.f32.mrb[0].mxu0
  %2051 = vmatprep.mubr.bf16.mxu0 0
  %2052 = vmatmul.mubr.bf16.gmra.mrb[0].mxu0 %v1888
  %v2053 = vpop.f32.mrb[0].mxu0
  %v2054 = vadd.f32 0.0, %v2053
  %v2055 = vpop.f32.mrb[0].mxu0
  %v2056 = vpop.f32.mrb[0].mxu0
  %v2057 = vadd.f32 0.0, %v2056
  %v2058 = vpop.f32.mrb[0].mxu0
  %2059 = vmatprep.mubr.bf16.mxu0 0
  %2060 = vmatmul.mubr.bf16.gmra.mrb[0].mxu0 %v1889
  %v2061 = vpop.f32.mrb[0].mxu0
  %v2062 = vadd.f32 0.0, %v2061
  %v2063 = vpop.f32.mrb[0].mxu0
  %v2064 = vpop.f32.mrb[0].mxu0
  %v2065 = vadd.f32 0.0, %v2064
  %v2066 = vpop.f32.mrb[0].mxu0
  %2067 = vdwg.mxu0
  %v2084 = vunpack.c.l.b16 %v1891
  %v2085 = vunpack.c.l.b16 %v1892
  %v2086 = vunpack.c.l.b16 %v1893
  %v2087 = vunpack.c.l.b16 %v1894
  %v2088 = vunpack.c.l.b16 %v1895
  %v2089 = vunpack.c.l.b16 %v1896
  %v2090 = vunpack.c.l.b16 %v1897
  %v2091 = vunpack.c.l.b16 %v1898
  %v2092 = vunpack.c.l.b16 %v1899
  %v2093 = vunpack.c.l.b16 %v1900
  %v2094 = vunpack.c.l.b16 %v1901
  %v2095 = vunpack.c.l.b16 %v1902
  %v2096 = vunpack.c.l.b16 %v1903
  %v2097 = vunpack.c.l.b16 %v1904
  %v2098 = vunpack.c.l.b16 %v1905
  %v2099 = vunpack.c.l.b16 %v1906
  %v2100 = vpack.c.b16 %v2085, %v2084
  %v2101 = vpack.c.b16 %v2087, %v2086
  %v2102 = vpack.c.b16 %v2089, %v2088
  %v2103 = vpack.c.b16 %v2091, %v2090
  %v2104 = vpack.c.b16 %v2093, %v2092
  %v2105 = vpack.c.b16 %v2095, %v2094
  %v2106 = vpack.c.b16 %v2097, %v2096
  %v2107 = vpack.c.b16 %v2099, %v2098
  %2116 = vmatprep.subr.bf16.mxu0 0
  %2117 = vmatpush1.bf16.msra.mxu0 %v2100
  %2118 = vmatprep.subr.bf16.mxu0 0
  %2119 = vmatpush1.bf16.msra.mxu0 %v2101
  %2120 = vmatprep.subr.bf16.mxu0 0
  %2121 = vmatpush1.bf16.msra.mxu0 %v2102
  %2122 = vmatprep.subr.bf16.mxu0 0
  %2123 = vmatpush1.bf16.msra.mxu0 %v2103
  %2124 = vmatprep.subr.bf16.mxu0 0
  %2125 = vmatpush1.bf16.msra.mxu0 %v2104
  %2126 = vmatprep.subr.bf16.mxu0 0
  %2127 = vmatpush1.bf16.msra.mxu0 %v2105
  %2128 = vmatprep.subr.bf16.mxu0 0
  %2129 = vmatpush1.bf16.msra.mxu0 %v2106
  %2130 = vmatprep.subr.bf16.mxu0 0
  %2131 = vmatpush1.bf16.msra.mxu0 %v2107
  %2132 = vmatprep.subr.bf16.mxu0 0
  %2133 = vmatpush1.bf16.msra.mxu0 0
  %2134 = vmatprep.subr.bf16.mxu0 0
  %2135 = vmatpush1.bf16.msra.mxu0 0
  %2136 = vmatprep.subr.bf16.mxu0 0
  %2137 = vmatpush1.bf16.msra.mxu0 0
  %2138 = vmatprep.subr.bf16.mxu0 0
  %2139 = vmatpush1.bf16.msra.mxu0 0
  %2140 = vmatprep.subr.bf16.mxu0 0
  %2141 = vmatpush1.bf16.msra.mxu0 0
  %2142 = vmatprep.subr.bf16.mxu0 0
  %2143 = vmatpush1.bf16.msra.mxu0 0
  %2144 = vmatprep.subr.bf16.mxu0 0
  %2145 = vmatpush1.bf16.msra.mxu0 0
  %2146 = vmatprep.subr.bf16.mxu0 0
  %2147 = vmatpush1.bf16.msra.mxu0 0
  %2148 = vmatprep.mubr.bf16.mxu0 0
  %2149 = vmatmul.mubr.bf16.gmra.mrb[0].mxu0 %v1881
  %v2150 = vpop.f32.mrb[0].mxu0
  %v2151 = vadd.f32 %v2006, %v2150
  %v2152 = vpop.f32.mrb[0].mxu0
  %v2153 = vpop.f32.mrb[0].mxu0
  %v2154 = vadd.f32 %v2009, %v2153
  %v2155 = vpop.f32.mrb[0].mxu0
  %2156 = vmatprep.mubr.bf16.mxu0 0
  %2157 = vmatmul.mubr.bf16.gmra.mrb[0].mxu0 %v1882
  %v2158 = vpop.f32.mrb[0].mxu0
  %v2159 = vadd.f32 %v2014, %v2158
  %v2160 = vpop.f32.mrb[0].mxu0
  %v2161 = vpop.f32.mrb[0].mxu0
  %v2162 = vadd.f32 %v2017, %v2161
  %v2163 = vpop.f32.mrb[0].mxu0
  %2164 = vmatprep.mubr.bf16.mxu0 0
  %2165 = vmatmul.mubr.bf16.gmra.mrb[0].mxu0 %v1883
  %v2166 = vpop.f32.mrb[0].mxu0
  %v2167 = vadd.f32 %v2022, %v2166
  %v2168 = vpop.f32.mrb[0].mxu0
  %v2169 = vpop.f32.mrb[0].mxu0
  %v2170 = vadd.f32 %v2025, %v2169
  %v2171 = vpop.f32.mrb[0].mxu0
  %2172 = vmatprep.mubr.bf16.mxu0 0
  %2173 = vmatmul.mubr.bf16.gmra.mrb[0].mxu0 %v1884
  %v2174 = vpop.f32.mrb[0].mxu0
  %v2175 = vadd.f32 %v2030, %v2174
  %v2176 = vpop.f32.mrb[0].mxu0
  %v2177 = vpop.f32.mrb[0].mxu0
  %v2178 = vadd.f32 %v2033, %v2177
  %v2179 = vpop.f32.mrb[0].mxu0
  %2180 = vmatprep.mubr.bf16.mxu0 0
  %2181 = vmatmul.mubr.bf16.gmra.mrb[0].mxu0 %v1885
  %v2182 = vpop.f32.mrb[0].mxu0
  %v2183 = vadd.f32 %v2038, %v2182
  %v2184 = vpop.f32.mrb[0].mxu0
  %v2185 = vpop.f32.mrb[0].mxu0
  %v2186 = vadd.f32 %v2041, %v2185
  %v2187 = vpop.f32.mrb[0].mxu0
  %2188 = vmatprep.mubr.bf16.mxu0 0
  %2189 = vmatmul.mubr.bf16.gmra.mrb[0].mxu0 %v1886
  %v2190 = vpop.f32.mrb[0].mxu0
  %v2191 = vadd.f32 %v2046, %v2190
  %v2192 = vpop.f32.mrb[0].mxu0
  %v2193 = vpop.f32.mrb[0].mxu0
  %v2194 = vadd.f32 %v2049, %v2193
  %v2195 = vpop.f32.mrb[0].mxu0
  %2196 = vmatprep.mubr.bf16.mxu0 0
  %2197 = vmatmul.mubr.bf16.gmra.mrb[0].mxu0 %v1887
  %v2198 = vpop.f32.mrb[0].mxu0
  %v2199 = vadd.f32 %v2054, %v2198
  %v2200 = vpop.f32.mrb[0].mxu0
  %v2201 = vpop.f32.mrb[0].mxu0
  %v2202 = vadd.f32 %v2057, %v2201
  %v2203 = vpop.f32.mrb[0].mxu0
  %2204 = vmatprep.mubr.bf16.mxu0 0
  %2205 = vmatmul.mubr.bf16.gmra.mrb[0].mxu0 %v1888
  %v2206 = vpop.f32.mrb[0].mxu0
  %v2207 = vadd.f32 %v2062, %v2206
  %v2208 = vpop.f32.mrb[0].mxu0
  %v2209 = vpop.f32.mrb[0].mxu0
  %v2210 = vadd.f32 %v2065, %v2209
  %v2211 = vpop.f32.mrb[0].mxu0
  %2212 = vdwg.mxu0
  %v2213 = vld [vmem:[%s1 + $0x180] sm:$0xf]
  %v2214 = vld [vmem:[%s1 + $0x184] sm:$0xf]
  %v2215 = vld [vmem:[%s1 + $0x188] sm:$0xf]
  %v2216 = vld [vmem:[%s1 + $0x18c] sm:$0xf]
  %v2217 = vld [vmem:[%s1 + $0x190] sm:$0xf]
  %v2218 = vld [vmem:[%s1 + $0x194] sm:$0xf]
  %v2219 = vld [vmem:[%s1 + $0x198] sm:$0xf]
  %v2220 = vld [vmem:[%s1 + $0x19c] sm:$0xf]
  %v2221 = vld [vmem:[%s1 + $0x1a0] sm:$0xf]
  %v2222 = vld [vmem:[%s1 + $0x1a4] sm:$0xf]
  %v2223 = vld [vmem:[%s1 + $0x1a8] sm:$0xf]
  %v2224 = vld [vmem:[%s1 + $0x1ac] sm:$0xf]
  %v2225 = vld [vmem:[%s1 + $0x1b0] sm:$0xf]
  %v2226 = vld [vmem:[%s1 + $0x1b4] sm:$0xf]
  %v2227 = vld [vmem:[%s1 + $0x1b8] sm:$0xf]
  %v2228 = vld [vmem:[%s1 + $0x1bc] sm:$0xf]
  %v2245 = vunpack.c.l.b16 %v2213
  %v2246 = vunpack.c.l.b16 %v2214
  %v2247 = vunpack.c.l.b16 %v2215
  %v2248 = vunpack.c.l.b16 %v2216
  %v2249 = vunpack.c.l.b16 %v2217
  %v2250 = vunpack.c.l.b16 %v2218
  %v2251 = vunpack.c.l.b16 %v2219
  %v2252 = vunpack.c.l.b16 %v2220
  %v2253 = vunpack.c.l.b16 %v2221
  %v2254 = vunpack.c.l.b16 %v2222
  %v2255 = vunpack.c.l.b16 %v2223
  %v2256 = vunpack.c.l.b16 %v2224
  %v2257 = vunpack.c.l.b16 %v2225
  %v2258 = vunpack.c.l.b16 %v2226
  %v2259 = vunpack.c.l.b16 %v2227
  %v2260 = vunpack.c.l.b16 %v2228
  %v2261 = vpack.c.b16 %v2246, %v2245
  %v2262 = vpack.c.b16 %v2248, %v2247
  %v2263 = vpack.c.b16 %v2250, %v2249
  %v2264 = vpack.c.b16 %v2252, %v2251
  %v2265 = vpack.c.b16 %v2254, %v2253
  %v2266 = vpack.c.b16 %v2256, %v2255
  %v2267 = vpack.c.b16 %v2258, %v2257
  %v2268 = vpack.c.b16 %v2260, %v2259
  %2277 = vmatprep.subr.bf16.mxu0 0
  %2278 = vmatpush1.bf16.msra.mxu0 %v2261
  %2279 = vmatprep.subr.bf16.mxu0 0
  %2280 = vmatpush1.bf16.msra.mxu0 %v2262
  %2281 = vmatprep.subr.bf16.mxu0 0
  %2282 = vmatpush1.bf16.msra.mxu0 %v2263
  %2283 = vmatprep.subr.bf16.mxu0 0
  %2284 = vmatpush1.bf16.msra.mxu0 %v2264
  %2285 = vmatprep.subr.bf16.mxu0 0
  %2286 = vmatpush1.bf16.msra.mxu0 %v2265
  %2287 = vmatprep.subr.bf16.mxu0 0
  %2288 = vmatpush1.bf16.msra.mxu0 %v2266
  %2289 = vmatprep.subr.bf16.mxu0 0
  %2290 = vmatpush1.bf16.msra.mxu0 %v2267
  %2291 = vmatprep.subr.bf16.mxu0 0
  %2292 = vmatpush1.bf16.msra.mxu0 %v2268
  %2293 = vmatprep.subr.bf16.mxu0 0
  %2294 = vmatpush1.bf16.msra.mxu0 0
  %2295 = vmatprep.subr.bf16.mxu0 0
  %2296 = vmatpush1.bf16.msra.mxu0 0
  %2297 = vmatprep.subr.bf16.mxu0 0
  %2298 = vmatpush1.bf16.msra.mxu0 0
  %2299 = vmatprep.subr.bf16.mxu0 0
  %2300 = vmatpush1.bf16.msra.mxu0 0
  %2301 = vmatprep.subr.bf16.mxu0 0
  %2302 = vmatpush1.bf16.msra.mxu0 0
  %2303 = vmatprep.subr.bf16.mxu0 0
  %2304 = vmatpush1.bf16.msra.mxu0 0
  %2305 = vmatprep.subr.bf16.mxu0 0
  %2306 = vmatpush1.bf16.msra.mxu0 0
  %2307 = vmatprep.subr.bf16.mxu0 0
  %2308 = vmatpush1.bf16.msra.mxu0 0
  %2309 = vmatprep.mubr.bf16.mxu0 0
  %2310 = vmatmul.mubr.bf16.gmra.mrb[0].mxu0 %v1883
  %v2311 = vpop.f32.mrb[0].mxu0
  %v2312 = vadd.f32 0.0, %v2311
  %v2313 = vpop.f32.mrb[0].mxu0
  %v2314 = vpop.f32.mrb[0].mxu0
  %v2315 = vadd.f32 0.0, %v2314
  %v2316 = vpop.f32.mrb[0].mxu0
  %2317 = vmatprep.mubr.bf16.mxu0 0
  %2318 = vmatmul.mubr.bf16.gmra.mrb[0].mxu0 %v1884
  %v2319 = vpop.f32.mrb[0].mxu0
  %v2320 = vadd.f32 0.0, %v2319
  %v2321 = vpop.f32.mrb[0].mxu0
  %v2322 = vpop.f32.mrb[0].mxu0
  %v2323 = vadd.f32 0.0, %v2322
  %v2324 = vpop.f32.mrb[0].mxu0
  %2325 = vmatprep.mubr.bf16.mxu0 0
  %2326 = vmatmul.mubr.bf16.gmra.mrb[0].mxu0 %v1885
  %v2327 = vpop.f32.mrb[0].mxu0
  %v2328 = vadd.f32 0.0, %v2327
  %v2329 = vpop.f32.mrb[0].mxu0
  %v2330 = vpop.f32.mrb[0].mxu0
  %v2331 = vadd.f32 0.0, %v2330
  %v2332 = vpop.f32.mrb[0].mxu0
  %2333 = vmatprep.mubr.bf16.mxu0 0
  %2334 = vmatmul.mubr.bf16.gmra.mrb[0].mxu0 %v1886
  %v2335 = vpop.f32.mrb[0].mxu0
  %v2336 = vadd.f32 0.0, %v2335
  %v2337 = vpop.f32.mrb[0].mxu0
  %v2338 = vpop.f32.mrb[0].mxu0
  %v2339 = vadd.f32 0.0, %v2338
  %v2340 = vpop.f32.mrb[0].mxu0
  %2341 = vmatprep.mubr.bf16.mxu0 0
  %2342 = vmatmul.mubr.bf16.gmra.mrb[0].mxu0 %v1887
  %v2343 = vpop.f32.mrb[0].mxu0
  %v2344 = vadd.f32 0.0, %v2343
  %v2345 = vpop.f32.mrb[0].mxu0
  %v2346 = vpop.f32.mrb[0].mxu0
  %v2347 = vadd.f32 0.0, %v2346
  %v2348 = vpop.f32.mrb[0].mxu0
  %2349 = vmatprep.mubr.bf16.mxu0 0
  %2350 = vmatmul.mubr.bf16.gmra.mrb[0].mxu0 %v1888
  %v2351 = vpop.f32.mrb[0].mxu0
  %v2352 = vadd.f32 0.0, %v2351
  %v2353 = vpop.f32.mrb[0].mxu0
  %v2354 = vpop.f32.mrb[0].mxu0
  %v2355 = vadd.f32 0.0, %v2354
  %v2356 = vpop.f32.mrb[0].mxu0
  %2357 = vmatprep.mubr.bf16.mxu0 0
  %2358 = vmatmul.mubr.bf16.gmra.mrb[0].mxu0 %v1889
  %v2359 = vpop.f32.mrb[0].mxu0
  %v2360 = vadd.f32 0.0, %v2359
  %v2361 = vpop.f32.mrb[0].mxu0
  %v2362 = vpop.f32.mrb[0].mxu0
  %v2363 = vadd.f32 0.0, %v2362
  %v2364 = vpop.f32.mrb[0].mxu0
  %2365 = vmatprep.mubr.bf16.mxu0 0
  %2366 = vmatmul.mubr.bf16.gmra.mrb[0].mxu0 %v1890
  %v2367 = vpop.f32.mrb[0].mxu0
  %v2368 = vadd.f32 0.0, %v2367
  %v2369 = vpop.f32.mrb[0].mxu0
  %v2370 = vpop.f32.mrb[0].mxu0
  %v2371 = vadd.f32 0.0, %v2370
  %v2372 = vpop.f32.mrb[0].mxu0
  %2373 = vdwg.mxu0
  %v2374 = vadd.f32 %v2151, %v2312
  %v2375 = vadd.f32 %v2154, %v2315
  %v2376 = vadd.f32 %v2159, %v2320
  %v2377 = vadd.f32 %v2162, %v2323
  %v2378 = vadd.f32 %v2167, %v2328
  %v2379 = vadd.f32 %v2170, %v2331
  %v2380 = vadd.f32 %v2175, %v2336
  %v2381 = vadd.f32 %v2178, %v2339
  %v2382 = vadd.f32 %v2183, %v2344
  %v2383 = vadd.f32 %v2186, %v2347
  %v2384 = vadd.f32 %v2191, %v2352
  %v2385 = vadd.f32 %v2194, %v2355
  %v2386 = vadd.f32 %v2199, %v2360
  %v2387 = vadd.f32 %v2202, %v2363
  %v2388 = vadd.f32 %v2207, %v2368
  %v2389 = vadd.f32 %v2210, %v2371
  %v2390 = vld [vmem:[%s1860 + $0x1] sm:$0xff]
  %v2391 = vld [vmem:[%s1860 + $0x9] sm:$0xff]
  %v2392 = vld [vmem:[%s1860 + $0x19] sm:$0xff]
  %v2393 = vld [vmem:[%s1860 + $0x21] sm:$0xff]
  %v2394 = vld [vmem:[%s1860 + $0x31] sm:$0xff]
  %v2395 = vld [vmem:[%s1860 + $0x39] sm:$0xff]
  %v2396 = vld [vmem:[%s1860 + $0x49] sm:$0xff]
  %v2397 = vld [vmem:[%s1860 + $0x51] sm:$0xff]
  %v2398 = vld [vmem:[%s1860 + $0x61] sm:$0xff]
  %v2399 = vld [vmem:[%s1860 + $0x69] sm:$0xff]
  %v2400 = vld [vmem:[%s1860 + $0x79] sm:$0xff]
  %v2401 = vld [vmem:[%s1860 + $0x81] sm:$0xff]
  %v2402 = vld [vmem:[%s1860 + $0x91] sm:$0xff]
  %v2403 = vld [vmem:[%s1860 + $0x99] sm:$0xff]
  %v2404 = vld [vmem:[%s1860 + $0xa9] sm:$0xff]
  %v2405 = vld [vmem:[%s1860 + $0xb1] sm:$0xff]
  %v2406 = vld [vmem:[%s1860 + $0xc1] sm:$0xff]
  %v2407 = vld [vmem:[%s1860 + $0xc9] sm:$0xff]
  %v2408 = vld [vmem:[%s1860 + $0xd9] sm:$0xff]
  %v2409 = vld [vmem:[%s1860 + $0xe1] sm:$0xff]
  %v2410 = vpack.c.bf16 %v2391, %v2390
  %v2411 = vpack.c.bf16 %v2393, %v2392
  %v2412 = vpack.c.bf16 %v2395, %v2394
  %v2413 = vpack.c.bf16 %v2397, %v2396
  %v2414 = vpack.c.bf16 %v2399, %v2398
  %v2415 = vpack.c.bf16 %v2401, %v2400
  %v2416 = vpack.c.bf16 %v2403, %v2402
  %v2417 = vpack.c.bf16 %v2405, %v2404
  %v2418 = vpack.c.bf16 %v2407, %v2406
  %v2419 = vpack.c.bf16 %v2409, %v2408
  %v2420 = vld [vmem:[%s1 + $0x40] sm:$0xf]
  %v2421 = vld [vmem:[%s1 + $0x44] sm:$0xf]
  %v2422 = vld [vmem:[%s1 + $0x48] sm:$0xf]
  %v2423 = vld [vmem:[%s1 + $0x4c] sm:$0xf]
  %v2424 = vld [vmem:[%s1 + $0x50] sm:$0xf]
  %v2425 = vld [vmem:[%s1 + $0x54] sm:$0xf]
  %v2426 = vld [vmem:[%s1 + $0x58] sm:$0xf]
  %v2427 = vld [vmem:[%s1 + $0x5c] sm:$0xf]
  %v2428 = vld [vmem:[%s1 + $0x60] sm:$0xf]
  %v2429 = vld [vmem:[%s1 + $0x64] sm:$0xf]
  %v2430 = vld [vmem:[%s1 + $0x68] sm:$0xf]
  %v2431 = vld [vmem:[%s1 + $0x6c] sm:$0xf]
  %v2432 = vld [vmem:[%s1 + $0x70] sm:$0xf]
  %v2433 = vld [vmem:[%s1 + $0x74] sm:$0xf]
  %v2434 = vld [vmem:[%s1 + $0x78] sm:$0xf]
  %v2435 = vld [vmem:[%s1 + $0x7c] sm:$0xf]
  %v2452 = vunpack.c.l.b16 %v2420
  %v2453 = vunpack.c.l.b16 %v2421
  %v2454 = vunpack.c.l.b16 %v2422
  %v2455 = vunpack.c.l.b16 %v2423
  %v2456 = vunpack.c.l.b16 %v2424
  %v2457 = vunpack.c.l.b16 %v2425
  %v2458 = vunpack.c.l.b16 %v2426
  %v2459 = vunpack.c.l.b16 %v2427
  %v2460 = vunpack.c.l.b16 %v2428
  %v2461 = vunpack.c.l.b16 %v2429
  %v2462 = vunpack.c.l.b16 %v2430
  %v2463 = vunpack.c.l.b16 %v2431
  %v2464 = vunpack.c.l.b16 %v2432
  %v2465 = vunpack.c.l.b16 %v2433
  %v2466 = vunpack.c.l.b16 %v2434
  %v2467 = vunpack.c.l.b16 %v2435
  %v2468 = vpack.c.b16 %v2453, %v2452
  %v2469 = vpack.c.b16 %v2455, %v2454
  %v2470 = vpack.c.b16 %v2457, %v2456
  %v2471 = vpack.c.b16 %v2459, %v2458
  %v2472 = vpack.c.b16 %v2461, %v2460
  %v2473 = vpack.c.b16 %v2463, %v2462
  %v2474 = vpack.c.b16 %v2465, %v2464
  %v2475 = vpack.c.b16 %v2467, %v2466
  %2484 = vmatprep.subr.bf16.mxu0 0
  %2485 = vmatpush1.bf16.msra.mxu0 %v2468
  %2486 = vmatprep.subr.bf16.mxu0 0
  %2487 = vmatpush1.bf16.msra.mxu0 %v2469
  %2488 = vmatprep.subr.bf16.mxu0 0
  %2489 = vmatpush1.bf16.msra.mxu0 %v2470
  %2490 = vmatprep.subr.bf16.mxu0 0
  %2491 = vmatpush1.bf16.msra.mxu0 %v2471
  %2492 = vmatprep.subr.bf16.mxu0 0
  %2493 = vmatpush1.bf16.msra.mxu0 %v2472
  %2494 = vmatprep.subr.bf16.mxu0 0
  %2495 = vmatpush1.bf16.msra.mxu0 %v2473
  %2496 = vmatprep.subr.bf16.mxu0 0
  %2497 = vmatpush1.bf16.msra.mxu0 %v2474
  %2498 = vmatprep.subr.bf16.mxu0 0
  %2499 = vmatpush1.bf16.msra.mxu0 %v2475
  %2500 = vmatprep.subr.bf16.mxu0 0
  %2501 = vmatpush1.bf16.msra.mxu0 0
  %2502 = vmatprep.subr.bf16.mxu0 0
  %2503 = vmatpush1.bf16.msra.mxu0 0
  %2504 = vmatprep.subr.bf16.mxu0 0
  %2505 = vmatpush1.bf16.msra.mxu0 0
  %2506 = vmatprep.subr.bf16.mxu0 0
  %2507 = vmatpush1.bf16.msra.mxu0 0
  %2508 = vmatprep.subr.bf16.mxu0 0
  %2509 = vmatpush1.bf16.msra.mxu0 0
  %2510 = vmatprep.subr.bf16.mxu0 0
  %2511 = vmatpush1.bf16.msra.mxu0 0
  %2512 = vmatprep.subr.bf16.mxu0 0
  %2513 = vmatpush1.bf16.msra.mxu0 0
  %2514 = vmatprep.subr.bf16.mxu0 0
  %2515 = vmatpush1.bf16.msra.mxu0 0
  %2516 = vmatprep.mubr.bf16.mxu0 0
  %2517 = vmatmul.mubr.bf16.gmra.mrb[0].mxu0 %v2410
  %v2518 = vpop.f32.mrb[0].mxu0
  %v2519 = vadd.f32 0.0, %v2518
  %v2520 = vpop.f32.mrb[0].mxu0
  %v2521 = vpop.f32.mrb[0].mxu0
  %v2522 = vadd.f32 0.0, %v2521
  %v2523 = vpop.f32.mrb[0].mxu0
  %2524 = vmatprep.mubr.bf16.mxu0 0
  %2525 = vmatmul.mubr.bf16.gmra.mrb[0].mxu0 %v2411
  %v2526 = vpop.f32.mrb[0].mxu0
  %v2527 = vadd.f32 0.0, %v2526
  %v2528 = vpop.f32.mrb[0].mxu0
  %v2529 = vpop.f32.mrb[0].mxu0
  %v2530 = vadd.f32 0.0, %v2529
  %v2531 = vpop.f32.mrb[0].mxu0
  %2532 = vmatprep.mubr.bf16.mxu0 0
  %2533 = vmatmul.mubr.bf16.gmra.mrb[0].mxu0 %v2412
  %v2534 = vpop.f32.mrb[0].mxu0
  %v2535 = vadd.f32 0.0, %v2534
  %v2536 = vpop.f32.mrb[0].mxu0
  %v2537 = vpop.f32.mrb[0].mxu0
  %v2538 = vadd.f32 0.0, %v2537
  %v2539 = vpop.f32.mrb[0].mxu0
  %2540 = vmatprep.mubr.bf16.mxu0 0
  %2541 = vmatmul.mubr.bf16.gmra.mrb[0].mxu0 %v2413
  %v2542 = vpop.f32.mrb[0].mxu0
  %v2543 = vadd.f32 0.0, %v2542
  %v2544 = vpop.f32.mrb[0].mxu0
  %v2545 = vpop.f32.mrb[0].mxu0
  %v2546 = vadd.f32 0.0, %v2545
  %v2547 = vpop.f32.mrb[0].mxu0
  %2548 = vmatprep.mubr.bf16.mxu0 0
  %2549 = vmatmul.mubr.bf16.gmra.mrb[0].mxu0 %v2414
  %v2550 = vpop.f32.mrb[0].mxu0
  %v2551 = vadd.f32 0.0, %v2550
  %v2552 = vpop.f32.mrb[0].mxu0
  %v2553 = vpop.f32.mrb[0].mxu0
  %v2554 = vadd.f32 0.0, %v2553
  %v2555 = vpop.f32.mrb[0].mxu0
  %2556 = vmatprep.mubr.bf16.mxu0 0
  %2557 = vmatmul.mubr.bf16.gmra.mrb[0].mxu0 %v2415
  %v2558 = vpop.f32.mrb[0].mxu0
  %v2559 = vadd.f32 0.0, %v2558
  %v2560 = vpop.f32.mrb[0].mxu0
  %v2561 = vpop.f32.mrb[0].mxu0
  %v2562 = vadd.f32 0.0, %v2561
  %v2563 = vpop.f32.mrb[0].mxu0
  %2564 = vmatprep.mubr.bf16.mxu0 0
  %2565 = vmatmul.mubr.bf16.gmra.mrb[0].mxu0 %v2416
  %v2566 = vpop.f32.mrb[0].mxu0
  %v2567 = vadd.f32 0.0, %v2566
  %v2568 = vpop.f32.mrb[0].mxu0
  %v2569 = vpop.f32.mrb[0].mxu0
  %v2570 = vadd.f32 0.0, %v2569
  %v2571 = vpop.f32.mrb[0].mxu0
  %2572 = vmatprep.mubr.bf16.mxu0 0
  %2573 = vmatmul.mubr.bf16.gmra.mrb[0].mxu0 %v2417
  %v2574 = vpop.f32.mrb[0].mxu0
  %v2575 = vadd.f32 0.0, %v2574
  %v2576 = vpop.f32.mrb[0].mxu0
  %v2577 = vpop.f32.mrb[0].mxu0
  %v2578 = vadd.f32 0.0, %v2577
  %v2579 = vpop.f32.mrb[0].mxu0
  %2580 = vdwg.mxu0
  %v2581 = vadd.f32 %v2374, %v2519
  %v2582 = vadd.f32 %v2375, %v2522
  %v2583 = vadd.f32 %v2376, %v2527
  %v2584 = vadd.f32 %v2377, %v2530
  %v2585 = vadd.f32 %v2378, %v2535
  %v2586 = vadd.f32 %v2379, %v2538
  %v2587 = vadd.f32 %v2380, %v2543
  %v2588 = vadd.f32 %v2381, %v2546
  %v2589 = vadd.f32 %v2382, %v2551
  %v2590 = vadd.f32 %v2383, %v2554
  %v2591 = vadd.f32 %v2384, %v2559
  %v2592 = vadd.f32 %v2385, %v2562
  %v2593 = vadd.f32 %v2386, %v2567
  %v2594 = vadd.f32 %v2387, %v2570
  %v2595 = vadd.f32 %v2388, %v2575
  %v2596 = vadd.f32 %v2389, %v2578
  %v2597 = vld [vmem:[%s1 + $0x100] sm:$0xf]
  %v2598 = vld [vmem:[%s1 + $0x104] sm:$0xf]
  %v2599 = vld [vmem:[%s1 + $0x108] sm:$0xf]
  %v2600 = vld [vmem:[%s1 + $0x10c] sm:$0xf]
  %v2601 = vld [vmem:[%s1 + $0x110] sm:$0xf]
  %v2602 = vld [vmem:[%s1 + $0x114] sm:$0xf]
  %v2603 = vld [vmem:[%s1 + $0x118] sm:$0xf]
  %v2604 = vld [vmem:[%s1 + $0x11c] sm:$0xf]
  %v2605 = vld [vmem:[%s1 + $0x120] sm:$0xf]
  %v2606 = vld [vmem:[%s1 + $0x124] sm:$0xf]
  %v2607 = vld [vmem:[%s1 + $0x128] sm:$0xf]
  %v2608 = vld [vmem:[%s1 + $0x12c] sm:$0xf]
  %v2609 = vld [vmem:[%s1 + $0x130] sm:$0xf]
  %v2610 = vld [vmem:[%s1 + $0x134] sm:$0xf]
  %v2611 = vld [vmem:[%s1 + $0x138] sm:$0xf]
  %v2612 = vld [vmem:[%s1 + $0x13c] sm:$0xf]
  %v2629 = vunpack.c.l.b16 %v2597
  %v2630 = vunpack.c.l.b16 %v2598
  %v2631 = vunpack.c.l.b16 %v2599
  %v2632 = vunpack.c.l.b16 %v2600
  %v2633 = vunpack.c.l.b16 %v2601
  %v2634 = vunpack.c.l.b16 %v2602
  %v2635 = vunpack.c.l.b16 %v2603
  %v2636 = vunpack.c.l.b16 %v2604
  %v2637 = vunpack.c.l.b16 %v2605
  %v2638 = vunpack.c.l.b16 %v2606
  %v2639 = vunpack.c.l.b16 %v2607
  %v2640 = vunpack.c.l.b16 %v2608
  %v2641 = vunpack.c.l.b16 %v2609
  %v2642 = vunpack.c.l.b16 %v2610
  %v2643 = vunpack.c.l.b16 %v2611
  %v2644 = vunpack.c.l.b16 %v2612
  %v2645 = vpack.c.b16 %v2630, %v2629
  %v2646 = vpack.c.b16 %v2632, %v2631
  %v2647 = vpack.c.b16 %v2634, %v2633
  %v2648 = vpack.c.b16 %v2636, %v2635
  %v2649 = vpack.c.b16 %v2638, %v2637
  %v2650 = vpack.c.b16 %v2640, %v2639
  %v2651 = vpack.c.b16 %v2642, %v2641
  %v2652 = vpack.c.b16 %v2644, %v2643
  %2661 = vmatprep.subr.bf16.mxu0 0
  %2662 = vmatpush1.bf16.msra.mxu0 %v2645
  %2663 = vmatprep.subr.bf16.mxu0 0
  %2664 = vmatpush1.bf16.msra.mxu0 %v2646
  %2665 = vmatprep.subr.bf16.mxu0 0
  %2666 = vmatpush1.bf16.msra.mxu0 %v2647
  %2667 = vmatprep.subr.bf16.mxu0 0
  %2668 = vmatpush1.bf16.msra.mxu0 %v2648
  %2669 = vmatprep.subr.bf16.mxu0 0
  %2670 = vmatpush1.bf16.msra.mxu0 %v2649
  %2671 = vmatprep.subr.bf16.mxu0 0
  %2672 = vmatpush1.bf16.msra.mxu0 %v2650
  %2673 = vmatprep.subr.bf16.mxu0 0
  %2674 = vmatpush1.bf16.msra.mxu0 %v2651
  %2675 = vmatprep.subr.bf16.mxu0 0
  %2676 = vmatpush1.bf16.msra.mxu0 %v2652
  %2677 = vmatprep.subr.bf16.mxu0 0
  %2678 = vmatpush1.bf16.msra.mxu0 0
  %2679 = vmatprep.subr.bf16.mxu0 0
  %2680 = vmatpush1.bf16.msra.mxu0 0
  %2681 = vmatprep.subr.bf16.mxu0 0
  %2682 = vmatpush1.bf16.msra.mxu0 0
  %2683 = vmatprep.subr.bf16.mxu0 0
  %2684 = vmatpush1.bf16.msra.mxu0 0
  %2685 = vmatprep.subr.bf16.mxu0 0
  %2686 = vmatpush1.bf16.msra.mxu0 0
  %2687 = vmatprep.subr.bf16.mxu0 0
  %2688 = vmatpush1.bf16.msra.mxu0 0
  %2689 = vmatprep.subr.bf16.mxu0 0
  %2690 = vmatpush1.bf16.msra.mxu0 0
  %2691 = vmatprep.subr.bf16.mxu0 0
  %2692 = vmatpush1.bf16.msra.mxu0 0
  %2693 = vmatprep.mubr.bf16.mxu0 0
  %2694 = vmatmul.mubr.bf16.gmra.mrb[0].mxu0 %v2411
  %v2695 = vpop.f32.mrb[0].mxu0
  %v2696 = vadd.f32 0.0, %v2695
  %v2697 = vpop.f32.mrb[0].mxu0
  %v2698 = vpop.f32.mrb[0].mxu0
  %v2699 = vadd.f32 0.0, %v2698
  %v2700 = vpop.f32.mrb[0].mxu0
  %2701 = vmatprep.mubr.bf16.mxu0 0
  %2702 = vmatmul.mubr.bf16.gmra.mrb[0].mxu0 %v2412
  %v2703 = vpop.f32.mrb[0].mxu0
  %v2704 = vadd.f32 0.0, %v2703
  %v2705 = vpop.f32.mrb[0].mxu0
  %v2706 = vpop.f32.mrb[0].mxu0
  %v2707 = vadd.f32 0.0, %v2706
  %v2708 = vpop.f32.mrb[0].mxu0
  %2709 = vmatprep.mubr.bf16.mxu0 0
  %2710 = vmatmul.mubr.bf16.gmra.mrb[0].mxu0 %v2413
  %v2711 = vpop.f32.mrb[0].mxu0
  %v2712 = vadd.f32 0.0, %v2711
  %v2713 = vpop.f32.mrb[0].mxu0
  %v2714 = vpop.f32.mrb[0].mxu0
  %v2715 = vadd.f32 0.0, %v2714
  %v2716 = vpop.f32.mrb[0].mxu0
  %2717 = vmatprep.mubr.bf16.mxu0 0
  %2718 = vmatmul.mubr.bf16.gmra.mrb[0].mxu0 %v2414
  %v2719 = vpop.f32.mrb[0].mxu0
  %v2720 = vadd.f32 0.0, %v2719
  %v2721 = vpop.f32.mrb[0].mxu0
  %v2722 = vpop.f32.mrb[0].mxu0
  %v2723 = vadd.f32 0.0, %v2722
  %v2724 = vpop.f32.mrb[0].mxu0
  %2725 = vmatprep.mubr.bf16.mxu0 0
  %2726 = vmatmul.mubr.bf16.gmra.mrb[0].mxu0 %v2415
  %v2727 = vpop.f32.mrb[0].mxu0
  %v2728 = vadd.f32 0.0, %v2727
  %v2729 = vpop.f32.mrb[0].mxu0
  %v2730 = vpop.f32.mrb[0].mxu0
  %v2731 = vadd.f32 0.0, %v2730
  %v2732 = vpop.f32.mrb[0].mxu0
  %2733 = vmatprep.mubr.bf16.mxu0 0
  %2734 = vmatmul.mubr.bf16.gmra.mrb[0].mxu0 %v2416
  %v2735 = vpop.f32.mrb[0].mxu0
  %v2736 = vadd.f32 0.0, %v2735
  %v2737 = vpop.f32.mrb[0].mxu0
  %v2738 = vpop.f32.mrb[0].mxu0
  %v2739 = vadd.f32 0.0, %v2738
  %v2740 = vpop.f32.mrb[0].mxu0
  %2741 = vmatprep.mubr.bf16.mxu0 0
  %2742 = vmatmul.mubr.bf16.gmra.mrb[0].mxu0 %v2417
  %v2743 = vpop.f32.mrb[0].mxu0
  %v2744 = vadd.f32 0.0, %v2743
  %v2745 = vpop.f32.mrb[0].mxu0
  %v2746 = vpop.f32.mrb[0].mxu0
  %v2747 = vadd.f32 0.0, %v2746
  %v2748 = vpop.f32.mrb[0].mxu0
  %2749 = vmatprep.mubr.bf16.mxu0 0
  %2750 = vmatmul.mubr.bf16.gmra.mrb[0].mxu0 %v2418
  %v2751 = vpop.f32.mrb[0].mxu0
  %v2752 = vadd.f32 0.0, %v2751
  %v2753 = vpop.f32.mrb[0].mxu0
  %v2754 = vpop.f32.mrb[0].mxu0
  %v2755 = vadd.f32 0.0, %v2754
  %v2756 = vpop.f32.mrb[0].mxu0
  %2757 = vdwg.mxu0
  %v2758 = vadd.f32 %v2581, %v2696
  %v2759 = vadd.f32 %v2582, %v2699
  %v2760 = vadd.f32 %v2583, %v2704
  %v2761 = vadd.f32 %v2584, %v2707
  %v2762 = vadd.f32 %v2585, %v2712
  %v2763 = vadd.f32 %v2586, %v2715
  %v2764 = vadd.f32 %v2587, %v2720
  %v2765 = vadd.f32 %v2588, %v2723
  %v2766 = vadd.f32 %v2589, %v2728
  %v2767 = vadd.f32 %v2590, %v2731
  %v2768 = vadd.f32 %v2591, %v2736
  %v2769 = vadd.f32 %v2592, %v2739
  %v2770 = vadd.f32 %v2593, %v2744
  %v2771 = vadd.f32 %v2594, %v2747
  %v2772 = vadd.f32 %v2595, %v2752
  %v2773 = vadd.f32 %v2596, %v2755
  %v2774 = vld [vmem:[%s1 + $0x1c0] sm:$0xf]
  %v2775 = vld [vmem:[%s1 + $0x1c4] sm:$0xf]
  %v2776 = vld [vmem:[%s1 + $0x1c8] sm:$0xf]
  %v2777 = vld [vmem:[%s1 + $0x1cc] sm:$0xf]
  %v2778 = vld [vmem:[%s1 + $0x1d0] sm:$0xf]
  %v2779 = vld [vmem:[%s1 + $0x1d4] sm:$0xf]
  %v2780 = vld [vmem:[%s1 + $0x1d8] sm:$0xf]
  %v2781 = vld [vmem:[%s1 + $0x1dc] sm:$0xf]
  %v2782 = vld [vmem:[%s1 + $0x1e0] sm:$0xf]
  %v2783 = vld [vmem:[%s1 + $0x1e4] sm:$0xf]
  %v2784 = vld [vmem:[%s1 + $0x1e8] sm:$0xf]
  %v2785 = vld [vmem:[%s1 + $0x1ec] sm:$0xf]
  %v2786 = vld [vmem:[%s1 + $0x1f0] sm:$0xf]
  %v2787 = vld [vmem:[%s1 + $0x1f4] sm:$0xf]
  %v2788 = vld [vmem:[%s1 + $0x1f8] sm:$0xf]
  %v2789 = vld [vmem:[%s1 + $0x1fc] sm:$0xf]
  %v2806 = vunpack.c.l.b16 %v2774
  %v2807 = vunpack.c.l.b16 %v2775
  %v2808 = vunpack.c.l.b16 %v2776
  %v2809 = vunpack.c.l.b16 %v2777
  %v2810 = vunpack.c.l.b16 %v2778
  %v2811 = vunpack.c.l.b16 %v2779
  %v2812 = vunpack.c.l.b16 %v2780
  %v2813 = vunpack.c.l.b16 %v2781
  %v2814 = vunpack.c.l.b16 %v2782
  %v2815 = vunpack.c.l.b16 %v2783
  %v2816 = vunpack.c.l.b16 %v2784
  %v2817 = vunpack.c.l.b16 %v2785
  %v2818 = vunpack.c.l.b16 %v2786
  %v2819 = vunpack.c.l.b16 %v2787
  %v2820 = vunpack.c.l.b16 %v2788
  %v2821 = vunpack.c.l.b16 %v2789
  %v2822 = vpack.c.b16 %v2807, %v2806
  %v2823 = vpack.c.b16 %v2809, %v2808
  %v2824 = vpack.c.b16 %v2811, %v2810
  %v2825 = vpack.c.b16 %v2813, %v2812
  %v2826 = vpack.c.b16 %v2815, %v2814
  %v2827 = vpack.c.b16 %v2817, %v2816
  %v2828 = vpack.c.b16 %v2819, %v2818
  %v2829 = vpack.c.b16 %v2821, %v2820
  %2838 = vmatprep.subr.bf16.mxu0 0
  %2839 = vmatpush1.bf16.msra.mxu0 %v2822
  %2840 = vmatprep.subr.bf16.mxu0 0
  %2841 = vmatpush1.bf16.msra.mxu0 %v2823
  %2842 = vmatprep.subr.bf16.mxu0 0
  %2843 = vmatpush1.bf16.msra.mxu0 %v2824
  %2844 = vmatprep.subr.bf16.mxu0 0
  %2845 = vmatpush1.bf16.msra.mxu0 %v2825
  %2846 = vmatprep.subr.bf16.mxu0 0
  %2847 = vmatpush1.bf16.msra.mxu0 %v2826
  %2848 = vmatprep.subr.bf16.mxu0 0
  %2849 = vmatpush1.bf16.msra.mxu0 %v2827
  %2850 = vmatprep.subr.bf16.mxu0 0
  %2851 = vmatpush1.bf16.msra.mxu0 %v2828
  %2852 = vmatprep.subr.bf16.mxu0 0
  %2853 = vmatpush1.bf16.msra.mxu0 %v2829
  %2854 = vmatprep.subr.bf16.mxu0 0
  %2855 = vmatpush1.bf16.msra.mxu0 0
  %2856 = vmatprep.subr.bf16.mxu0 0
  %2857 = vmatpush1.bf16.msra.mxu0 0
  %2858 = vmatprep.subr.bf16.mxu0 0
  %2859 = vmatpush1.bf16.msra.mxu0 0
  %2860 = vmatprep.subr.bf16.mxu0 0
  %2861 = vmatpush1.bf16.msra.mxu0 0
  %2862 = vmatprep.subr.bf16.mxu0 0
  %2863 = vmatpush1.bf16.msra.mxu0 0
  %2864 = vmatprep.subr.bf16.mxu0 0
  %2865 = vmatpush1.bf16.msra.mxu0 0
  %2866 = vmatprep.subr.bf16.mxu0 0
  %2867 = vmatpush1.bf16.msra.mxu0 0
  %2868 = vmatprep.subr.bf16.mxu0 0
  %2869 = vmatpush1.bf16.msra.mxu0 0
  %2870 = vmatprep.mubr.bf16.mxu0 0
  %2871 = vmatmul.mubr.bf16.gmra.mrb[0].mxu0 %v2412
  %v2872 = vpop.f32.mrb[0].mxu0
  %v2873 = vadd.f32 0.0, %v2872
  %v2874 = vpop.f32.mrb[0].mxu0
  %v2875 = vpop.f32.mrb[0].mxu0
  %v2876 = vadd.f32 0.0, %v2875
  %v2877 = vpop.f32.mrb[0].mxu0
  %2878 = vmatprep.mubr.bf16.mxu0 0
  %2879 = vmatmul.mubr.bf16.gmra.mrb[0].mxu0 %v2413
  %v2880 = vpop.f32.mrb[0].mxu0
  %v2881 = vadd.f32 0.0, %v2880
  %v2882 = vpop.f32.mrb[0].mxu0
  %v2883 = vpop.f32.mrb[0].mxu0
  %v2884 = vadd.f32 0.0, %v2883
  %v2885 = vpop.f32.mrb[0].mxu0
  %2886 = vmatprep.mubr.bf16.mxu0 0
  %2887 = vmatmul.mubr.bf16.gmra.mrb[0].mxu0 %v2414
  %v2888 = vpop.f32.mrb[0].mxu0
  %v2889 = vadd.f32 0.0, %v2888
  %v2890 = vpop.f32.mrb[0].mxu0
  %v2891 = vpop.f32.mrb[0].mxu0
  %v2892 = vadd.f32 0.0, %v2891
  %v2893 = vpop.f32.mrb[0].mxu0
  %2894 = vmatprep.mubr.bf16.mxu0 0
  %2895 = vmatmul.mubr.bf16.gmra.mrb[0].mxu0 %v2415
  %v2896 = vpop.f32.mrb[0].mxu0
  %v2897 = vadd.f32 0.0, %v2896
  %v2898 = vpop.f32.mrb[0].mxu0
  %v2899 = vpop.f32.mrb[0].mxu0
  %v2900 = vadd.f32 0.0, %v2899
  %v2901 = vpop.f32.mrb[0].mxu0
  %2902 = vmatprep.mubr.bf16.mxu0 0
  %2903 = vmatmul.mubr.bf16.gmra.mrb[0].mxu0 %v2416
  %v2904 = vpop.f32.mrb[0].mxu0
  %v2905 = vadd.f32 0.0, %v2904
  %v2906 = vpop.f32.mrb[0].mxu0
  %v2907 = vpop.f32.mrb[0].mxu0
  %v2908 = vadd.f32 0.0, %v2907
  %v2909 = vpop.f32.mrb[0].mxu0
  %2910 = vmatprep.mubr.bf16.mxu0 0
  %2911 = vmatmul.mubr.bf16.gmra.mrb[0].mxu0 %v2417
  %v2912 = vpop.f32.mrb[0].mxu0
  %v2913 = vadd.f32 0.0, %v2912
  %v2914 = vpop.f32.mrb[0].mxu0
  %v2915 = vpop.f32.mrb[0].mxu0
  %v2916 = vadd.f32 0.0, %v2915
  %v2917 = vpop.f32.mrb[0].mxu0
  %2918 = vmatprep.mubr.bf16.mxu0 0
  %2919 = vmatmul.mubr.bf16.gmra.mrb[0].mxu0 %v2418
  %v2920 = vpop.f32.mrb[0].mxu0
  %v2921 = vadd.f32 0.0, %v2920
  %v2922 = vpop.f32.mrb[0].mxu0
  %v2923 = vpop.f32.mrb[0].mxu0
  %v2924 = vadd.f32 0.0, %v2923
  %v2925 = vpop.f32.mrb[0].mxu0
  %2926 = vmatprep.mubr.bf16.mxu0 0
  %2927 = vmatmul.mubr.bf16.gmra.mrb[0].mxu0 %v2419
  %v2928 = vpop.f32.mrb[0].mxu0
  %v2929 = vadd.f32 0.0, %v2928
  %v2930 = vpop.f32.mrb[0].mxu0
  %v2931 = vpop.f32.mrb[0].mxu0
  %v2932 = vadd.f32 0.0, %v2931
  %v2933 = vpop.f32.mrb[0].mxu0
  %2934 = vdwg.mxu0
  %v2935 = vadd.f32 %v2758, %v2873
  %v2936 = vadd.f32 %v2759, %v2876
  %v2937 = vadd.f32 %v2760, %v2881
  %v2938 = vadd.f32 %v2761, %v2884
  %v2939 = vadd.f32 %v2762, %v2889
  %v2940 = vadd.f32 %v2763, %v2892
  %v2941 = vadd.f32 %v2764, %v2897
  %v2942 = vadd.f32 %v2765, %v2900
  %v2943 = vadd.f32 %v2766, %v2905
  %v2944 = vadd.f32 %v2767, %v2908
  %v2945 = vadd.f32 %v2768, %v2913
  %v2946 = vadd.f32 %v2769, %v2916
  %v2947 = vadd.f32 %v2770, %v2921
  %v2948 = vadd.f32 %v2771, %v2924
  %v2949 = vadd.f32 %v2772, %v2929
  %v2950 = vadd.f32 %v2773, %v2932
  %v2951 = vld [vmem:[%s1860 + $0x2] sm:$0xff]
  %v2952 = vld [vmem:[%s1860 + $0xa] sm:$0xff]
  %v2953 = vld [vmem:[%s1860 + $0x1a] sm:$0xff]
  %v2954 = vld [vmem:[%s1860 + $0x22] sm:$0xff]
  %v2955 = vld [vmem:[%s1860 + $0x32] sm:$0xff]
  %v2956 = vld [vmem:[%s1860 + $0x3a] sm:$0xff]
  %v2957 = vld [vmem:[%s1860 + $0x4a] sm:$0xff]
  %v2958 = vld [vmem:[%s1860 + $0x52] sm:$0xff]
  %v2959 = vld [vmem:[%s1860 + $0x62] sm:$0xff]
  %v2960 = vld [vmem:[%s1860 + $0x6a] sm:$0xff]
  %v2961 = vld [vmem:[%s1860 + $0x7a] sm:$0xff]
  %v2962 = vld [vmem:[%s1860 + $0x82] sm:$0xff]
  %v2963 = vld [vmem:[%s1860 + $0x92] sm:$0xff]
  %v2964 = vld [vmem:[%s1860 + $0x9a] sm:$0xff]
  %v2965 = vld [vmem:[%s1860 + $0xaa] sm:$0xff]
  %v2966 = vld [vmem:[%s1860 + $0xb2] sm:$0xff]
  %v2967 = vld [vmem:[%s1860 + $0xc2] sm:$0xff]
  %v2968 = vld [vmem:[%s1860 + $0xca] sm:$0xff]
  %v2969 = vld [vmem:[%s1860 + $0xda] sm:$0xff]
  %v2970 = vld [vmem:[%s1860 + $0xe2] sm:$0xff]
  %v2971 = vpack.c.bf16 %v2952, %v2951
  %v2972 = vpack.c.bf16 %v2954, %v2953
  %v2973 = vpack.c.bf16 %v2956, %v2955
  %v2974 = vpack.c.bf16 %v2958, %v2957
  %v2975 = vpack.c.bf16 %v2960, %v2959
  %v2976 = vpack.c.bf16 %v2962, %v2961
  %v2977 = vpack.c.bf16 %v2964, %v2963
  %v2978 = vpack.c.bf16 %v2966, %v2965
  %v2979 = vpack.c.bf16 %v2968, %v2967
  %v2980 = vpack.c.bf16 %v2970, %v2969
  %v2981 = vld [vmem:[%s1 + $0x80] sm:$0xf]
  %v2982 = vld [vmem:[%s1 + $0x84] sm:$0xf]
  %v2983 = vld [vmem:[%s1 + $0x88] sm:$0xf]
  %v2984 = vld [vmem:[%s1 + $0x8c] sm:$0xf]
  %v2985 = vld [vmem:[%s1 + $0x90] sm:$0xf]
  %v2986 = vld [vmem:[%s1 + $0x94] sm:$0xf]
  %v2987 = vld [vmem:[%s1 + $0x98] sm:$0xf]
  %v2988 = vld [vmem:[%s1 + $0x9c] sm:$0xf]
  %v2989 = vld [vmem:[%s1 + $0xa0] sm:$0xf]
  %v2990 = vld [vmem:[%s1 + $0xa4] sm:$0xf]
  %v2991 = vld [vmem:[%s1 + $0xa8] sm:$0xf]
  %v2992 = vld [vmem:[%s1 + $0xac] sm:$0xf]
  %v2993 = vld [vmem:[%s1 + $0xb0] sm:$0xf]
  %v2994 = vld [vmem:[%s1 + $0xb4] sm:$0xf]
  %v2995 = vld [vmem:[%s1 + $0xb8] sm:$0xf]
  %v2996 = vld [vmem:[%s1 + $0xbc] sm:$0xf]
  %v3013 = vunpack.c.l.b16 %v2981
  %v3014 = vunpack.c.l.b16 %v2982
  %v3015 = vunpack.c.l.b16 %v2983
  %v3016 = vunpack.c.l.b16 %v2984
  %v3017 = vunpack.c.l.b16 %v2985
  %v3018 = vunpack.c.l.b16 %v2986
  %v3019 = vunpack.c.l.b16 %v2987
  %v3020 = vunpack.c.l.b16 %v2988
  %v3021 = vunpack.c.l.b16 %v2989
  %v3022 = vunpack.c.l.b16 %v2990
  %v3023 = vunpack.c.l.b16 %v2991
  %v3024 = vunpack.c.l.b16 %v2992
  %v3025 = vunpack.c.l.b16 %v2993
  %v3026 = vunpack.c.l.b16 %v2994
  %v3027 = vunpack.c.l.b16 %v2995
  %v3028 = vunpack.c.l.b16 %v2996
  %v3029 = vpack.c.b16 %v3014, %v3013
  %v3030 = vpack.c.b16 %v3016, %v3015
  %v3031 = vpack.c.b16 %v3018, %v3017
  %v3032 = vpack.c.b16 %v3020, %v3019
  %v3033 = vpack.c.b16 %v3022, %v3021
  %v3034 = vpack.c.b16 %v3024, %v3023
  %v3035 = vpack.c.b16 %v3026, %v3025
  %v3036 = vpack.c.b16 %v3028, %v3027
  %3045 = vmatprep.subr.bf16.mxu0 0
  %3046 = vmatpush1.bf16.msra.mxu0 %v3029
  %3047 = vmatprep.subr.bf16.mxu0 0
  %3048 = vmatpush1.bf16.msra.mxu0 %v3030
  %3049 = vmatprep.subr.bf16.mxu0 0
  %3050 = vmatpush1.bf16.msra.mxu0 %v3031
  %3051 = vmatprep.subr.bf16.mxu0 0
  %3052 = vmatpush1.bf16.msra.mxu0 %v3032
  %3053 = vmatprep.subr.bf16.mxu0 0
  %3054 = vmatpush1.bf16.msra.mxu0 %v3033
  %3055 = vmatprep.subr.bf16.mxu0 0
  %3056 = vmatpush1.bf16.msra.mxu0 %v3034
  %3057 = vmatprep.subr.bf16.mxu0 0
  %3058 = vmatpush1.bf16.msra.mxu0 %v3035
  %3059 = vmatprep.subr.bf16.mxu0 0
  %3060 = vmatpush1.bf16.msra.mxu0 %v3036
  %3061 = vmatprep.subr.bf16.mxu0 0
  %3062 = vmatpush1.bf16.msra.mxu0 0
  %3063 = vmatprep.subr.bf16.mxu0 0
  %3064 = vmatpush1.bf16.msra.mxu0 0
  %3065 = vmatprep.subr.bf16.mxu0 0
  %3066 = vmatpush1.bf16.msra.mxu0 0
  %3067 = vmatprep.subr.bf16.mxu0 0
  %3068 = vmatpush1.bf16.msra.mxu0 0
  %3069 = vmatprep.subr.bf16.mxu0 0
  %3070 = vmatpush1.bf16.msra.mxu0 0
  %3071 = vmatprep.subr.bf16.mxu0 0
  %3072 = vmatpush1.bf16.msra.mxu0 0
  %3073 = vmatprep.subr.bf16.mxu0 0
  %3074 = vmatpush1.bf16.msra.mxu0 0
  %3075 = vmatprep.subr.bf16.mxu0 0
  %3076 = vmatpush1.bf16.msra.mxu0 0
  %3077 = vmatprep.mubr.bf16.mxu0 0
  %3078 = vmatmul.mubr.bf16.gmra.mrb[0].mxu0 %v2971
  %v3079 = vpop.f32.mrb[0].mxu0
  %v3080 = vadd.f32 0.0, %v3079
  %v3081 = vpop.f32.mrb[0].mxu0
  %v3082 = vpop.f32.mrb[0].mxu0
  %v3083 = vadd.f32 0.0, %v3082
  %v3084 = vpop.f32.mrb[0].mxu0
  %3085 = vmatprep.mubr.bf16.mxu0 0
  %3086 = vmatmul.mubr.bf16.gmra.mrb[0].mxu0 %v2972
  %v3087 = vpop.f32.mrb[0].mxu0
  %v3088 = vadd.f32 0.0, %v3087
  %v3089 = vpop.f32.mrb[0].mxu0
  %v3090 = vpop.f32.mrb[0].mxu0
  %v3091 = vadd.f32 0.0, %v3090
  %v3092 = vpop.f32.mrb[0].mxu0
  %3093 = vmatprep.mubr.bf16.mxu0 0
  %3094 = vmatmul.mubr.bf16.gmra.mrb[0].mxu0 %v2973
  %v3095 = vpop.f32.mrb[0].mxu0
  %v3096 = vadd.f32 0.0, %v3095
  %v3097 = vpop.f32.mrb[0].mxu0
  %v3098 = vpop.f32.mrb[0].mxu0
  %v3099 = vadd.f32 0.0, %v3098
  %v3100 = vpop.f32.mrb[0].mxu0
  %3101 = vmatprep.mubr.bf16.mxu0 0
  %3102 = vmatmul.mubr.bf16.gmra.mrb[0].mxu0 %v2974
  %v3103 = vpop.f32.mrb[0].mxu0
  %v3104 = vadd.f32 0.0, %v3103
  %v3105 = vpop.f32.mrb[0].mxu0
  %v3106 = vpop.f32.mrb[0].mxu0
  %v3107 = vadd.f32 0.0, %v3106
  %v3108 = vpop.f32.mrb[0].mxu0
  %3109 = vmatprep.mubr.bf16.mxu0 0
  %3110 = vmatmul.mubr.bf16.gmra.mrb[0].mxu0 %v2975
  %v3111 = vpop.f32.mrb[0].mxu0
  %v3112 = vadd.f32 0.0, %v3111
  %v3113 = vpop.f32.mrb[0].mxu0
  %v3114 = vpop.f32.mrb[0].mxu0
  %v3115 = vadd.f32 0.0, %v3114
  %v3116 = vpop.f32.mrb[0].mxu0
  %3117 = vmatprep.mubr.bf16.mxu0 0
  %3118 = vmatmul.mubr.bf16.gmra.mrb[0].mxu0 %v2976
  %v3119 = vpop.f32.mrb[0].mxu0
  %v3120 = vadd.f32 0.0, %v3119
  %v3121 = vpop.f32.mrb[0].mxu0
  %v3122 = vpop.f32.mrb[0].mxu0
  %v3123 = vadd.f32 0.0, %v3122
  %v3124 = vpop.f32.mrb[0].mxu0
  %3125 = vmatprep.mubr.bf16.mxu0 0
  %3126 = vmatmul.mubr.bf16.gmra.mrb[0].mxu0 %v2977
  %v3127 = vpop.f32.mrb[0].mxu0
  %v3128 = vadd.f32 0.0, %v3127
  %v3129 = vpop.f32.mrb[0].mxu0
  %v3130 = vpop.f32.mrb[0].mxu0
  %v3131 = vadd.f32 0.0, %v3130
  %v3132 = vpop.f32.mrb[0].mxu0
  %3133 = vmatprep.mubr.bf16.mxu0 0
  %3134 = vmatmul.mubr.bf16.gmra.mrb[0].mxu0 %v2978
  %v3135 = vpop.f32.mrb[0].mxu0
  %v3136 = vadd.f32 0.0, %v3135
  %v3137 = vpop.f32.mrb[0].mxu0
  %v3138 = vpop.f32.mrb[0].mxu0
  %v3139 = vadd.f32 0.0, %v3138
  %v3140 = vpop.f32.mrb[0].mxu0
  %3141 = vdwg.mxu0
  %v3142 = vadd.f32 %v2935, %v3080
  %v3143 = vadd.f32 %v2936, %v3083
  %v3144 = vadd.f32 %v2937, %v3088
  %v3145 = vadd.f32 %v2938, %v3091
  %v3146 = vadd.f32 %v2939, %v3096
  %v3147 = vadd.f32 %v2940, %v3099
  %v3148 = vadd.f32 %v2941, %v3104
  %v3149 = vadd.f32 %v2942, %v3107
  %v3150 = vadd.f32 %v2943, %v3112
  %v3151 = vadd.f32 %v2944, %v3115
  %v3152 = vadd.f32 %v2945, %v3120
  %v3153 = vadd.f32 %v2946, %v3123
  %v3154 = vadd.f32 %v2947, %v3128
  %v3155 = vadd.f32 %v2948, %v3131
  %v3156 = vadd.f32 %v2949, %v3136
  %v3157 = vadd.f32 %v2950, %v3139
  %v3158 = vld [vmem:[%s1 + $0x140] sm:$0xf]
  %v3159 = vld [vmem:[%s1 + $0x144] sm:$0xf]
  %v3160 = vld [vmem:[%s1 + $0x148] sm:$0xf]
  %v3161 = vld [vmem:[%s1 + $0x14c] sm:$0xf]
  %v3162 = vld [vmem:[%s1 + $0x150] sm:$0xf]
  %v3163 = vld [vmem:[%s1 + $0x154] sm:$0xf]
  %v3164 = vld [vmem:[%s1 + $0x158] sm:$0xf]
  %v3165 = vld [vmem:[%s1 + $0x15c] sm:$0xf]
  %v3166 = vld [vmem:[%s1 + $0x160] sm:$0xf]
  %v3167 = vld [vmem:[%s1 + $0x164] sm:$0xf]
  %v3168 = vld [vmem:[%s1 + $0x168] sm:$0xf]
  %v3169 = vld [vmem:[%s1 + $0x16c] sm:$0xf]
  %v3170 = vld [vmem:[%s1 + $0x170] sm:$0xf]
  %v3171 = vld [vmem:[%s1 + $0x174] sm:$0xf]
  %v3172 = vld [vmem:[%s1 + $0x178] sm:$0xf]
  %v3173 = vld [vmem:[%s1 + $0x17c] sm:$0xf]
  %v3190 = vunpack.c.l.b16 %v3158
  %v3191 = vunpack.c.l.b16 %v3159
  %v3192 = vunpack.c.l.b16 %v3160
  %v3193 = vunpack.c.l.b16 %v3161
  %v3194 = vunpack.c.l.b16 %v3162
  %v3195 = vunpack.c.l.b16 %v3163
  %v3196 = vunpack.c.l.b16 %v3164
  %v3197 = vunpack.c.l.b16 %v3165
  %v3198 = vunpack.c.l.b16 %v3166
  %v3199 = vunpack.c.l.b16 %v3167
  %v3200 = vunpack.c.l.b16 %v3168
  %v3201 = vunpack.c.l.b16 %v3169
  %v3202 = vunpack.c.l.b16 %v3170
  %v3203 = vunpack.c.l.b16 %v3171
  %v3204 = vunpack.c.l.b16 %v3172
  %v3205 = vunpack.c.l.b16 %v3173
  %v3206 = vpack.c.b16 %v3191, %v3190
  %v3207 = vpack.c.b16 %v3193, %v3192
  %v3208 = vpack.c.b16 %v3195, %v3194
  %v3209 = vpack.c.b16 %v3197, %v3196
  %v3210 = vpack.c.b16 %v3199, %v3198
  %v3211 = vpack.c.b16 %v3201, %v3200
  %v3212 = vpack.c.b16 %v3203, %v3202
  %v3213 = vpack.c.b16 %v3205, %v3204
  %3222 = vmatprep.subr.bf16.mxu0 0
  %3223 = vmatpush1.bf16.msra.mxu0 %v3206
  %3224 = vmatprep.subr.bf16.mxu0 0
  %3225 = vmatpush1.bf16.msra.mxu0 %v3207
  %3226 = vmatprep.subr.bf16.mxu0 0
  %3227 = vmatpush1.bf16.msra.mxu0 %v3208
  %3228 = vmatprep.subr.bf16.mxu0 0
  %3229 = vmatpush1.bf16.msra.mxu0 %v3209
  %3230 = vmatprep.subr.bf16.mxu0 0
  %3231 = vmatpush1.bf16.msra.mxu0 %v3210
  %3232 = vmatprep.subr.bf16.mxu0 0
  %3233 = vmatpush1.bf16.msra.mxu0 %v3211
  %3234 = vmatprep.subr.bf16.mxu0 0
  %3235 = vmatpush1.bf16.msra.mxu0 %v3212
  %3236 = vmatprep.subr.bf16.mxu0 0
  %3237 = vmatpush1.bf16.msra.mxu0 %v3213
  %3238 = vmatprep.subr.bf16.mxu0 0
  %3239 = vmatpush1.bf16.msra.mxu0 0
  %3240 = vmatprep.subr.bf16.mxu0 0
  %3241 = vmatpush1.bf16.msra.mxu0 0
  %3242 = vmatprep.subr.bf16.mxu0 0
  %3243 = vmatpush1.bf16.msra.mxu0 0
  %3244 = vmatprep.subr.bf16.mxu0 0
  %3245 = vmatpush1.bf16.msra.mxu0 0
  %3246 = vmatprep.subr.bf16.mxu0 0
  %3247 = vmatpush1.bf16.msra.mxu0 0
  %3248 = vmatprep.subr.bf16.mxu0 0
  %3249 = vmatpush1.bf16.msra.mxu0 0
  %3250 = vmatprep.subr.bf16.mxu0 0
  %3251 = vmatpush1.bf16.msra.mxu0 0
  %3252 = vmatprep.subr.bf16.mxu0 0
  %3253 = vmatpush1.bf16.msra.mxu0 0
  %3254 = vmatprep.mubr.bf16.mxu0 0
  %3255 = vmatmul.mubr.bf16.gmra.mrb[0].mxu0 %v2972
  %v3256 = vpop.f32.mrb[0].mxu0
  %v3257 = vadd.f32 0.0, %v3256
  %v3258 = vpop.f32.mrb[0].mxu0
  %v3259 = vpop.f32.mrb[0].mxu0
  %v3260 = vadd.f32 0.0, %v3259
  %v3261 = vpop.f32.mrb[0].mxu0
  %3262 = vmatprep.mubr.bf16.mxu0 0
  %3263 = vmatmul.mubr.bf16.gmra.mrb[0].mxu0 %v2973
  %v3264 = vpop.f32.mrb[0].mxu0
  %v3265 = vadd.f32 0.0, %v3264
  %v3266 = vpop.f32.mrb[0].mxu0
  %v3267 = vpop.f32.mrb[0].mxu0
  %v3268 = vadd.f32 0.0, %v3267
  %v3269 = vpop.f32.mrb[0].mxu0
  %3270 = vmatprep.mubr.bf16.mxu0 0
  %3271 = vmatmul.mubr.bf16.gmra.mrb[0].mxu0 %v2974
  %v3272 = vpop.f32.mrb[0].mxu0
  %v3273 = vadd.f32 0.0, %v3272
  %v3274 = vpop.f32.mrb[0].mxu0
  %v3275 = vpop.f32.mrb[0].mxu0
  %v3276 = vadd.f32 0.0, %v3275
  %v3277 = vpop.f32.mrb[0].mxu0
  %3278 = vmatprep.mubr.bf16.mxu0 0
  %3279 = vmatmul.mubr.bf16.gmra.mrb[0].mxu0 %v2975
  %v3280 = vpop.f32.mrb[0].mxu0
  %v3281 = vadd.f32 0.0, %v3280
  %v3282 = vpop.f32.mrb[0].mxu0
  %v3283 = vpop.f32.mrb[0].mxu0
  %v3284 = vadd.f32 0.0, %v3283
  %v3285 = vpop.f32.mrb[0].mxu0
  %3286 = vmatprep.mubr.bf16.mxu0 0
  %3287 = vmatmul.mubr.bf16.gmra.mrb[0].mxu0 %v2976
  %v3288 = vpop.f32.mrb[0].mxu0
  %v3289 = vadd.f32 0.0, %v3288
  %v3290 = vpop.f32.mrb[0].mxu0
  %v3291 = vpop.f32.mrb[0].mxu0
  %v3292 = vadd.f32 0.0, %v3291
  %v3293 = vpop.f32.mrb[0].mxu0
  %3294 = vmatprep.mubr.bf16.mxu0 0
  %3295 = vmatmul.mubr.bf16.gmra.mrb[0].mxu0 %v2977
  %v3296 = vpop.f32.mrb[0].mxu0
  %v3297 = vadd.f32 0.0, %v3296
  %v3298 = vpop.f32.mrb[0].mxu0
  %v3299 = vpop.f32.mrb[0].mxu0
  %v3300 = vadd.f32 0.0, %v3299
  %v3301 = vpop.f32.mrb[0].mxu0
  %3302 = vmatprep.mubr.bf16.mxu0 0
  %3303 = vmatmul.mubr.bf16.gmra.mrb[0].mxu0 %v2978
  %v3304 = vpop.f32.mrb[0].mxu0
  %v3305 = vadd.f32 0.0, %v3304
  %v3306 = vpop.f32.mrb[0].mxu0
  %v3307 = vpop.f32.mrb[0].mxu0
  %v3308 = vadd.f32 0.0, %v3307
  %v3309 = vpop.f32.mrb[0].mxu0
  %3310 = vmatprep.mubr.bf16.mxu0 0
  %3311 = vmatmul.mubr.bf16.gmra.mrb[0].mxu0 %v2979
  %v3312 = vpop.f32.mrb[0].mxu0
  %v3313 = vadd.f32 0.0, %v3312
  %v3314 = vpop.f32.mrb[0].mxu0
  %v3315 = vpop.f32.mrb[0].mxu0
  %v3316 = vadd.f32 0.0, %v3315
  %v3317 = vpop.f32.mrb[0].mxu0
  %3318 = vdwg.mxu0
  %v3319 = vadd.f32 %v3142, %v3257
  %v3320 = vadd.f32 %v3143, %v3260
  %v3321 = vadd.f32 %v3144, %v3265
  %v3322 = vadd.f32 %v3145, %v3268
  %v3323 = vadd.f32 %v3146, %v3273
  %v3324 = vadd.f32 %v3147, %v3276
  %v3325 = vadd.f32 %v3148, %v3281
  %v3326 = vadd.f32 %v3149, %v3284
  %v3327 = vadd.f32 %v3150, %v3289
  %v3328 = vadd.f32 %v3151, %v3292
  %v3329 = vadd.f32 %v3152, %v3297
  %v3330 = vadd.f32 %v3153, %v3300
  %v3331 = vadd.f32 %v3154, %v3305
  %v3332 = vadd.f32 %v3155, %v3308
  %v3333 = vadd.f32 %v3156, %v3313
  %v3334 = vadd.f32 %v3157, %v3316
  %v3335 = vld [vmem:[%s1 + $0x200] sm:$0xf]
  %v3336 = vld [vmem:[%s1 + $0x204] sm:$0xf]
  %v3337 = vld [vmem:[%s1 + $0x208] sm:$0xf]
  %v3338 = vld [vmem:[%s1 + $0x20c] sm:$0xf]
  %v3339 = vld [vmem:[%s1 + $0x210] sm:$0xf]
  %v3340 = vld [vmem:[%s1 + $0x214] sm:$0xf]
  %v3341 = vld [vmem:[%s1 + $0x218] sm:$0xf]
  %v3342 = vld [vmem:[%s1 + $0x21c] sm:$0xf]
  %v3343 = vld [vmem:[%s1 + $0x220] sm:$0xf]
  %v3344 = vld [vmem:[%s1 + $0x224] sm:$0xf]
  %v3345 = vld [vmem:[%s1 + $0x228] sm:$0xf]
  %v3346 = vld [vmem:[%s1 + $0x22c] sm:$0xf]
  %v3347 = vld [vmem:[%s1 + $0x230] sm:$0xf]
  %v3348 = vld [vmem:[%s1 + $0x234] sm:$0xf]
  %v3349 = vld [vmem:[%s1 + $0x238] sm:$0xf]
  %v3350 = vld [vmem:[%s1 + $0x23c] sm:$0xf]
  %v3367 = vunpack.c.l.b16 %v3335
  %v3368 = vunpack.c.l.b16 %v3336
  %v3369 = vunpack.c.l.b16 %v3337
  %v3370 = vunpack.c.l.b16 %v3338
  %v3371 = vunpack.c.l.b16 %v3339
  %v3372 = vunpack.c.l.b16 %v3340
  %v3373 = vunpack.c.l.b16 %v3341
  %v3374 = vunpack.c.l.b16 %v3342
  %v3375 = vunpack.c.l.b16 %v3343
  %v3376 = vunpack.c.l.b16 %v3344
  %v3377 = vunpack.c.l.b16 %v3345
  %v3378 = vunpack.c.l.b16 %v3346
  %v3379 = vunpack.c.l.b16 %v3347
  %v3380 = vunpack.c.l.b16 %v3348
  %v3381 = vunpack.c.l.b16 %v3349
  %v3382 = vunpack.c.l.b16 %v3350
  %v3383 = vpack.c.b16 %v3368, %v3367
  %v3384 = vpack.c.b16 %v3370, %v3369
  %v3385 = vpack.c.b16 %v3372, %v3371
  %v3386 = vpack.c.b16 %v3374, %v3373
  %v3387 = vpack.c.b16 %v3376, %v3375
  %v3388 = vpack.c.b16 %v3378, %v3377
  %v3389 = vpack.c.b16 %v3380, %v3379
  %v3390 = vpack.c.b16 %v3382, %v3381
  %3399 = vmatprep.subr.bf16.mxu0 0
  %3400 = vmatpush1.bf16.msra.mxu0 %v3383
  %3401 = vmatprep.subr.bf16.mxu0 0
  %3402 = vmatpush1.bf16.msra.mxu0 %v3384
  %3403 = vmatprep.subr.bf16.mxu0 0
  %3404 = vmatpush1.bf16.msra.mxu0 %v3385
  %3405 = vmatprep.subr.bf16.mxu0 0
  %3406 = vmatpush1.bf16.msra.mxu0 %v3386
  %3407 = vmatprep.subr.bf16.mxu0 0
  %3408 = vmatpush1.bf16.msra.mxu0 %v3387
  %3409 = vmatprep.subr.bf16.mxu0 0
  %3410 = vmatpush1.bf16.msra.mxu0 %v3388
  %3411 = vmatprep.subr.bf16.mxu0 0
  %3412 = vmatpush1.bf16.msra.mxu0 %v3389
  %3413 = vmatprep.subr.bf16.mxu0 0
  %3414 = vmatpush1.bf16.msra.mxu0 %v3390
  %3415 = vmatprep.subr.bf16.mxu0 0
  %3416 = vmatpush1.bf16.msra.mxu0 0
  %3417 = vmatprep.subr.bf16.mxu0 0
  %3418 = vmatpush1.bf16.msra.mxu0 0
  %3419 = vmatprep.subr.bf16.mxu0 0
  %3420 = vmatpush1.bf16.msra.mxu0 0
  %3421 = vmatprep.subr.bf16.mxu0 0
  %3422 = vmatpush1.bf16.msra.mxu0 0
  %3423 = vmatprep.subr.bf16.mxu0 0
  %3424 = vmatpush1.bf16.msra.mxu0 0
  %3425 = vmatprep.subr.bf16.mxu0 0
  %3426 = vmatpush1.bf16.msra.mxu0 0
  %3427 = vmatprep.subr.bf16.mxu0 0
  %3428 = vmatpush1.bf16.msra.mxu0 0
  %3429 = vmatprep.subr.bf16.mxu0 0
  %3430 = vmatpush1.bf16.msra.mxu0 0
  %3431 = vmatprep.mubr.bf16.mxu0 0
  %3432 = vmatmul.mubr.bf16.gmra.mrb[0].mxu0 %v2973
  %v3433 = vpop.f32.mrb[0].mxu0
  %v3434 = vadd.f32 0.0, %v3433
  %v3435 = vpop.f32.mrb[0].mxu0
  %v3436 = vpop.f32.mrb[0].mxu0
  %v3437 = vadd.f32 0.0, %v3436
  %v3438 = vpop.f32.mrb[0].mxu0
  %3439 = vmatprep.mubr.bf16.mxu0 0
  %3440 = vmatmul.mubr.bf16.gmra.mrb[0].mxu0 %v2974
  %v3441 = vpop.f32.mrb[0].mxu0
  %v3442 = vadd.f32 0.0, %v3441
  %v3443 = vpop.f32.mrb[0].mxu0
  %v3444 = vpop.f32.mrb[0].mxu0
  %v3445 = vadd.f32 0.0, %v3444
  %v3446 = vpop.f32.mrb[0].mxu0
  %3447 = vmatprep.mubr.bf16.mxu0 0
  %3448 = vmatmul.mubr.bf16.gmra.mrb[0].mxu0 %v2975
  %v3449 = vpop.f32.mrb[0].mxu0
  %v3450 = vadd.f32 0.0, %v3449
  %v3451 = vpop.f32.mrb[0].mxu0
  %v3452 = vpop.f32.mrb[0].mxu0
  %v3453 = vadd.f32 0.0, %v3452
  %v3454 = vpop.f32.mrb[0].mxu0
  %3455 = vmatprep.mubr.bf16.mxu0 0
  %3456 = vmatmul.mubr.bf16.gmra.mrb[0].mxu0 %v2976
  %v3457 = vpop.f32.mrb[0].mxu0
  %v3458 = vadd.f32 0.0, %v3457
  %v3459 = vpop.f32.mrb[0].mxu0
  %v3460 = vpop.f32.mrb[0].mxu0
  %v3461 = vadd.f32 0.0, %v3460
  %v3462 = vpop.f32.mrb[0].mxu0
  %3463 = vmatprep.mubr.bf16.mxu0 0
  %3464 = vmatmul.mubr.bf16.gmra.mrb[0].mxu0 %v2977
  %v3465 = vpop.f32.mrb[0].mxu0
  %v3466 = vadd.f32 0.0, %v3465
  %v3467 = vpop.f32.mrb[0].mxu0
  %v3468 = vpop.f32.mrb[0].mxu0
  %v3469 = vadd.f32 0.0, %v3468
  %v3470 = vpop.f32.mrb[0].mxu0
  %3471 = vmatprep.mubr.bf16.mxu0 0
  %3472 = vmatmul.mubr.bf16.gmra.mrb[0].mxu0 %v2978
  %v3473 = vpop.f32.mrb[0].mxu0
  %v3474 = vadd.f32 0.0, %v3473
  %v3475 = vpop.f32.mrb[0].mxu0
  %v3476 = vpop.f32.mrb[0].mxu0
  %v3477 = vadd.f32 0.0, %v3476
  %v3478 = vpop.f32.mrb[0].mxu0
  %3479 = vmatprep.mubr.bf16.mxu0 0
  %3480 = vmatmul.mubr.bf16.gmra.mrb[0].mxu0 %v2979
  %v3481 = vpop.f32.mrb[0].mxu0
  %v3482 = vadd.f32 0.0, %v3481
  %v3483 = vpop.f32.mrb[0].mxu0
  %v3484 = vpop.f32.mrb[0].mxu0
  %v3485 = vadd.f32 0.0, %v3484
  %v3486 = vpop.f32.mrb[0].mxu0
  %3487 = vmatprep.mubr.bf16.mxu0 0
  %3488 = vmatmul.mubr.bf16.gmra.mrb[0].mxu0 %v2980
  %v3489 = vpop.f32.mrb[0].mxu0
  %v3490 = vadd.f32 0.0, %v3489
  %v3491 = vpop.f32.mrb[0].mxu0
  %v3492 = vpop.f32.mrb[0].mxu0
  %v3493 = vadd.f32 0.0, %v3492
  %v3494 = vpop.f32.mrb[0].mxu0
  %3495 = vdwg.mxu0
  %v3496 = vadd.f32 %v3319, %v3434
  %v3497 = vadd.f32 %v3320, %v3437
  %v3498 = vadd.f32 %v3321, %v3442
  %v3499 = vadd.f32 %v3322, %v3445
  %v3500 = vadd.f32 %v3323, %v3450
  %v3501 = vadd.f32 %v3324, %v3453
  %v3502 = vadd.f32 %v3325, %v3458
  %v3503 = vadd.f32 %v3326, %v3461
  %v3504 = vadd.f32 %v3327, %v3466
  %v3505 = vadd.f32 %v3328, %v3469
  %v3506 = vadd.f32 %v3329, %v3474
  %v3507 = vadd.f32 %v3330, %v3477
  %v3508 = vadd.f32 %v3331, %v3482
  %v3509 = vadd.f32 %v3332, %v3485
  %v3510 = vadd.f32 %v3333, %v3490
  %v3511 = vadd.f32 %v3334, %v3493
  %v3512 = vsel %vm1682, %v3496, 0.0
  %v3513 = vsel %vm1682, %v3497, 0.0
  %v3514 = vadd.f32 %v3512, %v3513
  %v3515 = vsel %vm1682, %v3498, 0.0
  %v3516 = vadd.f32 %v3514, %v3515
  %v3517 = vsel %vm1682, %v3499, 0.0
  %v3518 = vadd.f32 %v3516, %v3517
  %v3519 = vsel %vm1682, %v3500, 0.0
  %v3520 = vadd.f32 %v3518, %v3519
  %v3521 = vsel %vm1682, %v3501, 0.0
  %v3522 = vadd.f32 %v3520, %v3521
  %v3523 = vsel %vm1682, %v3502, 0.0
  %v3524 = vadd.f32 %v3522, %v3523
  %v3525 = vsel %vm1682, %v3503, 0.0
  %v3526 = vadd.f32 %v3524, %v3525
  %v3527 = vsel %vm1682, %v3504, 0.0
  %v3528 = vadd.f32 %v3526, %v3527
  %v3529 = vsel %vm1682, %v3505, 0.0
  %v3530 = vadd.f32 %v3528, %v3529
  %v3531 = vsel %vm1682, %v3506, 0.0
  %v3532 = vadd.f32 %v3530, %v3531
  %v3533 = vsel %vm1682, %v3507, 0.0
  %v3534 = vadd.f32 %v3532, %v3533
  %v3535 = vsel %vm1682, %v3508, 0.0
  %v3536 = vadd.f32 %v3534, %v3535
  %v3537 = vsel %vm1682, %v3509, 0.0
  %v3538 = vadd.f32 %v3536, %v3537
  %v3539 = vsel %vm1682, %v3510, 0.0
  %v3540 = vadd.f32 %v3538, %v3539
  %v3541 = vsel %vm1682, %v3511, 0.0
  %v3542 = vadd.f32 %v3540, %v3541
  %v3543 = vrot.slane %v3542, 4
  %v3544 = vadd.f32 %v3542, %v3543
  %v3545 = vrot.slane %v3544, 2
  %v3546 = vadd.f32 %v3544, %v3545
  %v3547 = vrot.slane %v3546, 1
  %v3548 = vadd.f32 %v3546, %v3547
  %v3549 = vmul.f32 %v3548, 0.0078125
  %v3550 = vmul.f32 %v3496, %v3496
  %v3551 = vmul.f32 %v3497, %v3497
  %v3552 = vmul.f32 %v3498, %v3498
  %v3553 = vmul.f32 %v3499, %v3499
  %v3554 = vmul.f32 %v3500, %v3500
  %v3555 = vmul.f32 %v3501, %v3501
  %v3556 = vmul.f32 %v3502, %v3502
  %v3557 = vmul.f32 %v3503, %v3503
  %v3558 = vmul.f32 %v3504, %v3504
  %v3559 = vmul.f32 %v3505, %v3505
  %v3560 = vmul.f32 %v3506, %v3506
  %v3561 = vmul.f32 %v3507, %v3507
  %v3562 = vmul.f32 %v3508, %v3508
  %v3563 = vmul.f32 %v3509, %v3509
  %v3564 = vmul.f32 %v3510, %v3510
  %v3565 = vmul.f32 %v3511, %v3511
  %v3566 = vsel %vm1682, %v3550, 0.0
  %v3567 = vsel %vm1682, %v3551, 0.0
  %v3568 = vadd.f32 %v3566, %v3567
  %v3569 = vsel %vm1682, %v3552, 0.0
  %v3570 = vadd.f32 %v3568, %v3569
  %v3571 = vsel %vm1682, %v3553, 0.0
  %v3572 = vadd.f32 %v3570, %v3571
  %v3573 = vsel %vm1682, %v3554, 0.0
  %v3574 = vadd.f32 %v3572, %v3573
  %v3575 = vsel %vm1682, %v3555, 0.0
  %v3576 = vadd.f32 %v3574, %v3575
  %v3577 = vsel %vm1682, %v3556, 0.0
  %v3578 = vadd.f32 %v3576, %v3577
  %v3579 = vsel %vm1682, %v3557, 0.0
  %v3580 = vadd.f32 %v3578, %v3579
  %v3581 = vsel %vm1682, %v3558, 0.0
  %v3582 = vadd.f32 %v3580, %v3581
  %v3583 = vsel %vm1682, %v3559, 0.0
  %v3584 = vadd.f32 %v3582, %v3583
  %v3585 = vsel %vm1682, %v3560, 0.0
  %v3586 = vadd.f32 %v3584, %v3585
  %v3587 = vsel %vm1682, %v3561, 0.0
  %v3588 = vadd.f32 %v3586, %v3587
  %v3589 = vsel %vm1682, %v3562, 0.0
  %v3590 = vadd.f32 %v3588, %v3589
  %v3591 = vsel %vm1682, %v3563, 0.0
  %v3592 = vadd.f32 %v3590, %v3591
  %v3593 = vsel %vm1682, %v3564, 0.0
  %v3594 = vadd.f32 %v3592, %v3593
  %v3595 = vsel %vm1682, %v3565, 0.0
  %v3596 = vadd.f32 %v3594, %v3595
  %v3597 = vrot.slane %v3596, 4
  %v3598 = vadd.f32 %v3596, %v3597
  %v3599 = vrot.slane %v3598, 2
  %v3600 = vadd.f32 %v3598, %v3599
  %v3601 = vrot.slane %v3600, 1
  %v3602 = vadd.f32 %v3600, %v3601
  %v3603 = vmul.f32 %v3602, 0.0078125
  %v3604 = vmul.f32 %v3549, %v3549
  %v3605 = vsub.f32 %v3603, %v3604
  %v3606 = vsub.f32 %v3496, %v3549
  %v3607 = vsub.f32 %v3497, %v3549
  %v3608 = vsub.f32 %v3498, %v3549
  %v3609 = vsub.f32 %v3499, %v3549
  %v3610 = vsub.f32 %v3500, %v3549
  %v3611 = vsub.f32 %v3501, %v3549
  %v3612 = vsub.f32 %v3502, %v3549
  %v3613 = vsub.f32 %v3503, %v3549
  %v3614 = vsub.f32 %v3504, %v3549
  %v3615 = vsub.f32 %v3505, %v3549
  %v3616 = vsub.f32 %v3506, %v3549
  %v3617 = vsub.f32 %v3507, %v3549
  %v3618 = vsub.f32 %v3508, %v3549
  %v3619 = vsub.f32 %v3509, %v3549
  %v3620 = vsub.f32 %v3510, %v3549
  %v3621 = vsub.f32 %v3511, %v3549
  %v3622 = vadd.f32 %v3605, 1e-05
  %v3623 = vrsqrt.pop %v3622
  %v3624 = vmul.f32 %v3606, %v3623
  %v3625 = vmul.f32 %v3607, %v3623
  %v3626 = vmul.f32 %v3608, %v3623
  %v3627 = vmul.f32 %v3609, %v3623
  %v3628 = vmul.f32 %v3610, %v3623
  %v3629 = vmul.f32 %v3611, %v3623
  %v3630 = vmul.f32 %v3612, %v3623
  %v3631 = vmul.f32 %v3613, %v3623
  %v3632 = vmul.f32 %v3614, %v3623
  %v3633 = vmul.f32 %v3615, %v3623
  %v3634 = vmul.f32 %v3616, %v3623
  %v3635 = vmul.f32 %v3617, %v3623
  %v3636 = vmul.f32 %v3618, %v3623
  %v3637 = vmul.f32 %v3619, %v3623
  %v3638 = vmul.f32 %v3620, %v3623
  %v3639 = vmul.f32 %v3621, %v3623
  %v3640 = vmax.f32 %v3624, 0.0
  %v3641 = vmax.f32 %v3625, 0.0
  %v3642 = vmax.f32 %v3626, 0.0
  %v3643 = vmax.f32 %v3627, 0.0
  %v3644 = vmax.f32 %v3628, 0.0
  %v3645 = vmax.f32 %v3629, 0.0
  %v3646 = vmax.f32 %v3630, 0.0
  %v3647 = vmax.f32 %v3631, 0.0
  %v3648 = vmax.f32 %v3632, 0.0
  %v3649 = vmax.f32 %v3633, 0.0
  %v3650 = vmax.f32 %v3634, 0.0
  %v3651 = vmax.f32 %v3635, 0.0
  %v3652 = vmax.f32 %v3636, 0.0
  %v3653 = vmax.f32 %v3637, 0.0
  %v3654 = vmax.f32 %v3638, 0.0
  %v3655 = vmax.f32 %v3639, 0.0
  %v3656 = vpack.c.bf16 %v3641, %v3640
  %v3657 = vpack.c.bf16 %v3643, %v3642
  %v3658 = vpack.c.bf16 %v3645, %v3644
  %v3659 = vpack.c.bf16 %v3647, %v3646
  %v3660 = vpack.c.bf16 %v3649, %v3648
  %v3661 = vpack.c.bf16 %v3651, %v3650
  %v3662 = vpack.c.bf16 %v3653, %v3652
  %v3663 = vpack.c.bf16 %v3655, %v3654
  %3664 = vst.msk [vmem:[#allocation2 + $0x20] sm:$0xff] %vm1682, %v3656
  %3666 = vrot.lane.b32.xlu0 %v3657, 64
  %v3667 = vpop.permute.xlu0 %3666
  %3669 = vst.msk [vmem:[#allocation2 + $0x20] sm:$0xff] %vm1840, %v3667
  %3670 = vst.msk [vmem:[#allocation2 + $0x28] sm:$0xff] %vm1682, %v3658
  %3672 = vrot.lane.b32.xlu0 %v3659, 64
  %v3673 = vpop.permute.xlu0 %3672
  %3675 = vst.msk [vmem:[#allocation2 + $0x28] sm:$0xff] %vm1840, %v3673
  %3676 = vst.msk [vmem:[#allocation2 + $0x30] sm:$0xff] %vm1682, %v3660
  %3678 = vrot.lane.b32.xlu0 %v3661, 64
  %v3679 = vpop.permute.xlu0 %3678
  %3681 = vst.msk [vmem:[#allocation2 + $0x30] sm:$0xff] %vm1840, %v3679
  %3682 = vst.msk [vmem:[#allocation2 + $0x38] sm:$0xff] %vm1682, %v3662
  %3684 = vrot.lane.b32.xlu0 %v3663, 64
  %v3685 = vpop.permute.xlu0 %3684
  %3687 = vst.msk [vmem:[#allocation2 + $0x38] sm:$0xff] %vm1840, %v3685
  %v3688 = vld [vmem:[%s2] sm:$0xf]
  %v3689 = vld [vmem:[%s2 + $0x4] sm:$0xf]
  %v3690 = vld [vmem:[%s2 + $0x8] sm:$0xf]
  %v3691 = vld [vmem:[%s2 + $0xc] sm:$0xf]
  %v3692 = vld [vmem:[%s2 + $0x10] sm:$0xf]
  %v3693 = vld [vmem:[%s2 + $0x14] sm:$0xf]
  %v3694 = vld [vmem:[%s2 + $0x18] sm:$0xf]
  %v3695 = vld [vmem:[%s2 + $0x1c] sm:$0xf]
  %v3696 = vld [vmem:[%s2 + $0x20] sm:$0xf]
  %v3697 = vld [vmem:[%s2 + $0x24] sm:$0xf]
  %v3698 = vld [vmem:[%s2 + $0x28] sm:$0xf]
  %v3699 = vld [vmem:[%s2 + $0x2c] sm:$0xf]
  %v3700 = vld [vmem:[%s2 + $0x30] sm:$0xf]
  %v3701 = vld [vmem:[%s2 + $0x34] sm:$0xf]
  %v3702 = vld [vmem:[%s2 + $0x38] sm:$0xf]
  %v3703 = vld [vmem:[%s2 + $0x3c] sm:$0xf]
  %v3704 = vld [vmem:[#allocation2] sm:$0xff]
  %v3705 = vld [vmem:[#allocation2 + $0x8] sm:$0xff]
  %v3706 = vld [vmem:[#allocation2 + $0x10] sm:$0xff]
  %v3707 = vld [vmem:[#allocation2 + $0x18] sm:$0xff]
  %v3708 = vld [vmem:[#allocation2 + $0x20] sm:$0xff]
  %v3709 = vld [vmem:[#allocation2 + $0x28] sm:$0xff]
  %v3710 = vld [vmem:[#allocation2 + $0x30] sm:$0xff]
  %v3711 = vld [vmem:[#allocation2 + $0x38] sm:$0xff]
  %v3712 = vld [vmem:[%s3] sm:$0xff]
  %v3713 = vld [vmem:[%s3 + $0x8] sm:$0xff]
  %v3714 = vld [vmem:[%s3 + $0x10] sm:$0xff]
  %v3715 = vld [vmem:[%s3 + $0x18] sm:$0xff]
  %v3716 = vld [vmem:[%s3 + $0x20] sm:$0xff]
  %v3717 = vld [vmem:[%s3 + $0x28] sm:$0xff]
  %v3718 = vld [vmem:[%s3 + $0x30] sm:$0xff]
  %v3719 = vld [vmem:[%s3 + $0x38] sm:$0xff]
  %v3720 = vld [vmem:[%s3 + $0x40] sm:$0xff]
  %v3721 = vld [vmem:[%s3 + $0x48] sm:$0xff]
  %v3722 = vld [vmem:[%s3 + $0x50] sm:$0xff]
  %v3723 = vld [vmem:[%s3 + $0x58] sm:$0xff]
  %v3724 = vld [vmem:[%s3 + $0x60] sm:$0xff]
  %v3725 = vld [vmem:[%s3 + $0x68] sm:$0xff]
  %v3726 = vld [vmem:[%s3 + $0x70] sm:$0xff]
  %v3727 = vld [vmem:[%s3 + $0x78] sm:$0xff]
  %3729 = vset.pattern.permute.xlu0 0
  %3730 = vperm.xlu0 %3729, %v3712
  %v3731 = vpop.permute.xlu0 %3730
  %3734 = vset.pattern.permute.xlu0 0
  %3735 = vperm.xlu0 %3734, %v3713
  %v3736 = vpop.permute.xlu0 %3735
  %3739 = vset.pattern.permute.xlu0 0
  %3740 = vperm.xlu0 %3739, %v3714
  %v3741 = vpop.permute.xlu0 %3740
  %3744 = vset.pattern.permute.xlu0 0
  %3745 = vperm.xlu0 %3744, %v3715
  %v3746 = vpop.permute.xlu0 %3745
  %3749 = vset.pattern.permute.xlu0 0
  %3750 = vperm.xlu0 %3749, %v3716
  %v3751 = vpop.permute.xlu0 %3750
  %3754 = vset.pattern.permute.xlu0 0
  %3755 = vperm.xlu0 %3754, %v3717
  %v3756 = vpop.permute.xlu0 %3755
  %3759 = vset.pattern.permute.xlu0 0
  %3760 = vperm.xlu0 %3759, %v3718
  %v3761 = vpop.permute.xlu0 %3760
  %3764 = vset.pattern.permute.xlu0 0
  %3765 = vperm.xlu0 %3764, %v3719
  %v3766 = vpop.permute.xlu0 %3765
  %3769 = vset.pattern.permute.xlu0 0
  %3770 = vperm.xlu0 %3769, %v3720
  %v3771 = vpop.permute.xlu0 %3770
  %3774 = vset.pattern.permute.xlu0 0
  %3775 = vperm.xlu0 %3774, %v3721
  %v3776 = vpop.permute.xlu0 %3775
  %3779 = vset.pattern.permute.xlu0 0
  %3780 = vperm.xlu0 %3779, %v3722
  %v3781 = vpop.permute.xlu0 %3780
  %3784 = vset.pattern.permute.xlu0 0
  %3785 = vperm.xlu0 %3784, %v3723
  %v3786 = vpop.permute.xlu0 %3785
  %3789 = vset.pattern.permute.xlu0 0
  %3790 = vperm.xlu0 %3789, %v3724
  %v3791 = vpop.permute.xlu0 %3790
  %3794 = vset.pattern.permute.xlu0 0
  %3795 = vperm.xlu0 %3794, %v3725
  %v3796 = vpop.permute.xlu0 %3795
  %3799 = vset.pattern.permute.xlu0 0
  %3800 = vperm.xlu0 %3799, %v3726
  %v3801 = vpop.permute.xlu0 %3800
  %3804 = vset.pattern.permute.xlu0 0
  %3805 = vperm.xlu0 %3804, %v3727
  %v3806 = vpop.permute.xlu0 %3805
  %v3824 = vunpack.c.l.b16 %v3688
  %v3825 = vunpack.c.l.b16 %v3689
  %v3826 = vunpack.c.l.b16 %v3690
  %v3827 = vunpack.c.l.b16 %v3691
  %v3828 = vunpack.c.l.b16 %v3692
  %v3829 = vunpack.c.l.b16 %v3693
  %v3830 = vunpack.c.l.b16 %v3694
  %v3831 = vunpack.c.l.b16 %v3695
  %v3832 = vunpack.c.l.b16 %v3696
  %v3833 = vunpack.c.l.b16 %v3697
  %v3834 = vunpack.c.l.b16 %v3698
  %v3835 = vunpack.c.l.b16 %v3699
  %v3836 = vunpack.c.l.b16 %v3700
  %v3837 = vunpack.c.l.b16 %v3701
  %v3838 = vunpack.c.l.b16 %v3702
  %v3839 = vunpack.c.l.b16 %v3703
  %v3840 = vpack.c.b16 %v3825, %v3824
  %v3841 = vpack.c.b16 %v3827, %v3826
  %v3842 = vpack.c.b16 %v3829, %v3828
  %v3843 = vpack.c.b16 %v3831, %v3830
  %v3844 = vpack.c.b16 %v3833, %v3832
  %v3845 = vpack.c.b16 %v3835, %v3834
  %v3846 = vpack.c.b16 %v3837, %v3836
  %v3847 = vpack.c.b16 %v3839, %v3838
  %vm3848 = vcmask 130048
  %v3850 = vsel %vm3848, %v3840, 0
  %v3853 = vsel %vm3848, %v3841, 0
  %v3856 = vsel %vm3848, %v3842, 0
  %v3859 = vsel %vm3848, %v3843, 0
  %v3862 = vsel %vm3848, %v3844, 0
  %v3865 = vsel %vm3848, %v3845, 0
  %v3868 = vsel %vm3848, %v3846, 0
  %v3871 = vsel %vm3848, %v3847, 0
  %3873 = vmatprep.subr.bf16.mxu0 %v3705
  %3874 = vmatpush1.bf16.msra.mxu0 %v3704
  %3875 = vmatprep.subr.bf16.mxu0 0
  %3876 = vmatpush1.bf16.msra.mxu0 0
  %3877 = vmatprep.subr.bf16.mxu0 0
  %3878 = vmatpush1.bf16.msra.mxu0 0
  %3879 = vmatprep.subr.bf16.mxu0 0
  %3880 = vmatpush1.bf16.msra.mxu0 0
  %3881 = vmatprep.subr.bf16.mxu0 0
  %3882 = vmatpush1.bf16.msra.mxu0 0
  %3883 = vmatprep.subr.bf16.mxu0 0
  %3884 = vmatpush1.bf16.msra.mxu0 0
  %3885 = vmatprep.subr.bf16.mxu0 0
  %3886 = vmatpush1.bf16.msra.mxu0 0
  %3887 = vmatprep.subr.bf16.mxu0 0
  %3888 = vmatpush1.bf16.msra.mxu0 0
  %3889 = vmatprep.subr.bf16.mxu0 0
  %3890 = vmatpush1.bf16.msra.mxu0 0
  %3891 = vmatprep.subr.bf16.mxu0 0
  %3892 = vmatpush1.bf16.msra.mxu0 0
  %3893 = vmatprep.subr.bf16.mxu0 0
  %3894 = vmatpush1.bf16.msra.mxu0 0
  %3895 = vmatprep.subr.bf16.mxu0 0
  %3896 = vmatpush1.bf16.msra.mxu0 0
  %3897 = vmatprep.subr.bf16.mxu0 0
  %3898 = vmatpush1.bf16.msra.mxu0 0
  %3899 = vmatprep.subr.bf16.mxu0 0
  %3900 = vmatpush1.bf16.msra.mxu0 0
  %3901 = vmatprep.subr.bf16.mxu0 0
  %3902 = vmatpush1.bf16.msra.mxu0 0
  %3903 = vmatprep.subr.bf16.mxu0 0
  %3904 = vmatpush1.bf16.msra.mxu0 0
  %3905 = vmatprep.mubr.bf16.mxu0 0
  %3906 = vmatmul.mubr.bf16.gmra.mrb[0].mxu0 %v3850
  %v3907 = vpop.f32.mrb[0].mxu0
  %v3908 = vadd.f32 %v3731, %v3907
  %v3909 = vpop.f32.mrb[0].mxu0
  %v3910 = vadd.f32 %v3731, %v3909
  %v3911 = vpop.f32.mrb[0].mxu0
  %v3912 = vadd.f32 %v3736, %v3911
  %v3913 = vpop.f32.mrb[0].mxu0
  %v3914 = vadd.f32 %v3736, %v3913
  %3915 = vmatprep.mubr.bf16.mxu0 0
  %3916 = vmatmul.mubr.bf16.gmra.mrb[0].mxu0 %v3853
  %v3917 = vpop.f32.mrb[0].mxu0
  %v3918 = vadd.f32 %v3741, %v3917
  %v3919 = vpop.f32.mrb[0].mxu0
  %v3920 = vadd.f32 %v3741, %v3919
  %v3921 = vpop.f32.mrb[0].mxu0
  %v3922 = vadd.f32 %v3746, %v3921
  %v3923 = vpop.f32.mrb[0].mxu0
  %v3924 = vadd.f32 %v3746, %v3923
  %3925 = vmatprep.mubr.bf16.mxu0 0
  %3926 = vmatmul.mubr.bf16.gmra.mrb[0].mxu0 %v3856
  %v3927 = vpop.f32.mrb[0].mxu0
  %v3928 = vadd.f32 %v3751, %v3927
  %v3929 = vpop.f32.mrb[0].mxu0
  %v3930 = vadd.f32 %v3751, %v3929
  %v3931 = vpop.f32.mrb[0].mxu0
  %v3932 = vadd.f32 %v3756, %v3931
  %v3933 = vpop.f32.mrb[0].mxu0
  %v3934 = vadd.f32 %v3756, %v3933
  %3935 = vmatprep.mubr.bf16.mxu0 0
  %3936 = vmatmul.mubr.bf16.gmra.mrb[0].mxu0 %v3859
  %v3937 = vpop.f32.mrb[0].mxu0
  %v3938 = vadd.f32 %v3761, %v3937
  %v3939 = vpop.f32.mrb[0].mxu0
  %v3940 = vadd.f32 %v3761, %v3939
  %v3941 = vpop.f32.mrb[0].mxu0
  %v3942 = vadd.f32 %v3766, %v3941
  %v3943 = vpop.f32.mrb[0].mxu0
  %v3944 = vadd.f32 %v3766, %v3943
  %3945 = vmatprep.mubr.bf16.mxu0 0
  %3946 = vmatmul.mubr.bf16.gmra.mrb[0].mxu0 %v3862
  %v3947 = vpop.f32.mrb[0].mxu0
  %v3948 = vadd.f32 %v3771, %v3947
  %v3949 = vpop.f32.mrb[0].mxu0
  %v3950 = vadd.f32 %v3771, %v3949
  %v3951 = vpop.f32.mrb[0].mxu0
  %v3952 = vadd.f32 %v3776, %v3951
  %v3953 = vpop.f32.mrb[0].mxu0
  %v3954 = vadd.f32 %v3776, %v3953
  %3955 = vmatprep.mubr.bf16.mxu0 0
  %3956 = vmatmul.mubr.bf16.gmra.mrb[0].mxu0 %v3865
  %v3957 = vpop.f32.mrb[0].mxu0
  %v3958 = vadd.f32 %v3781, %v3957
  %v3959 = vpop.f32.mrb[0].mxu0
  %v3960 = vadd.f32 %v3781, %v3959
  %v3961 = vpop.f32.mrb[0].mxu0
  %v3962 = vadd.f32 %v3786, %v3961
  %v3963 = vpop.f32.mrb[0].mxu0
  %v3964 = vadd.f32 %v3786, %v3963
  %3965 = vmatprep.mubr.bf16.mxu0 0
  %3966 = vmatmul.mubr.bf16.gmra.mrb[0].mxu0 %v3868
  %v3967 = vpop.f32.mrb[0].mxu0
  %v3968 = vadd.f32 %v3791, %v3967
  %v3969 = vpop.f32.mrb[0].mxu0
  %v3970 = vadd.f32 %v3791, %v3969
  %v3971 = vpop.f32.mrb[0].mxu0
  %v3972 = vadd.f32 %v3796, %v3971
  %v3973 = vpop.f32.mrb[0].mxu0
  %v3974 = vadd.f32 %v3796, %v3973
  %3975 = vmatprep.mubr.bf16.mxu0 0
  %3976 = vmatmul.mubr.bf16.gmra.mrb[0].mxu0 %v3871
  %v3977 = vpop.f32.mrb[0].mxu0
  %v3978 = vadd.f32 %v3801, %v3977
  %v3979 = vpop.f32.mrb[0].mxu0
  %v3980 = vadd.f32 %v3801, %v3979
  %v3981 = vpop.f32.mrb[0].mxu0
  %v3982 = vadd.f32 %v3806, %v3981
  %v3983 = vpop.f32.mrb[0].mxu0
  %v3984 = vadd.f32 %v3806, %v3983
  %3985 = vdwg.mxu0
  %3986 = vmatprep.subr.bf16.mxu0 %v3707
  %3987 = vmatpush1.bf16.msra.mxu0 %v3706
  %3988 = vmatprep.subr.bf16.mxu0 0
  %3989 = vmatpush1.bf16.msra.mxu0 0
  %3990 = vmatprep.subr.bf16.mxu0 0
  %3991 = vmatpush1.bf16.msra.mxu0 0
  %3992 = vmatprep.subr.bf16.mxu0 0
  %3993 = vmatpush1.bf16.msra.mxu0 0
  %3994 = vmatprep.subr.bf16.mxu0 0
  %3995 = vmatpush1.bf16.msra.mxu0 0
  %3996 = vmatprep.subr.bf16.mxu0 0
  %3997 = vmatpush1.bf16.msra.mxu0 0
  %3998 = vmatprep.subr.bf16.mxu0 0
  %3999 = vmatpush1.bf16.msra.mxu0 0
  %4000 = vmatprep.subr.bf16.mxu0 0
  %4001 = vmatpush1.bf16.msra.mxu0 0
  %4002 = vmatprep.subr.bf16.mxu0 0
  %4003 = vmatpush1.bf16.msra.mxu0 0
  %4004 = vmatprep.subr.bf16.mxu0 0
  %4005 = vmatpush1.bf16.msra.mxu0 0
  %4006 = vmatprep.subr.bf16.mxu0 0
  %4007 = vmatpush1.bf16.msra.mxu0 0
  %4008 = vmatprep.subr.bf16.mxu0 0
  %4009 = vmatpush1.bf16.msra.mxu0 0
  %4010 = vmatprep.subr.bf16.mxu0 0
  %4011 = vmatpush1.bf16.msra.mxu0 0
  %4012 = vmatprep.subr.bf16.mxu0 0
  %4013 = vmatpush1.bf16.msra.mxu0 0
  %4014 = vmatprep.subr.bf16.mxu0 0
  %4015 = vmatpush1.bf16.msra.mxu0 0
  %4016 = vmatprep.subr.bf16.mxu0 0
  %4017 = vmatpush1.bf16.msra.mxu0 0
  %4018 = vmatprep.mubr.bf16.mxu0 0
  %4019 = vmatmul.mubr.bf16.gmra.mrb[0].mxu0 %v3850
  %v4020 = vpop.f32.mrb[0].mxu0
  %v4021 = vadd.f32 %v3731, %v4020
  %v4022 = vpop.f32.mrb[0].mxu0
  %v4023 = vadd.f32 %v3731, %v4022
  %v4024 = vpop.f32.mrb[0].mxu0
  %v4025 = vadd.f32 %v3736, %v4024
  %v4026 = vpop.f32.mrb[0].mxu0
  %v4027 = vadd.f32 %v3736, %v4026
  %4028 = vmatprep.mubr.bf16.mxu0 0
  %4029 = vmatmul.mubr.bf16.gmra.mrb[0].mxu0 %v3853
  %v4030 = vpop.f32.mrb[0].mxu0
  %v4031 = vadd.f32 %v3741, %v4030
  %v4032 = vpop.f32.mrb[0].mxu0
  %v4033 = vadd.f32 %v3741, %v4032
  %v4034 = vpop.f32.mrb[0].mxu0
  %v4035 = vadd.f32 %v3746, %v4034
  %v4036 = vpop.f32.mrb[0].mxu0
  %v4037 = vadd.f32 %v3746, %v4036
  %4038 = vmatprep.mubr.bf16.mxu0 0
  %4039 = vmatmul.mubr.bf16.gmra.mrb[0].mxu0 %v3856
  %v4040 = vpop.f32.mrb[0].mxu0
  %v4041 = vadd.f32 %v3751, %v4040
  %v4042 = vpop.f32.mrb[0].mxu0
  %v4043 = vadd.f32 %v3751, %v4042
  %v4044 = vpop.f32.mrb[0].mxu0
  %v4045 = vadd.f32 %v3756, %v4044
  %v4046 = vpop.f32.mrb[0].mxu0
  %v4047 = vadd.f32 %v3756, %v4046
  %4048 = vmatprep.mubr.bf16.mxu0 0
  %4049 = vmatmul.mubr.bf16.gmra.mrb[0].mxu0 %v3859
  %v4050 = vpop.f32.mrb[0].mxu0
  %v4051 = vadd.f32 %v3761, %v4050
  %v4052 = vpop.f32.mrb[0].mxu0
  %v4053 = vadd.f32 %v3761, %v4052
  %v4054 = vpop.f32.mrb[0].mxu0
  %v4055 = vadd.f32 %v3766, %v4054
  %v4056 = vpop.f32.mrb[0].mxu0
  %v4057 = vadd.f32 %v3766, %v4056
  %4058 = vmatprep.mubr.bf16.mxu0 0
  %4059 = vmatmul.mubr.bf16.gmra.mrb[0].mxu0 %v3862
  %v4060 = vpop.f32.mrb[0].mxu0
  %v4061 = vadd.f32 %v3771, %v4060
  %v4062 = vpop.f32.mrb[0].mxu0
  %v4063 = vadd.f32 %v3771, %v4062
  %v4064 = vpop.f32.mrb[0].mxu0
  %v4065 = vadd.f32 %v3776, %v4064
  %v4066 = vpop.f32.mrb[0].mxu0
  %v4067 = vadd.f32 %v3776, %v4066
  %4068 = vmatprep.mubr.bf16.mxu0 0
  %4069 = vmatmul.mubr.bf16.gmra.mrb[0].mxu0 %v3865
  %v4070 = vpop.f32.mrb[0].mxu0
  %v4071 = vadd.f32 %v3781, %v4070
  %v4072 = vpop.f32.mrb[0].mxu0
  %v4073 = vadd.f32 %v3781, %v4072
  %v4074 = vpop.f32.mrb[0].mxu0
  %v4075 = vadd.f32 %v3786, %v4074
  %v4076 = vpop.f32.mrb[0].mxu0
  %v4077 = vadd.f32 %v3786, %v4076
  %4078 = vmatprep.mubr.bf16.mxu0 0
  %4079 = vmatmul.mubr.bf16.gmra.mrb[0].mxu0 %v3868
  %v4080 = vpop.f32.mrb[0].mxu0
  %v4081 = vadd.f32 %v3791, %v4080
  %v4082 = vpop.f32.mrb[0].mxu0
  %v4083 = vadd.f32 %v3791, %v4082
  %v4084 = vpop.f32.mrb[0].mxu0
  %v4085 = vadd.f32 %v3796, %v4084
  %v4086 = vpop.f32.mrb[0].mxu0
  %v4087 = vadd.f32 %v3796, %v4086
  %4088 = vmatprep.mubr.bf16.mxu0 0
  %4089 = vmatmul.mubr.bf16.gmra.mrb[0].mxu0 %v3871
  %v4090 = vpop.f32.mrb[0].mxu0
  %v4091 = vadd.f32 %v3801, %v4090
  %v4092 = vpop.f32.mrb[0].mxu0
  %v4093 = vadd.f32 %v3801, %v4092
  %v4094 = vpop.f32.mrb[0].mxu0
  %v4095 = vadd.f32 %v3806, %v4094
  %v4096 = vpop.f32.mrb[0].mxu0
  %v4097 = vadd.f32 %v3806, %v4096
  %4098 = vdwg.mxu0
  %4099 = vmatprep.subr.bf16.mxu0 %v3709
  %4100 = vmatpush1.bf16.msra.mxu0 %v3708
  %4101 = vmatprep.subr.bf16.mxu0 0
  %4102 = vmatpush1.bf16.msra.mxu0 0
  %4103 = vmatprep.subr.bf16.mxu0 0
  %4104 = vmatpush1.bf16.msra.mxu0 0
  %4105 = vmatprep.subr.bf16.mxu0 0
  %4106 = vmatpush1.bf16.msra.mxu0 0
  %4107 = vmatprep.subr.bf16.mxu0 0
  %4108 = vmatpush1.bf16.msra.mxu0 0
  %4109 = vmatprep.subr.bf16.mxu0 0
  %4110 = vmatpush1.bf16.msra.mxu0 0
  %4111 = vmatprep.subr.bf16.mxu0 0
  %4112 = vmatpush1.bf16.msra.mxu0 0
  %4113 = vmatprep.subr.bf16.mxu0 0
  %4114 = vmatpush1.bf16.msra.mxu0 0
  %4115 = vmatprep.subr.bf16.mxu0 0
  %4116 = vmatpush1.bf16.msra.mxu0 0
  %4117 = vmatprep.subr.bf16.mxu0 0
  %4118 = vmatpush1.bf16.msra.mxu0 0
  %4119 = vmatprep.subr.bf16.mxu0 0
  %4120 = vmatpush1.bf16.msra.mxu0 0
  %4121 = vmatprep.subr.bf16.mxu0 0
  %4122 = vmatpush1.bf16.msra.mxu0 0
  %4123 = vmatprep.subr.bf16.mxu0 0
  %4124 = vmatpush1.bf16.msra.mxu0 0
  %4125 = vmatprep.subr.bf16.mxu0 0
  %4126 = vmatpush1.bf16.msra.mxu0 0
  %4127 = vmatprep.subr.bf16.mxu0 0
  %4128 = vmatpush1.bf16.msra.mxu0 0
  %4129 = vmatprep.subr.bf16.mxu0 0
  %4130 = vmatpush1.bf16.msra.mxu0 0
  %4131 = vmatprep.mubr.bf16.mxu0 0
  %4132 = vmatmul.mubr.bf16.gmra.mrb[0].mxu0 %v3850
  %v4133 = vpop.f32.mrb[0].mxu0
  %v4134 = vadd.f32 %v3731, %v4133
  %v4135 = vpop.f32.mrb[0].mxu0
  %v4136 = vadd.f32 %v3731, %v4135
  %v4137 = vpop.f32.mrb[0].mxu0
  %v4138 = vadd.f32 %v3736, %v4137
  %v4139 = vpop.f32.mrb[0].mxu0
  %v4140 = vadd.f32 %v3736, %v4139
  %4141 = vmatprep.mubr.bf16.mxu0 0
  %4142 = vmatmul.mubr.bf16.gmra.mrb[0].mxu0 %v3853
  %v4143 = vpop.f32.mrb[0].mxu0
  %v4144 = vadd.f32 %v3741, %v4143
  %v4145 = vpop.f32.mrb[0].mxu0
  %v4146 = vadd.f32 %v3741, %v4145
  %v4147 = vpop.f32.mrb[0].mxu0
  %v4148 = vadd.f32 %v3746, %v4147
  %v4149 = vpop.f32.mrb[0].mxu0
  %v4150 = vadd.f32 %v3746, %v4149
  %4151 = vmatprep.mubr.bf16.mxu0 0
  %4152 = vmatmul.mubr.bf16.gmra.mrb[0].mxu0 %v3856
  %v4153 = vpop.f32.mrb[0].mxu0
  %v4154 = vadd.f32 %v3751, %v4153
  %v4155 = vpop.f32.mrb[0].mxu0
  %v4156 = vadd.f32 %v3751, %v4155
  %v4157 = vpop.f32.mrb[0].mxu0
  %v4158 = vadd.f32 %v3756, %v4157
  %v4159 = vpop.f32.mrb[0].mxu0
  %v4160 = vadd.f32 %v3756, %v4159
  %4161 = vmatprep.mubr.bf16.mxu0 0
  %4162 = vmatmul.mubr.bf16.gmra.mrb[0].mxu0 %v3859
  %v4163 = vpop.f32.mrb[0].mxu0
  %v4164 = vadd.f32 %v3761, %v4163
  %v4165 = vpop.f32.mrb[0].mxu0
  %v4166 = vadd.f32 %v3761, %v4165
  %v4167 = vpop.f32.mrb[0].mxu0
  %v4168 = vadd.f32 %v3766, %v4167
  %v4169 = vpop.f32.mrb[0].mxu0
  %v4170 = vadd.f32 %v3766, %v4169
  %4171 = vmatprep.mubr.bf16.mxu0 0
  %4172 = vmatmul.mubr.bf16.gmra.mrb[0].mxu0 %v3862
  %v4173 = vpop.f32.mrb[0].mxu0
  %v4174 = vadd.f32 %v3771, %v4173
  %v4175 = vpop.f32.mrb[0].mxu0
  %v4176 = vadd.f32 %v3771, %v4175
  %v4177 = vpop.f32.mrb[0].mxu0
  %v4178 = vadd.f32 %v3776, %v4177
  %v4179 = vpop.f32.mrb[0].mxu0
  %v4180 = vadd.f32 %v3776, %v4179
  %4181 = vmatprep.mubr.bf16.mxu0 0
  %4182 = vmatmul.mubr.bf16.gmra.mrb[0].mxu0 %v3865
  %v4183 = vpop.f32.mrb[0].mxu0
  %v4184 = vadd.f32 %v3781, %v4183
  %v4185 = vpop.f32.mrb[0].mxu0
  %v4186 = vadd.f32 %v3781, %v4185
  %v4187 = vpop.f32.mrb[0].mxu0
  %v4188 = vadd.f32 %v3786, %v4187
  %v4189 = vpop.f32.mrb[0].mxu0
  %v4190 = vadd.f32 %v3786, %v4189
  %4191 = vmatprep.mubr.bf16.mxu0 0
  %4192 = vmatmul.mubr.bf16.gmra.mrb[0].mxu0 %v3868
  %v4193 = vpop.f32.mrb[0].mxu0
  %v4194 = vadd.f32 %v3791, %v4193
  %v4195 = vpop.f32.mrb[0].mxu0
  %v4196 = vadd.f32 %v3791, %v4195
  %v4197 = vpop.f32.mrb[0].mxu0
  %v4198 = vadd.f32 %v3796, %v4197
  %v4199 = vpop.f32.mrb[0].mxu0
  %v4200 = vadd.f32 %v3796, %v4199
  %4201 = vmatprep.mubr.bf16.mxu0 0
  %4202 = vmatmul.mubr.bf16.gmra.mrb[0].mxu0 %v3871
  %v4203 = vpop.f32.mrb[0].mxu0
  %v4204 = vadd.f32 %v3801, %v4203
  %v4205 = vpop.f32.mrb[0].mxu0
  %v4206 = vadd.f32 %v3801, %v4205
  %v4207 = vpop.f32.mrb[0].mxu0
  %v4208 = vadd.f32 %v3806, %v4207
  %v4209 = vpop.f32.mrb[0].mxu0
  %v4210 = vadd.f32 %v3806, %v4209
  %4211 = vdwg.mxu0
  %4212 = vmatprep.subr.bf16.mxu0 %v3711
  %4213 = vmatpush1.bf16.msra.mxu0 %v3710
  %4214 = vmatprep.subr.bf16.mxu0 0
  %4215 = vmatpush1.bf16.msra.mxu0 0
  %4216 = vmatprep.subr.bf16.mxu0 0
  %4217 = vmatpush1.bf16.msra.mxu0 0
  %4218 = vmatprep.subr.bf16.mxu0 0
  %4219 = vmatpush1.bf16.msra.mxu0 0
  %4220 = vmatprep.subr.bf16.mxu0 0
  %4221 = vmatpush1.bf16.msra.mxu0 0
  %4222 = vmatprep.subr.bf16.mxu0 0
  %4223 = vmatpush1.bf16.msra.mxu0 0
  %4224 = vmatprep.subr.bf16.mxu0 0
  %4225 = vmatpush1.bf16.msra.mxu0 0
  %4226 = vmatprep.subr.bf16.mxu0 0
  %4227 = vmatpush1.bf16.msra.mxu0 0
  %4228 = vmatprep.subr.bf16.mxu0 0
  %4229 = vmatpush1.bf16.msra.mxu0 0
  %4230 = vmatprep.subr.bf16.mxu0 0
  %4231 = vmatpush1.bf16.msra.mxu0 0
  %4232 = vmatprep.subr.bf16.mxu0 0
  %4233 = vmatpush1.bf16.msra.mxu0 0
  %4234 = vmatprep.subr.bf16.mxu0 0
  %4235 = vmatpush1.bf16.msra.mxu0 0
  %4236 = vmatprep.subr.bf16.mxu0 0
  %4237 = vmatpush1.bf16.msra.mxu0 0
  %4238 = vmatprep.subr.bf16.mxu0 0
  %4239 = vmatpush1.bf16.msra.mxu0 0
  %4240 = vmatprep.subr.bf16.mxu0 0
  %4241 = vmatpush1.bf16.msra.mxu0 0
  %4242 = vmatprep.subr.bf16.mxu0 0
  %4243 = vmatpush1.bf16.msra.mxu0 0
  %4244 = vmatprep.mubr.bf16.mxu0 0
  %4245 = vmatmul.mubr.bf16.gmra.mrb[0].mxu0 %v3850
  %v4246 = vpop.f32.mrb[0].mxu0
  %v4247 = vadd.f32 %v3731, %v4246
  %v4248 = vpop.f32.mrb[0].mxu0
  %v4249 = vadd.f32 %v3731, %v4248
  %v4250 = vpop.f32.mrb[0].mxu0
  %v4251 = vadd.f32 %v3736, %v4250
  %v4252 = vpop.f32.mrb[0].mxu0
  %v4253 = vadd.f32 %v3736, %v4252
  %4254 = vmatprep.mubr.bf16.mxu0 0
  %4255 = vmatmul.mubr.bf16.gmra.mrb[0].mxu0 %v3853
  %v4256 = vpop.f32.mrb[0].mxu0
  %v4257 = vadd.f32 %v3741, %v4256
  %v4258 = vpop.f32.mrb[0].mxu0
  %v4259 = vadd.f32 %v3741, %v4258
  %v4260 = vpop.f32.mrb[0].mxu0
  %v4261 = vadd.f32 %v3746, %v4260
  %v4262 = vpop.f32.mrb[0].mxu0
  %v4263 = vadd.f32 %v3746, %v4262
  %4264 = vmatprep.mubr.bf16.mxu0 0
  %4265 = vmatmul.mubr.bf16.gmra.mrb[0].mxu0 %v3856
  %v4266 = vpop.f32.mrb[0].mxu0
  %v4267 = vadd.f32 %v3751, %v4266
  %v4268 = vpop.f32.mrb[0].mxu0
  %v4269 = vadd.f32 %v3751, %v4268
  %v4270 = vpop.f32.mrb[0].mxu0
  %v4271 = vadd.f32 %v3756, %v4270
  %v4272 = vpop.f32.mrb[0].mxu0
  %v4273 = vadd.f32 %v3756, %v4272
  %4274 = vmatprep.mubr.bf16.mxu0 0
  %4275 = vmatmul.mubr.bf16.gmra.mrb[0].mxu0 %v3859
  %v4276 = vpop.f32.mrb[0].mxu0
  %v4277 = vadd.f32 %v3761, %v4276
  %v4278 = vpop.f32.mrb[0].mxu0
  %v4279 = vadd.f32 %v3761, %v4278
  %v4280 = vpop.f32.mrb[0].mxu0
  %v4281 = vadd.f32 %v3766, %v4280
  %v4282 = vpop.f32.mrb[0].mxu0
  %v4283 = vadd.f32 %v3766, %v4282
  %4284 = vmatprep.mubr.bf16.mxu0 0
  %4285 = vmatmul.mubr.bf16.gmra.mrb[0].mxu0 %v3862
  %v4286 = vpop.f32.mrb[0].mxu0
  %v4287 = vadd.f32 %v3771, %v4286
  %v4288 = vpop.f32.mrb[0].mxu0
  %v4289 = vadd.f32 %v3771, %v4288
  %v4290 = vpop.f32.mrb[0].mxu0
  %v4291 = vadd.f32 %v3776, %v4290
  %v4292 = vpop.f32.mrb[0].mxu0
  %v4293 = vadd.f32 %v3776, %v4292
  %4294 = vmatprep.mubr.bf16.mxu0 0
  %4295 = vmatmul.mubr.bf16.gmra.mrb[0].mxu0 %v3865
  %v4296 = vpop.f32.mrb[0].mxu0
  %v4297 = vadd.f32 %v3781, %v4296
  %v4298 = vpop.f32.mrb[0].mxu0
  %v4299 = vadd.f32 %v3781, %v4298
  %v4300 = vpop.f32.mrb[0].mxu0
  %v4301 = vadd.f32 %v3786, %v4300
  %v4302 = vpop.f32.mrb[0].mxu0
  %v4303 = vadd.f32 %v3786, %v4302
  %4304 = vmatprep.mubr.bf16.mxu0 0
  %4305 = vmatmul.mubr.bf16.gmra.mrb[0].mxu0 %v3868
  %v4306 = vpop.f32.mrb[0].mxu0
  %v4307 = vadd.f32 %v3791, %v4306
  %v4308 = vpop.f32.mrb[0].mxu0
  %v4309 = vadd.f32 %v3791, %v4308
  %v4310 = vpop.f32.mrb[0].mxu0
  %v4311 = vadd.f32 %v3796, %v4310
  %v4312 = vpop.f32.mrb[0].mxu0
  %v4313 = vadd.f32 %v3796, %v4312
  %4314 = vmatprep.mubr.bf16.mxu0 0
  %4315 = vmatmul.mubr.bf16.gmra.mrb[0].mxu0 %v3871
  %v4316 = vpop.f32.mrb[0].mxu0
  %v4317 = vadd.f32 %v3801, %v4316
  %v4318 = vpop.f32.mrb[0].mxu0
  %v4319 = vadd.f32 %v3801, %v4318
  %v4320 = vpop.f32.mrb[0].mxu0
  %v4321 = vadd.f32 %v3806, %v4320
  %v4322 = vpop.f32.mrb[0].mxu0
  %v4323 = vadd.f32 %v3806, %v4322
  %4324 = vdwg.mxu0
  %v4325 = vmax.f32 %v3908, 0.0
  %v4326 = vmax.f32 %v3910, 0.0
  %v4327 = vmax.f32 %v4021, 0.0
  %v4328 = vmax.f32 %v4023, 0.0
  %v4329 = vmax.f32 %v4134, 0.0
  %v4330 = vmax.f32 %v4136, 0.0
  %v4331 = vmax.f32 %v4247, 0.0
  %v4332 = vmax.f32 %v4249, 0.0
  %v4333 = vmax.f32 %v3912, 0.0
  %v4334 = vmax.f32 %v3914, 0.0
  %v4335 = vmax.f32 %v4025, 0.0
  %v4336 = vmax.f32 %v4027, 0.0
  %v4337 = vmax.f32 %v4138, 0.0
  %v4338 = vmax.f32 %v4140, 0.0
  %v4339 = vmax.f32 %v4251, 0.0
  %v4340 = vmax.f32 %v4253, 0.0
  %v4341 = vmax.f32 %v3918, 0.0
  %v4342 = vmax.f32 %v3920, 0.0
  %v4343 = vmax.f32 %v4031, 0.0
  %v4344 = vmax.f32 %v4033, 0.0
  %v4345 = vmax.f32 %v4144, 0.0
  %v4346 = vmax.f32 %v4146, 0.0
  %v4347 = vmax.f32 %v4257, 0.0
  %v4348 = vmax.f32 %v4259, 0.0
  %v4349 = vmax.f32 %v3922, 0.0
  %v4350 = vmax.f32 %v3924, 0.0
  %v4351 = vmax.f32 %v4035, 0.0
  %v4352 = vmax.f32 %v4037, 0.0
  %v4353 = vmax.f32 %v4148, 0.0
  %v4354 = vmax.f32 %v4150, 0.0
  %v4355 = vmax.f32 %v4261, 0.0
  %v4356 = vmax.f32 %v4263, 0.0
  %v4357 = vmax.f32 %v3928, 0.0
  %v4358 = vmax.f32 %v3930, 0.0
  %v4359 = vmax.f32 %v4041, 0.0
  %v4360 = vmax.f32 %v4043, 0.0
  %v4361 = vmax.f32 %v4154, 0.0
  %v4362 = vmax.f32 %v4156, 0.0
  %v4363 = vmax.f32 %v4267, 0.0
  %v4364 = vmax.f32 %v4269, 0.0
  %v4365 = vmax.f32 %v3932, 0.0
  %v4366 = vmax.f32 %v3934, 0.0
  %v4367 = vmax.f32 %v4045, 0.0
  %v4368 = vmax.f32 %v4047, 0.0
  %v4369 = vmax.f32 %v4158, 0.0
  %v4370 = vmax.f32 %v4160, 0.0
  %v4371 = vmax.f32 %v4271, 0.0
  %v4372 = vmax.f32 %v4273, 0.0
  %v4373 = vmax.f32 %v3938, 0.0
  %v4374 = vmax.f32 %v3940, 0.0
  %v4375 = vmax.f32 %v4051, 0.0
  %v4376 = vmax.f32 %v4053, 0.0
  %v4377 = vmax.f32 %v4164, 0.0
  %v4378 = vmax.f32 %v4166, 0.0
  %v4379 = vmax.f32 %v4277, 0.0
  %v4380 = vmax.f32 %v4279, 0.0
  %v4381 = vmax.f32 %v3942, 0.0
  %v4382 = vmax.f32 %v3944, 0.0
  %v4383 = vmax.f32 %v4055, 0.0
  %v4384 = vmax.f32 %v4057, 0.0
  %v4385 = vmax.f32 %v4168, 0.0
  %v4386 = vmax.f32 %v4170, 0.0
  %v4387 = vmax.f32 %v4281, 0.0
  %v4388 = vmax.f32 %v4283, 0.0
  %v4389 = vmax.f32 %v3948, 0.0
  %v4390 = vmax.f32 %v3950, 0.0
  %v4391 = vmax.f32 %v4061, 0.0
  %v4392 = vmax.f32 %v4063, 0.0
  %v4393 = vmax.f32 %v4174, 0.0
  %v4394 = vmax.f32 %v4176, 0.0
  %v4395 = vmax.f32 %v4287, 0.0
  %v4396 = vmax.f32 %v4289, 0.0
  %v4397 = vmax.f32 %v3952, 0.0
  %v4398 = vmax.f32 %v3954, 0.0
  %v4399 = vmax.f32 %v4065, 0.0
  %v4400 = vmax.f32 %v4067, 0.0
  %v4401 = vmax.f32 %v4178, 0.0
  %v4402 = vmax.f32 %v4180, 0.0
  %v4403 = vmax.f32 %v4291, 0.0
  %v4404 = vmax.f32 %v4293, 0.0
  %v4405 = vmax.f32 %v3958, 0.0
  %v4406 = vmax.f32 %v3960, 0.0
  %v4407 = vmax.f32 %v4071, 0.0
  %v4408 = vmax.f32 %v4073, 0.0
  %v4409 = vmax.f32 %v4184, 0.0
  %v4410 = vmax.f32 %v4186, 0.0
  %v4411 = vmax.f32 %v4297, 0.0
  %v4412 = vmax.f32 %v4299, 0.0
  %v4413 = vmax.f32 %v3962, 0.0
  %v4414 = vmax.f32 %v3964, 0.0
  %v4415 = vmax.f32 %v4075, 0.0
  %v4416 = vmax.f32 %v4077, 0.0
  %v4417 = vmax.f32 %v4188, 0.0
  %v4418 = vmax.f32 %v4190, 0.0
  %v4419 = vmax.f32 %v4301, 0.0
  %v4420 = vmax.f32 %v4303, 0.0
  %v4421 = vmax.f32 %v3968, 0.0
  %v4422 = vmax.f32 %v3970, 0.0
  %v4423 = vmax.f32 %v4081, 0.0
  %v4424 = vmax.f32 %v4083, 0.0
  %v4425 = vmax.f32 %v4194, 0.0
  %v4426 = vmax.f32 %v4196, 0.0
  %v4427 = vmax.f32 %v4307, 0.0
  %v4428 = vmax.f32 %v4309, 0.0
  %v4429 = vmax.f32 %v3972, 0.0
  %v4430 = vmax.f32 %v3974, 0.0
  %v4431 = vmax.f32 %v4085, 0.0
  %v4432 = vmax.f32 %v4087, 0.0
  %v4433 = vmax.f32 %v4198, 0.0
  %v4434 = vmax.f32 %v4200, 0.0
  %v4435 = vmax.f32 %v4311, 0.0
  %v4436 = vmax.f32 %v4313, 0.0
  %v4437 = vmax.f32 %v3978, 0.0
  %v4438 = vmax.f32 %v3980, 0.0
  %v4439 = vmax.f32 %v4091, 0.0
  %v4440 = vmax.f32 %v4093, 0.0
  %v4441 = vmax.f32 %v4204, 0.0
  %v4442 = vmax.f32 %v4206, 0.0
  %v4443 = vmax.f32 %v4317, 0.0
  %v4444 = vmax.f32 %v4319, 0.0
  %v4445 = vmax.f32 %v3982, 0.0
  %v4446 = vmax.f32 %v3984, 0.0
  %v4447 = vmax.f32 %v4095, 0.0
  %v4448 = vmax.f32 %v4097, 0.0
  %v4449 = vmax.f32 %v4208, 0.0
  %v4450 = vmax.f32 %v4210, 0.0
  %v4451 = vmax.f32 %v4321, 0.0
  %v4452 = vmax.f32 %v4323, 0.0
  %v4453 = vpack.c.bf16 %v4333, %v4325
  %v4454 = vpack.c.bf16 %v4334, %v4326
  %v4455 = vpack.c.bf16 %v4335, %v4327
  %v4456 = vpack.c.bf16 %v4336, %v4328
  %v4457 = vpack.c.bf16 %v4337, %v4329
  %v4458 = vpack.c.bf16 %v4338, %v4330
  %v4459 = vpack.c.bf16 %v4339, %v4331
  %v4460 = vpack.c.bf16 %v4340, %v4332
  %v4461 = vpack.c.bf16 %v4349, %v4341
  %v4462 = vpack.c.bf16 %v4350, %v4342
  %v4463 = vpack.c.bf16 %v4351, %v4343
  %v4464 = vpack.c.bf16 %v4352, %v4344
  %v4465 = vpack.c.bf16 %v4353, %v4345
  %v4466 = vpack.c.bf16 %v4354, %v4346
  %v4467 = vpack.c.bf16 %v4355, %v4347
  %v4468 = vpack.c.bf16 %v4356, %v4348
  %v4469 = vpack.c.bf16 %v4365, %v4357
  %v4470 = vpack.c.bf16 %v4366, %v4358
  %v4471 = vpack.c.bf16 %v4367, %v4359
  %v4472 = vpack.c.bf16 %v4368, %v4360
  %v4473 = vpack.c.bf16 %v4369, %v4361
  %v4474 = vpack.c.bf16 %v4370, %v4362
  %v4475 = vpack.c.bf16 %v4371, %v4363
  %v4476 = vpack.c.bf16 %v4372, %v4364
  %v4477 = vpack.c.bf16 %v4381, %v4373
  %v4478 = vpack.c.bf16 %v4382, %v4374
  %v4479 = vpack.c.bf16 %v4383, %v4375
  %v4480 = vpack.c.bf16 %v4384, %v4376
  %v4481 = vpack.c.bf16 %v4385, %v4377
  %v4482 = vpack.c.bf16 %v4386, %v4378
  %v4483 = vpack.c.bf16 %v4387, %v4379
  %v4484 = vpack.c.bf16 %v4388, %v4380
  %v4485 = vpack.c.bf16 %v4397, %v4389
  %v4486 = vpack.c.bf16 %v4398, %v4390
  %v4487 = vpack.c.bf16 %v4399, %v4391
  %v4488 = vpack.c.bf16 %v4400, %v4392
  %v4489 = vpack.c.bf16 %v4401, %v4393
  %v4490 = vpack.c.bf16 %v4402, %v4394
  %v4491 = vpack.c.bf16 %v4403, %v4395
  %v4492 = vpack.c.bf16 %v4404, %v4396
  %v4493 = vpack.c.bf16 %v4413, %v4405
  %v4494 = vpack.c.bf16 %v4414, %v4406
  %v4495 = vpack.c.bf16 %v4415, %v4407
  %v4496 = vpack.c.bf16 %v4416, %v4408
  %v4497 = vpack.c.bf16 %v4417, %v4409
  %v4498 = vpack.c.bf16 %v4418, %v4410
  %v4499 = vpack.c.bf16 %v4419, %v4411
  %v4500 = vpack.c.bf16 %v4420, %v4412
  %v4501 = vpack.c.bf16 %v4429, %v4421
  %v4502 = vpack.c.bf16 %v4430, %v4422
  %v4503 = vpack.c.bf16 %v4431, %v4423
  %v4504 = vpack.c.bf16 %v4432, %v4424
  %v4505 = vpack.c.bf16 %v4433, %v4425
  %v4506 = vpack.c.bf16 %v4434, %v4426
  %v4507 = vpack.c.bf16 %v4435, %v4427
  %v4508 = vpack.c.bf16 %v4436, %v4428
  %v4509 = vpack.c.bf16 %v4445, %v4437
  %v4510 = vpack.c.bf16 %v4446, %v4438
  %v4511 = vpack.c.bf16 %v4447, %v4439
  %v4512 = vpack.c.bf16 %v4448, %v4440
  %v4513 = vpack.c.bf16 %v4449, %v4441
  %v4514 = vpack.c.bf16 %v4450, %v4442
  %v4515 = vpack.c.bf16 %v4451, %v4443
  %v4516 = vpack.c.bf16 %v4452, %v4444
  %v4517 = vld [vmem:[%s4] sm:$0xf]
  %v4518 = vld [vmem:[%s4 + $0x4] sm:$0xf]
  %v4519 = vld [vmem:[%s4 + $0x8] sm:$0xf]
  %v4520 = vld [vmem:[%s4 + $0xc] sm:$0xf]
  %v4521 = vld [vmem:[%s4 + $0x10] sm:$0xf]
  %v4522 = vld [vmem:[%s4 + $0x14] sm:$0xf]
  %v4523 = vld [vmem:[%s4 + $0x18] sm:$0xf]
  %v4524 = vld [vmem:[%s4 + $0x1c] sm:$0xf]
  %v4525 = vld [vmem:[%s4 + $0x20] sm:$0xf]
  %v4526 = vld [vmem:[%s4 + $0x24] sm:$0xf]
  %v4527 = vld [vmem:[%s4 + $0x28] sm:$0xf]
  %v4528 = vld [vmem:[%s4 + $0x2c] sm:$0xf]
  %v4529 = vld [vmem:[%s4 + $0x30] sm:$0xf]
  %v4530 = vld [vmem:[%s4 + $0x34] sm:$0xf]
  %v4531 = vld [vmem:[%s4 + $0x38] sm:$0xf]
  %v4532 = vld [vmem:[%s4 + $0x3c] sm:$0xf]
  %v4533 = vld [vmem:[%s5] sm:$0xff]
  %v4534 = vld [vmem:[%s5 + $0x8] sm:$0xff]
  %v4535 = vld [vmem:[%s5 + $0x10] sm:$0xff]
  %v4536 = vld [vmem:[%s5 + $0x18] sm:$0xff]
  %v4537 = vld [vmem:[%s5 + $0x20] sm:$0xff]
  %v4538 = vld [vmem:[%s5 + $0x28] sm:$0xff]
  %v4539 = vld [vmem:[%s5 + $0x30] sm:$0xff]
  %v4540 = vld [vmem:[%s5 + $0x38] sm:$0xff]
  %v4541 = vld [vmem:[%s5 + $0x40] sm:$0xff]
  %v4542 = vld [vmem:[%s5 + $0x48] sm:$0xff]
  %v4543 = vld [vmem:[%s5 + $0x50] sm:$0xff]
  %v4544 = vld [vmem:[%s5 + $0x58] sm:$0xff]
  %v4545 = vld [vmem:[%s5 + $0x60] sm:$0xff]
  %v4546 = vld [vmem:[%s5 + $0x68] sm:$0xff]
  %v4547 = vld [vmem:[%s5 + $0x70] sm:$0xff]
  %v4548 = vld [vmem:[%s5 + $0x78] sm:$0xff]
  %4550 = vset.pattern.permute.xlu0 0
  %4551 = vperm.xlu0 %4550, %v4533
  %v4552 = vpop.permute.xlu0 %4551
  %4555 = vset.pattern.permute.xlu0 0
  %4556 = vperm.xlu0 %4555, %v4534
  %v4557 = vpop.permute.xlu0 %4556
  %4560 = vset.pattern.permute.xlu0 0
  %4561 = vperm.xlu0 %4560, %v4535
  %v4562 = vpop.permute.xlu0 %4561
  %4565 = vset.pattern.permute.xlu0 0
  %4566 = vperm.xlu0 %4565, %v4536
  %v4567 = vpop.permute.xlu0 %4566
  %4570 = vset.pattern.permute.xlu0 0
  %4571 = vperm.xlu0 %4570, %v4537
  %v4572 = vpop.permute.xlu0 %4571
  %4575 = vset.pattern.permute.xlu0 0
  %4576 = vperm.xlu0 %4575, %v4538
  %v4577 = vpop.permute.xlu0 %4576
  %4580 = vset.pattern.permute.xlu0 0
  %4581 = vperm.xlu0 %4580, %v4539
  %v4582 = vpop.permute.xlu0 %4581
  %4585 = vset.pattern.permute.xlu0 0
  %4586 = vperm.xlu0 %4585, %v4540
  %v4587 = vpop.permute.xlu0 %4586
  %4590 = vset.pattern.permute.xlu0 0
  %4591 = vperm.xlu0 %4590, %v4541
  %v4592 = vpop.permute.xlu0 %4591
  %4595 = vset.pattern.permute.xlu0 0
  %4596 = vperm.xlu0 %4595, %v4542
  %v4597 = vpop.permute.xlu0 %4596
  %4600 = vset.pattern.permute.xlu0 0
  %4601 = vperm.xlu0 %4600, %v4543
  %v4602 = vpop.permute.xlu0 %4601
  %4605 = vset.pattern.permute.xlu0 0
  %4606 = vperm.xlu0 %4605, %v4544
  %v4607 = vpop.permute.xlu0 %4606
  %4610 = vset.pattern.permute.xlu0 0
  %4611 = vperm.xlu0 %4610, %v4545
  %v4612 = vpop.permute.xlu0 %4611
  %4615 = vset.pattern.permute.xlu0 0
  %4616 = vperm.xlu0 %4615, %v4546
  %v4617 = vpop.permute.xlu0 %4616
  %4620 = vset.pattern.permute.xlu0 0
  %4621 = vperm.xlu0 %4620, %v4547
  %v4622 = vpop.permute.xlu0 %4621
  %4625 = vset.pattern.permute.xlu0 0
  %4626 = vperm.xlu0 %4625, %v4548
  %v4627 = vpop.permute.xlu0 %4626
  %v4645 = vunpack.c.l.b16 %v4517
  %v4646 = vunpack.c.l.b16 %v4518
  %v4647 = vunpack.c.l.b16 %v4519
  %v4648 = vunpack.c.l.b16 %v4520
  %v4649 = vunpack.c.l.b16 %v4521
  %v4650 = vunpack.c.l.b16 %v4522
  %v4651 = vunpack.c.l.b16 %v4523
  %v4652 = vunpack.c.l.b16 %v4524
  %v4653 = vunpack.c.l.b16 %v4525
  %v4654 = vunpack.c.l.b16 %v4526
  %v4655 = vunpack.c.l.b16 %v4527
  %v4656 = vunpack.c.l.b16 %v4528
  %v4657 = vunpack.c.l.b16 %v4529
  %v4658 = vunpack.c.l.b16 %v4530
  %v4659 = vunpack.c.l.b16 %v4531
  %v4660 = vunpack.c.l.b16 %v4532
  %v4661 = vpack.c.b16 %v4646, %v4645
  %v4662 = vpack.c.b16 %v4648, %v4647
  %v4663 = vpack.c.b16 %v4650, %v4649
  %v4664 = vpack.c.b16 %v4652, %v4651
  %v4665 = vpack.c.b16 %v4654, %v4653
  %v4666 = vpack.c.b16 %v4656, %v4655
  %v4667 = vpack.c.b16 %v4658, %v4657
  %v4668 = vpack.c.b16 %v4660, %v4659
  %4677 = vmatprep.subr.bf16.mxu0 %v4454
  %4678 = vmatpush1.bf16.msra.mxu0 %v4453
  %4679 = vmatprep.subr.bf16.mxu0 %v4462
  %4680 = vmatpush1.bf16.msra.mxu0 %v4461
  %4681 = vmatprep.subr.bf16.mxu0 %v4470
  %4682 = vmatpush1.bf16.msra.mxu0 %v4469
  %4683 = vmatprep.subr.bf16.mxu0 %v4478
  %4684 = vmatpush1.bf16.msra.mxu0 %v4477
  %4685 = vmatprep.subr.bf16.mxu0 %v4486
  %4686 = vmatpush1.bf16.msra.mxu0 %v4485
  %4687 = vmatprep.subr.bf16.mxu0 %v4494
  %4688 = vmatpush1.bf16.msra.mxu0 %v4493
  %4689 = vmatprep.subr.bf16.mxu0 %v4502
  %4690 = vmatpush1.bf16.msra.mxu0 %v4501
  %4691 = vmatprep.subr.bf16.mxu0 %v4510
  %4692 = vmatpush1.bf16.msra.mxu0 %v4509
  %4693 = vmatprep.subr.bf16.mxu0 0
  %4694 = vmatpush1.bf16.msra.mxu0 0
  %4695 = vmatprep.subr.bf16.mxu0 0
  %4696 = vmatpush1.bf16.msra.mxu0 0
  %4697 = vmatprep.subr.bf16.mxu0 0
  %4698 = vmatpush1.bf16.msra.mxu0 0
  %4699 = vmatprep.subr.bf16.mxu0 0
  %4700 = vmatpush1.bf16.msra.mxu0 0
  %4701 = vmatprep.subr.bf16.mxu0 0
  %4702 = vmatpush1.bf16.msra.mxu0 0
  %4703 = vmatprep.subr.bf16.mxu0 0
  %4704 = vmatpush1.bf16.msra.mxu0 0
  %4705 = vmatprep.subr.bf16.mxu0 0
  %4706 = vmatpush1.bf16.msra.mxu0 0
  %4707 = vmatprep.subr.bf16.mxu0 0
  %4708 = vmatpush1.bf16.msra.mxu0 0
  %4709 = vmatprep.mubr.bf16.mxu0 0
  %4710 = vmatmul.mubr.bf16.gmra.mrb[0].mxu0 %v4661
  %v4711 = vpop.f32.mrb[0].mxu0
  %v4712 = vadd.f32 %v4552, %v4711
  %v4713 = vpop.f32.mrb[0].mxu0
  %v4714 = vadd.f32 %v4552, %v4713
  %v4715 = vpop.f32.mrb[0].mxu0
  %v4716 = vadd.f32 %v4557, %v4715
  %v4717 = vpop.f32.mrb[0].mxu0
  %v4718 = vadd.f32 %v4557, %v4717
  %4719 = vmatprep.mubr.bf16.mxu0 0
  %4720 = vmatmul.mubr.bf16.gmra.mrb[0].mxu0 %v4662
  %v4721 = vpop.f32.mrb[0].mxu0
  %v4722 = vadd.f32 %v4562, %v4721
  %v4723 = vpop.f32.mrb[0].mxu0
  %v4724 = vadd.f32 %v4562, %v4723
  %v4725 = vpop.f32.mrb[0].mxu0
  %v4726 = vadd.f32 %v4567, %v4725
  %v4727 = vpop.f32.mrb[0].mxu0
  %v4728 = vadd.f32 %v4567, %v4727
  %4729 = vmatprep.mubr.bf16.mxu0 0
  %4730 = vmatmul.mubr.bf16.gmra.mrb[0].mxu0 %v4663
  %v4731 = vpop.f32.mrb[0].mxu0
  %v4732 = vadd.f32 %v4572, %v4731
  %v4733 = vpop.f32.mrb[0].mxu0
  %v4734 = vadd.f32 %v4572, %v4733
  %v4735 = vpop.f32.mrb[0].mxu0
  %v4736 = vadd.f32 %v4577, %v4735
  %v4737 = vpop.f32.mrb[0].mxu0
  %v4738 = vadd.f32 %v4577, %v4737
  %4739 = vmatprep.mubr.bf16.mxu0 0
  %4740 = vmatmul.mubr.bf16.gmra.mrb[0].mxu0 %v4664
  %v4741 = vpop.f32.mrb[0].mxu0
  %v4742 = vadd.f32 %v4582, %v4741
  %v4743 = vpop.f32.mrb[0].mxu0
  %v4744 = vadd.f32 %v4582, %v4743
  %v4745 = vpop.f32.mrb[0].mxu0
  %v4746 = vadd.f32 %v4587, %v4745
  %v4747 = vpop.f32.mrb[0].mxu0
  %v4748 = vadd.f32 %v4587, %v4747
  %4749 = vmatprep.mubr.bf16.mxu0 0
  %4750 = vmatmul.mubr.bf16.gmra.mrb[0].mxu0 %v4665
  %v4751 = vpop.f32.mrb[0].mxu0
  %v4752 = vadd.f32 %v4592, %v4751
  %v4753 = vpop.f32.mrb[0].mxu0
  %v4754 = vadd.f32 %v4592, %v4753
  %v4755 = vpop.f32.mrb[0].mxu0
  %v4756 = vadd.f32 %v4597, %v4755
  %v4757 = vpop.f32.mrb[0].mxu0
  %v4758 = vadd.f32 %v4597, %v4757
  %4759 = vmatprep.mubr.bf16.mxu0 0
  %4760 = vmatmul.mubr.bf16.gmra.mrb[0].mxu0 %v4666
  %v4761 = vpop.f32.mrb[0].mxu0
  %v4762 = vadd.f32 %v4602, %v4761
  %v4763 = vpop.f32.mrb[0].mxu0
  %v4764 = vadd.f32 %v4602, %v4763
  %v4765 = vpop.f32.mrb[0].mxu0
  %v4766 = vadd.f32 %v4607, %v4765
  %v4767 = vpop.f32.mrb[0].mxu0
  %v4768 = vadd.f32 %v4607, %v4767
  %4769 = vmatprep.mubr.bf16.mxu0 0
  %4770 = vmatmul.mubr.bf16.gmra.mrb[0].mxu0 %v4667
  %v4771 = vpop.f32.mrb[0].mxu0
  %v4772 = vadd.f32 %v4612, %v4771
  %v4773 = vpop.f32.mrb[0].mxu0
  %v4774 = vadd.f32 %v4612, %v4773
  %v4775 = vpop.f32.mrb[0].mxu0
  %v4776 = vadd.f32 %v4617, %v4775
  %v4777 = vpop.f32.mrb[0].mxu0
  %v4778 = vadd.f32 %v4617, %v4777
  %4779 = vmatprep.mubr.bf16.mxu0 0
  %4780 = vmatmul.mubr.bf16.gmra.mrb[0].mxu0 %v4668
  %v4781 = vpop.f32.mrb[0].mxu0
  %v4782 = vadd.f32 %v4622, %v4781
  %v4783 = vpop.f32.mrb[0].mxu0
  %v4784 = vadd.f32 %v4622, %v4783
  %v4785 = vpop.f32.mrb[0].mxu0
  %v4786 = vadd.f32 %v4627, %v4785
  %v4787 = vpop.f32.mrb[0].mxu0
  %v4788 = vadd.f32 %v4627, %v4787
  %4789 = vdwg.mxu0
  %4790 = vmatprep.subr.bf16.mxu0 %v4456
  %4791 = vmatpush1.bf16.msra.mxu0 %v4455
  %4792 = vmatprep.subr.bf16.mxu0 %v4464
  %4793 = vmatpush1.bf16.msra.mxu0 %v4463
  %4794 = vmatprep.subr.bf16.mxu0 %v4472
  %4795 = vmatpush1.bf16.msra.mxu0 %v4471
  %4796 = vmatprep.subr.bf16.mxu0 %v4480
  %4797 = vmatpush1.bf16.msra.mxu0 %v4479
  %4798 = vmatprep.subr.bf16.mxu0 %v4488
  %4799 = vmatpush1.bf16.msra.mxu0 %v4487
  %4800 = vmatprep.subr.bf16.mxu0 %v4496
  %4801 = vmatpush1.bf16.msra.mxu0 %v4495
  %4802 = vmatprep.subr.bf16.mxu0 %v4504
  %4803 = vmatpush1.bf16.msra.mxu0 %v4503
  %4804 = vmatprep.subr.bf16.mxu0 %v4512
  %4805 = vmatpush1.bf16.msra.mxu0 %v4511
  %4806 = vmatprep.subr.bf16.mxu0 0
  %4807 = vmatpush1.bf16.msra.mxu0 0
  %4808 = vmatprep.subr.bf16.mxu0 0
  %4809 = vmatpush1.bf16.msra.mxu0 0
  %4810 = vmatprep.subr.bf16.mxu0 0
  %4811 = vmatpush1.bf16.msra.mxu0 0
  %4812 = vmatprep.subr.bf16.mxu0 0
  %4813 = vmatpush1.bf16.msra.mxu0 0
  %4814 = vmatprep.subr.bf16.mxu0 0
  %4815 = vmatpush1.bf16.msra.mxu0 0
  %4816 = vmatprep.subr.bf16.mxu0 0
  %4817 = vmatpush1.bf16.msra.mxu0 0
  %4818 = vmatprep.subr.bf16.mxu0 0
  %4819 = vmatpush1.bf16.msra.mxu0 0
  %4820 = vmatprep.subr.bf16.mxu0 0
  %4821 = vmatpush1.bf16.msra.mxu0 0
  %4822 = vmatprep.mubr.bf16.mxu0 0
  %4823 = vmatmul.mubr.bf16.gmra.mrb[0].mxu0 %v4661
  %v4824 = vpop.f32.mrb[0].mxu0
  %v4825 = vadd.f32 %v4552, %v4824
  %v4826 = vpop.f32.mrb[0].mxu0
  %v4827 = vadd.f32 %v4552, %v4826
  %v4828 = vpop.f32.mrb[0].mxu0
  %v4829 = vadd.f32 %v4557, %v4828
  %v4830 = vpop.f32.mrb[0].mxu0
  %v4831 = vadd.f32 %v4557, %v4830
  %4832 = vmatprep.mubr.bf16.mxu0 0
  %4833 = vmatmul.mubr.bf16.gmra.mrb[0].mxu0 %v4662
  %v4834 = vpop.f32.mrb[0].mxu0
  %v4835 = vadd.f32 %v4562, %v4834
  %v4836 = vpop.f32.mrb[0].mxu0
  %v4837 = vadd.f32 %v4562, %v4836
  %v4838 = vpop.f32.mrb[0].mxu0
  %v4839 = vadd.f32 %v4567, %v4838
  %v4840 = vpop.f32.mrb[0].mxu0
  %v4841 = vadd.f32 %v4567, %v4840
  %4842 = vmatprep.mubr.bf16.mxu0 0
  %4843 = vmatmul.mubr.bf16.gmra.mrb[0].mxu0 %v4663
  %v4844 = vpop.f32.mrb[0].mxu0
  %v4845 = vadd.f32 %v4572, %v4844
  %v4846 = vpop.f32.mrb[0].mxu0
  %v4847 = vadd.f32 %v4572, %v4846
  %v4848 = vpop.f32.mrb[0].mxu0
  %v4849 = vadd.f32 %v4577, %v4848
  %v4850 = vpop.f32.mrb[0].mxu0
  %v4851 = vadd.f32 %v4577, %v4850
  %4852 = vmatprep.mubr.bf16.mxu0 0
  %4853 = vmatmul.mubr.bf16.gmra.mrb[0].mxu0 %v4664
  %v4854 = vpop.f32.mrb[0].mxu0
  %v4855 = vadd.f32 %v4582, %v4854
  %v4856 = vpop.f32.mrb[0].mxu0
  %v4857 = vadd.f32 %v4582, %v4856
  %v4858 = vpop.f32.mrb[0].mxu0
  %v4859 = vadd.f32 %v4587, %v4858
  %v4860 = vpop.f32.mrb[0].mxu0
  %v4861 = vadd.f32 %v4587, %v4860
  %4862 = vmatprep.mubr.bf16.mxu0 0
  %4863 = vmatmul.mubr.bf16.gmra.mrb[0].mxu0 %v4665
  %v4864 = vpop.f32.mrb[0].mxu0
  %v4865 = vadd.f32 %v4592, %v4864
  %v4866 = vpop.f32.mrb[0].mxu0
  %v4867 = vadd.f32 %v4592, %v4866
  %v4868 = vpop.f32.mrb[0].mxu0
  %v4869 = vadd.f32 %v4597, %v4868
  %v4870 = vpop.f32.mrb[0].mxu0
  %v4871 = vadd.f32 %v4597, %v4870
  %4872 = vmatprep.mubr.bf16.mxu0 0
  %4873 = vmatmul.mubr.bf16.gmra.mrb[0].mxu0 %v4666
  %v4874 = vpop.f32.mrb[0].mxu0
  %v4875 = vadd.f32 %v4602, %v4874
  %v4876 = vpop.f32.mrb[0].mxu0
  %v4877 = vadd.f32 %v4602, %v4876
  %v4878 = vpop.f32.mrb[0].mxu0
  %v4879 = vadd.f32 %v4607, %v4878
  %v4880 = vpop.f32.mrb[0].mxu0
  %v4881 = vadd.f32 %v4607, %v4880
  %4882 = vmatprep.mubr.bf16.mxu0 0
  %4883 = vmatmul.mubr.bf16.gmra.mrb[0].mxu0 %v4667
  %v4884 = vpop.f32.mrb[0].mxu0
  %v4885 = vadd.f32 %v4612, %v4884
  %v4886 = vpop.f32.mrb[0].mxu0
  %v4887 = vadd.f32 %v4612, %v4886
  %v4888 = vpop.f32.mrb[0].mxu0
  %v4889 = vadd.f32 %v4617, %v4888
  %v4890 = vpop.f32.mrb[0].mxu0
  %v4891 = vadd.f32 %v4617, %v4890
  %4892 = vmatprep.mubr.bf16.mxu0 0
  %4893 = vmatmul.mubr.bf16.gmra.mrb[0].mxu0 %v4668
  %v4894 = vpop.f32.mrb[0].mxu0
  %v4895 = vadd.f32 %v4622, %v4894
  %v4896 = vpop.f32.mrb[0].mxu0
  %v4897 = vadd.f32 %v4622, %v4896
  %v4898 = vpop.f32.mrb[0].mxu0
  %v4899 = vadd.f32 %v4627, %v4898
  %v4900 = vpop.f32.mrb[0].mxu0
  %v4901 = vadd.f32 %v4627, %v4900
  %4902 = vdwg.mxu0
  %4903 = vmatprep.subr.bf16.mxu0 %v4458
  %4904 = vmatpush1.bf16.msra.mxu0 %v4457
  %4905 = vmatprep.subr.bf16.mxu0 %v4466
  %4906 = vmatpush1.bf16.msra.mxu0 %v4465
  %4907 = vmatprep.subr.bf16.mxu0 %v4474
  %4908 = vmatpush1.bf16.msra.mxu0 %v4473
  %4909 = vmatprep.subr.bf16.mxu0 %v4482
  %4910 = vmatpush1.bf16.msra.mxu0 %v4481
  %4911 = vmatprep.subr.bf16.mxu0 %v4490
  %4912 = vmatpush1.bf16.msra.mxu0 %v4489
  %4913 = vmatprep.subr.bf16.mxu0 %v4498
  %4914 = vmatpush1.bf16.msra.mxu0 %v4497
  %4915 = vmatprep.subr.bf16.mxu0 %v4506
  %4916 = vmatpush1.bf16.msra.mxu0 %v4505
  %4917 = vmatprep.subr.bf16.mxu0 %v4514
  %4918 = vmatpush1.bf16.msra.mxu0 %v4513
  %4919 = vmatprep.subr.bf16.mxu0 0
  %4920 = vmatpush1.bf16.msra.mxu0 0
  %4921 = vmatprep.subr.bf16.mxu0 0
  %4922 = vmatpush1.bf16.msra.mxu0 0
  %4923 = vmatprep.subr.bf16.mxu0 0
  %4924 = vmatpush1.bf16.msra.mxu0 0
  %4925 = vmatprep.subr.bf16.mxu0 0
  %4926 = vmatpush1.bf16.msra.mxu0 0
  %4927 = vmatprep.subr.bf16.mxu0 0
  %4928 = vmatpush1.bf16.msra.mxu0 0
  %4929 = vmatprep.subr.bf16.mxu0 0
  %4930 = vmatpush1.bf16.msra.mxu0 0
  %4931 = vmatprep.subr.bf16.mxu0 0
  %4932 = vmatpush1.bf16.msra.mxu0 0
  %4933 = vmatprep.subr.bf16.mxu0 0
  %4934 = vmatpush1.bf16.msra.mxu0 0
  %4935 = vmatprep.mubr.bf16.mxu0 0
  %4936 = vmatmul.mubr.bf16.gmra.mrb[0].mxu0 %v4661
  %v4937 = vpop.f32.mrb[0].mxu0
  %v4938 = vadd.f32 %v4552, %v4937
  %v4939 = vpop.f32.mrb[0].mxu0
  %v4940 = vadd.f32 %v4552, %v4939
  %v4941 = vpop.f32.mrb[0].mxu0
  %v4942 = vadd.f32 %v4557, %v4941
  %v4943 = vpop.f32.mrb[0].mxu0
  %v4944 = vadd.f32 %v4557, %v4943
  %4945 = vmatprep.mubr.bf16.mxu0 0
  %4946 = vmatmul.mubr.bf16.gmra.mrb[0].mxu0 %v4662
  %v4947 = vpop.f32.mrb[0].mxu0
  %v4948 = vadd.f32 %v4562, %v4947
  %v4949 = vpop.f32.mrb[0].mxu0
  %v4950 = vadd.f32 %v4562, %v4949
  %v4951 = vpop.f32.mrb[0].mxu0
  %v4952 = vadd.f32 %v4567, %v4951
  %v4953 = vpop.f32.mrb[0].mxu0
  %v4954 = vadd.f32 %v4567, %v4953
  %4955 = vmatprep.mubr.bf16.mxu0 0
  %4956 = vmatmul.mubr.bf16.gmra.mrb[0].mxu0 %v4663
  %v4957 = vpop.f32.mrb[0].mxu0
  %v4958 = vadd.f32 %v4572, %v4957
  %v4959 = vpop.f32.mrb[0].mxu0
  %v4960 = vadd.f32 %v4572, %v4959
  %v4961 = vpop.f32.mrb[0].mxu0
  %v4962 = vadd.f32 %v4577, %v4961
  %v4963 = vpop.f32.mrb[0].mxu0
  %v4964 = vadd.f32 %v4577, %v4963
  %4965 = vmatprep.mubr.bf16.mxu0 0
  %4966 = vmatmul.mubr.bf16.gmra.mrb[0].mxu0 %v4664
  %v4967 = vpop.f32.mrb[0].mxu0
  %v4968 = vadd.f32 %v4582, %v4967
  %v4969 = vpop.f32.mrb[0].mxu0
  %v4970 = vadd.f32 %v4582, %v4969
  %v4971 = vpop.f32.mrb[0].mxu0
  %v4972 = vadd.f32 %v4587, %v4971
  %v4973 = vpop.f32.mrb[0].mxu0
  %v4974 = vadd.f32 %v4587, %v4973
  %4975 = vmatprep.mubr.bf16.mxu0 0
  %4976 = vmatmul.mubr.bf16.gmra.mrb[0].mxu0 %v4665
  %v4977 = vpop.f32.mrb[0].mxu0
  %v4978 = vadd.f32 %v4592, %v4977
  %v4979 = vpop.f32.mrb[0].mxu0
  %v4980 = vadd.f32 %v4592, %v4979
  %v4981 = vpop.f32.mrb[0].mxu0
  %v4982 = vadd.f32 %v4597, %v4981
  %v4983 = vpop.f32.mrb[0].mxu0
  %v4984 = vadd.f32 %v4597, %v4983
  %4985 = vmatprep.mubr.bf16.mxu0 0
  %4986 = vmatmul.mubr.bf16.gmra.mrb[0].mxu0 %v4666
  %v4987 = vpop.f32.mrb[0].mxu0
  %v4988 = vadd.f32 %v4602, %v4987
  %v4989 = vpop.f32.mrb[0].mxu0
  %v4990 = vadd.f32 %v4602, %v4989
  %v4991 = vpop.f32.mrb[0].mxu0
  %v4992 = vadd.f32 %v4607, %v4991
  %v4993 = vpop.f32.mrb[0].mxu0
  %v4994 = vadd.f32 %v4607, %v4993
  %4995 = vmatprep.mubr.bf16.mxu0 0
  %4996 = vmatmul.mubr.bf16.gmra.mrb[0].mxu0 %v4667
  %v4997 = vpop.f32.mrb[0].mxu0
  %v4998 = vadd.f32 %v4612, %v4997
  %v4999 = vpop.f32.mrb[0].mxu0
  %v5000 = vadd.f32 %v4612, %v4999
  %v5001 = vpop.f32.mrb[0].mxu0
  %v5002 = vadd.f32 %v4617, %v5001
  %v5003 = vpop.f32.mrb[0].mxu0
  %v5004 = vadd.f32 %v4617, %v5003
  %5005 = vmatprep.mubr.bf16.mxu0 0
  %5006 = vmatmul.mubr.bf16.gmra.mrb[0].mxu0 %v4668
  %v5007 = vpop.f32.mrb[0].mxu0
  %v5008 = vadd.f32 %v4622, %v5007
  %v5009 = vpop.f32.mrb[0].mxu0
  %v5010 = vadd.f32 %v4622, %v5009
  %v5011 = vpop.f32.mrb[0].mxu0
  %v5012 = vadd.f32 %v4627, %v5011
  %v5013 = vpop.f32.mrb[0].mxu0
  %v5014 = vadd.f32 %v4627, %v5013
  %5015 = vdwg.mxu0
  %5016 = vmatprep.subr.bf16.mxu0 %v4460
  %5017 = vmatpush1.bf16.msra.mxu0 %v4459
  %5018 = vmatprep.subr.bf16.mxu0 %v4468
  %5019 = vmatpush1.bf16.msra.mxu0 %v4467
  %5020 = vmatprep.subr.bf16.mxu0 %v4476
  %5021 = vmatpush1.bf16.msra.mxu0 %v4475
  %5022 = vmatprep.subr.bf16.mxu0 %v4484
  %5023 = vmatpush1.bf16.msra.mxu0 %v4483
  %5024 = vmatprep.subr.bf16.mxu0 %v4492
  %5025 = vmatpush1.bf16.msra.mxu0 %v4491
  %5026 = vmatprep.subr.bf16.mxu0 %v4500
  %5027 = vmatpush1.bf16.msra.mxu0 %v4499
  %5028 = vmatprep.subr.bf16.mxu0 %v4508
  %5029 = vmatpush1.bf16.msra.mxu0 %v4507
  %5030 = vmatprep.subr.bf16.mxu0 %v4516
  %5031 = vmatpush1.bf16.msra.mxu0 %v4515
  %5032 = vmatprep.subr.bf16.mxu0 0
  %5033 = vmatpush1.bf16.msra.mxu0 0
  %5034 = vmatprep.subr.bf16.mxu0 0
  %5035 = vmatpush1.bf16.msra.mxu0 0
  %5036 = vmatprep.subr.bf16.mxu0 0
  %5037 = vmatpush1.bf16.msra.mxu0 0
  %5038 = vmatprep.subr.bf16.mxu0 0
  %5039 = vmatpush1.bf16.msra.mxu0 0
  %5040 = vmatprep.subr.bf16.mxu0 0
  %5041 = vmatpush1.bf16.msra.mxu0 0
  %5042 = vmatprep.subr.bf16.mxu0 0
  %5043 = vmatpush1.bf16.msra.mxu0 0
  %5044 = vmatprep.subr.bf16.mxu0 0
  %5045 = vmatpush1.bf16.msra.mxu0 0
  %5046 = vmatprep.subr.bf16.mxu0 0
  %5047 = vmatpush1.bf16.msra.mxu0 0
  %5048 = vmatprep.mubr.bf16.mxu0 0
  %5049 = vmatmul.mubr.bf16.gmra.mrb[0].mxu0 %v4661
  %v5050 = vpop.f32.mrb[0].mxu0
  %v5051 = vadd.f32 %v4552, %v5050
  %v5052 = vpop.f32.mrb[0].mxu0
  %v5053 = vadd.f32 %v4552, %v5052
  %v5054 = vpop.f32.mrb[0].mxu0
  %v5055 = vadd.f32 %v4557, %v5054
  %v5056 = vpop.f32.mrb[0].mxu0
  %v5057 = vadd.f32 %v4557, %v5056
  %5058 = vmatprep.mubr.bf16.mxu0 0
  %5059 = vmatmul.mubr.bf16.gmra.mrb[0].mxu0 %v4662
  %v5060 = vpop.f32.mrb[0].mxu0
  %v5061 = vadd.f32 %v4562, %v5060
  %v5062 = vpop.f32.mrb[0].mxu0
  %v5063 = vadd.f32 %v4562, %v5062
  %v5064 = vpop.f32.mrb[0].mxu0
  %v5065 = vadd.f32 %v4567, %v5064
  %v5066 = vpop.f32.mrb[0].mxu0
  %v5067 = vadd.f32 %v4567, %v5066
  %5068 = vmatprep.mubr.bf16.mxu0 0
  %5069 = vmatmul.mubr.bf16.gmra.mrb[0].mxu0 %v4663
  %v5070 = vpop.f32.mrb[0].mxu0
  %v5071 = vadd.f32 %v4572, %v5070
  %v5072 = vpop.f32.mrb[0].mxu0
  %v5073 = vadd.f32 %v4572, %v5072
  %v5074 = vpop.f32.mrb[0].mxu0
  %v5075 = vadd.f32 %v4577, %v5074
  %v5076 = vpop.f32.mrb[0].mxu0
  %v5077 = vadd.f32 %v4577, %v5076
  %5078 = vmatprep.mubr.bf16.mxu0 0
  %5079 = vmatmul.mubr.bf16.gmra.mrb[0].mxu0 %v4664
  %v5080 = vpop.f32.mrb[0].mxu0
  %v5081 = vadd.f32 %v4582, %v5080
  %v5082 = vpop.f32.mrb[0].mxu0
  %v5083 = vadd.f32 %v4582, %v5082
  %v5084 = vpop.f32.mrb[0].mxu0
  %v5085 = vadd.f32 %v4587, %v5084
  %v5086 = vpop.f32.mrb[0].mxu0
  %v5087 = vadd.f32 %v4587, %v5086
  %5088 = vmatprep.mubr.bf16.mxu0 0
  %5089 = vmatmul.mubr.bf16.gmra.mrb[0].mxu0 %v4665
  %v5090 = vpop.f32.mrb[0].mxu0
  %v5091 = vadd.f32 %v4592, %v5090
  %v5092 = vpop.f32.mrb[0].mxu0
  %v5093 = vadd.f32 %v4592, %v5092
  %v5094 = vpop.f32.mrb[0].mxu0
  %v5095 = vadd.f32 %v4597, %v5094
  %v5096 = vpop.f32.mrb[0].mxu0
  %v5097 = vadd.f32 %v4597, %v5096
  %5098 = vmatprep.mubr.bf16.mxu0 0
  %5099 = vmatmul.mubr.bf16.gmra.mrb[0].mxu0 %v4666
  %v5100 = vpop.f32.mrb[0].mxu0
  %v5101 = vadd.f32 %v4602, %v5100
  %v5102 = vpop.f32.mrb[0].mxu0
  %v5103 = vadd.f32 %v4602, %v5102
  %v5104 = vpop.f32.mrb[0].mxu0
  %v5105 = vadd.f32 %v4607, %v5104
  %v5106 = vpop.f32.mrb[0].mxu0
  %v5107 = vadd.f32 %v4607, %v5106
  %5108 = vmatprep.mubr.bf16.mxu0 0
  %5109 = vmatmul.mubr.bf16.gmra.mrb[0].mxu0 %v4667
  %v5110 = vpop.f32.mrb[0].mxu0
  %v5111 = vadd.f32 %v4612, %v5110
  %v5112 = vpop.f32.mrb[0].mxu0
  %v5113 = vadd.f32 %v4612, %v5112
  %v5114 = vpop.f32.mrb[0].mxu0
  %v5115 = vadd.f32 %v4617, %v5114
  %v5116 = vpop.f32.mrb[0].mxu0
  %v5117 = vadd.f32 %v4617, %v5116
  %5118 = vmatprep.mubr.bf16.mxu0 0
  %5119 = vmatmul.mubr.bf16.gmra.mrb[0].mxu0 %v4668
  %v5120 = vpop.f32.mrb[0].mxu0
  %v5121 = vadd.f32 %v4622, %v5120
  %v5122 = vpop.f32.mrb[0].mxu0
  %v5123 = vadd.f32 %v4622, %v5122
  %v5124 = vpop.f32.mrb[0].mxu0
  %v5125 = vadd.f32 %v4627, %v5124
  %v5126 = vpop.f32.mrb[0].mxu0
  %v5127 = vadd.f32 %v4627, %v5126
  %5128 = vdwg.mxu0
  %v5129 = vmax.f32 %v4712, 0.0
  %v5130 = vmax.f32 %v4714, 0.0
  %v5131 = vmax.f32 %v4825, 0.0
  %v5132 = vmax.f32 %v4827, 0.0
  %v5133 = vmax.f32 %v4938, 0.0
  %v5134 = vmax.f32 %v4940, 0.0
  %v5135 = vmax.f32 %v5051, 0.0
  %v5136 = vmax.f32 %v5053, 0.0
  %v5137 = vmax.f32 %v4716, 0.0
  %v5138 = vmax.f32 %v4718, 0.0
  %v5139 = vmax.f32 %v4829, 0.0
  %v5140 = vmax.f32 %v4831, 0.0
  %v5141 = vmax.f32 %v4942, 0.0
  %v5142 = vmax.f32 %v4944, 0.0
  %v5143 = vmax.f32 %v5055, 0.0
  %v5144 = vmax.f32 %v5057, 0.0
  %v5145 = vmax.f32 %v4722, 0.0
  %v5146 = vmax.f32 %v4724, 0.0
  %v5147 = vmax.f32 %v4835, 0.0
  %v5148 = vmax.f32 %v4837, 0.0
  %v5149 = vmax.f32 %v4948, 0.0
  %v5150 = vmax.f32 %v4950, 0.0
  %v5151 = vmax.f32 %v5061, 0.0
  %v5152 = vmax.f32 %v5063, 0.0
  %v5153 = vmax.f32 %v4726, 0.0
  %v5154 = vmax.f32 %v4728, 0.0
  %v5155 = vmax.f32 %v4839, 0.0
  %v5156 = vmax.f32 %v4841, 0.0
  %v5157 = vmax.f32 %v4952, 0.0
  %v5158 = vmax.f32 %v4954, 0.0
  %v5159 = vmax.f32 %v5065, 0.0
  %v5160 = vmax.f32 %v5067, 0.0
  %v5161 = vmax.f32 %v4732, 0.0
  %v5162 = vmax.f32 %v4734, 0.0
  %v5163 = vmax.f32 %v4845, 0.0
  %v5164 = vmax.f32 %v4847, 0.0
  %v5165 = vmax.f32 %v4958, 0.0
  %v5166 = vmax.f32 %v4960, 0.0
  %v5167 = vmax.f32 %v5071, 0.0
  %v5168 = vmax.f32 %v5073, 0.0
  %v5169 = vmax.f32 %v4736, 0.0
  %v5170 = vmax.f32 %v4738, 0.0
  %v5171 = vmax.f32 %v4849, 0.0
  %v5172 = vmax.f32 %v4851, 0.0
  %v5173 = vmax.f32 %v4962, 0.0
  %v5174 = vmax.f32 %v4964, 0.0
  %v5175 = vmax.f32 %v5075, 0.0
  %v5176 = vmax.f32 %v5077, 0.0
  %v5177 = vmax.f32 %v4742, 0.0
  %v5178 = vmax.f32 %v4744, 0.0
  %v5179 = vmax.f32 %v4855, 0.0
  %v5180 = vmax.f32 %v4857, 0.0
  %v5181 = vmax.f32 %v4968, 0.0
  %v5182 = vmax.f32 %v4970, 0.0
  %v5183 = vmax.f32 %v5081, 0.0
  %v5184 = vmax.f32 %v5083, 0.0
  %v5185 = vmax.f32 %v4746, 0.0
  %v5186 = vmax.f32 %v4748, 0.0
  %v5187 = vmax.f32 %v4859, 0.0
  %v5188 = vmax.f32 %v4861, 0.0
  %v5189 = vmax.f32 %v4972, 0.0
  %v5190 = vmax.f32 %v4974, 0.0
  %v5191 = vmax.f32 %v5085, 0.0
  %v5192 = vmax.f32 %v5087, 0.0
  %v5193 = vmax.f32 %v4752, 0.0
  %v5194 = vmax.f32 %v4754, 0.0
  %v5195 = vmax.f32 %v4865, 0.0
  %v5196 = vmax.f32 %v4867, 0.0
  %v5197 = vmax.f32 %v4978, 0.0
  %v5198 = vmax.f32 %v4980, 0.0
  %v5199 = vmax.f32 %v5091, 0.0
  %v5200 = vmax.f32 %v5093, 0.0
  %v5201 = vmax.f32 %v4756, 0.0
  %v5202 = vmax.f32 %v4758, 0.0
  %v5203 = vmax.f32 %v4869, 0.0
  %v5204 = vmax.f32 %v4871, 0.0
  %v5205 = vmax.f32 %v4982, 0.0
  %v5206 = vmax.f32 %v4984, 0.0
  %v5207 = vmax.f32 %v5095, 0.0
  %v5208 = vmax.f32 %v5097, 0.0
  %v5209 = vmax.f32 %v4762, 0.0
  %v5210 = vmax.f32 %v4764, 0.0
  %v5211 = vmax.f32 %v4875, 0.0
  %v5212 = vmax.f32 %v4877, 0.0
  %v5213 = vmax.f32 %v4988, 0.0
  %v5214 = vmax.f32 %v4990, 0.0
  %v5215 = vmax.f32 %v5101, 0.0
  %v5216 = vmax.f32 %v5103, 0.0
  %v5217 = vmax.f32 %v4766, 0.0
  %v5218 = vmax.f32 %v4768, 0.0
  %v5219 = vmax.f32 %v4879, 0.0
  %v5220 = vmax.f32 %v4881, 0.0
  %v5221 = vmax.f32 %v4992, 0.0
  %v5222 = vmax.f32 %v4994, 0.0
  %v5223 = vmax.f32 %v5105, 0.0
  %v5224 = vmax.f32 %v5107, 0.0
  %v5225 = vmax.f32 %v4772, 0.0
  %v5226 = vmax.f32 %v4774, 0.0
  %v5227 = vmax.f32 %v4885, 0.0
  %v5228 = vmax.f32 %v4887, 0.0
  %v5229 = vmax.f32 %v4998, 0.0
  %v5230 = vmax.f32 %v5000, 0.0
  %v5231 = vmax.f32 %v5111, 0.0
  %v5232 = vmax.f32 %v5113, 0.0
  %v5233 = vmax.f32 %v4776, 0.0
  %v5234 = vmax.f32 %v4778, 0.0
  %v5235 = vmax.f32 %v4889, 0.0
  %v5236 = vmax.f32 %v4891, 0.0
  %v5237 = vmax.f32 %v5002, 0.0
  %v5238 = vmax.f32 %v5004, 0.0
  %v5239 = vmax.f32 %v5115, 0.0
  %v5240 = vmax.f32 %v5117, 0.0
  %v5241 = vmax.f32 %v4782, 0.0
  %v5242 = vmax.f32 %v4784, 0.0
  %v5243 = vmax.f32 %v4895, 0.0
  %v5244 = vmax.f32 %v4897, 0.0
  %v5245 = vmax.f32 %v5008, 0.0
  %v5246 = vmax.f32 %v5010, 0.0
  %v5247 = vmax.f32 %v5121, 0.0
  %v5248 = vmax.f32 %v5123, 0.0
  %v5249 = vmax.f32 %v4786, 0.0
  %v5250 = vmax.f32 %v4788, 0.0
  %v5251 = vmax.f32 %v4899, 0.0
  %v5252 = vmax.f32 %v4901, 0.0
  %v5253 = vmax.f32 %v5012, 0.0
  %v5254 = vmax.f32 %v5014, 0.0
  %v5255 = vmax.f32 %v5125, 0.0
  %v5256 = vmax.f32 %v5127, 0.0
  %v5257 = vpack.c.bf16 %v5137, %v5129
  %v5258 = vpack.c.bf16 %v5138, %v5130
  %v5259 = vpack.c.bf16 %v5139, %v5131
  %v5260 = vpack.c.bf16 %v5140, %v5132
  %v5261 = vpack.c.bf16 %v5141, %v5133
  %v5262 = vpack.c.bf16 %v5142, %v5134
  %v5263 = vpack.c.bf16 %v5143, %v5135
  %v5264 = vpack.c.bf16 %v5144, %v5136
  %v5265 = vpack.c.bf16 %v5153, %v5145
  %v5266 = vpack.c.bf16 %v5154, %v5146
  %v5267 = vpack.c.bf16 %v5155, %v5147
  %v5268 = vpack.c.bf16 %v5156, %v5148
  %v5269 = vpack.c.bf16 %v5157, %v5149
  %v5270 = vpack.c.bf16 %v5158, %v5150
  %v5271 = vpack.c.bf16 %v5159, %v5151
  %v5272 = vpack.c.bf16 %v5160, %v5152
  %v5273 = vpack.c.bf16 %v5169, %v5161
  %v5274 = vpack.c.bf16 %v5170, %v5162
  %v5275 = vpack.c.bf16 %v5171, %v5163
  %v5276 = vpack.c.bf16 %v5172, %v5164
  %v5277 = vpack.c.bf16 %v5173, %v5165
  %v5278 = vpack.c.bf16 %v5174, %v5166
  %v5279 = vpack.c.bf16 %v5175, %v5167
  %v5280 = vpack.c.bf16 %v5176, %v5168
  %v5281 = vpack.c.bf16 %v5185, %v5177
  %v5282 = vpack.c.bf16 %v5186, %v5178
  %v5283 = vpack.c.bf16 %v5187, %v5179
  %v5284 = vpack.c.bf16 %v5188, %v5180
  %v5285 = vpack.c.bf16 %v5189, %v5181
  %v5286 = vpack.c.bf16 %v5190, %v5182
  %v5287 = vpack.c.bf16 %v5191, %v5183
  %v5288 = vpack.c.bf16 %v5192, %v5184
  %v5289 = vpack.c.bf16 %v5201, %v5193
  %v5290 = vpack.c.bf16 %v5202, %v5194
  %v5291 = vpack.c.bf16 %v5203, %v5195
  %v5292 = vpack.c.bf16 %v5204, %v5196
  %v5293 = vpack.c.bf16 %v5205, %v5197
  %v5294 = vpack.c.bf16 %v5206, %v5198
  %v5295 = vpack.c.bf16 %v5207, %v5199
  %v5296 = vpack.c.bf16 %v5208, %v5200
  %v5297 = vpack.c.bf16 %v5217, %v5209
  %v5298 = vpack.c.bf16 %v5218, %v5210
  %v5299 = vpack.c.bf16 %v5219, %v5211
  %v5300 = vpack.c.bf16 %v5220, %v5212
  %v5301 = vpack.c.bf16 %v5221, %v5213
  %v5302 = vpack.c.bf16 %v5222, %v5214
  %v5303 = vpack.c.bf16 %v5223, %v5215
  %v5304 = vpack.c.bf16 %v5224, %v5216
  %v5305 = vpack.c.bf16 %v5233, %v5225
  %v5306 = vpack.c.bf16 %v5234, %v5226
  %v5307 = vpack.c.bf16 %v5235, %v5227
  %v5308 = vpack.c.bf16 %v5236, %v5228
  %v5309 = vpack.c.bf16 %v5237, %v5229
  %v5310 = vpack.c.bf16 %v5238, %v5230
  %v5311 = vpack.c.bf16 %v5239, %v5231
  %v5312 = vpack.c.bf16 %v5240, %v5232
  %v5313 = vpack.c.bf16 %v5249, %v5241
  %v5314 = vpack.c.bf16 %v5250, %v5242
  %v5315 = vpack.c.bf16 %v5251, %v5243
  %v5316 = vpack.c.bf16 %v5252, %v5244
  %v5317 = vpack.c.bf16 %v5253, %v5245
  %v5318 = vpack.c.bf16 %v5254, %v5246
  %v5319 = vpack.c.bf16 %v5255, %v5247
  %v5320 = vpack.c.bf16 %v5256, %v5248
  %v5321 = vld [vmem:[%s6] sm:$0x1]
  %s5322 = sld [smem:[#allocation3]]
  %v5323 = vstv %s5322
  %5324 = vmatprep.subr.bf16.mxu0 %v5258
  %5325 = vmatpush1.bf16.msra.mxu0 %v5257
  %5326 = vmatprep.subr.bf16.mxu0 %v5266
  %5327 = vmatpush1.bf16.msra.mxu0 %v5265
  %5328 = vmatprep.subr.bf16.mxu0 %v5274
  %5329 = vmatpush1.bf16.msra.mxu0 %v5273
  %5330 = vmatprep.subr.bf16.mxu0 %v5282
  %5331 = vmatpush1.bf16.msra.mxu0 %v5281
  %5332 = vmatprep.subr.bf16.mxu0 %v5290
  %5333 = vmatpush1.bf16.msra.mxu0 %v5289
  %5334 = vmatprep.subr.bf16.mxu0 %v5298
  %5335 = vmatpush1.bf16.msra.mxu0 %v5297
  %5336 = vmatprep.subr.bf16.mxu0 %v5306
  %5337 = vmatpush1.bf16.msra.mxu0 %v5305
  %5338 = vmatprep.subr.bf16.mxu0 %v5314
  %5339 = vmatpush1.bf16.msra.mxu0 %v5313
  %5340 = vmatprep.subr.bf16.mxu0 0
  %5341 = vmatpush1.bf16.msra.mxu0 0
  %5342 = vmatprep.subr.bf16.mxu0 0
  %5343 = vmatpush1.bf16.msra.mxu0 0
  %5344 = vmatprep.subr.bf16.mxu0 0
  %5345 = vmatpush1.bf16.msra.mxu0 0
  %5346 = vmatprep.subr.bf16.mxu0 0
  %5347 = vmatpush1.bf16.msra.mxu0 0
  %5348 = vmatprep.subr.bf16.mxu0 0
  %5349 = vmatpush1.bf16.msra.mxu0 0
  %5350 = vmatprep.subr.bf16.mxu0 0
  %5351 = vmatpush1.bf16.msra.mxu0 0
  %5352 = vmatprep.subr.bf16.mxu0 0
  %5353 = vmatpush1.bf16.msra.mxu0 0
  %5354 = vmatprep.subr.bf16.mxu0 0
  %5355 = vmatpush1.bf16.msra.mxu0 0
  %5356 = vmatprep.mubr.bf16.mxu0 0
  %5357 = vmatmul.mubr.bf16.gmra.mrb[0].mxu0 %v5321
  %v5358 = vpop.f32.mrb[0].mxu0
  %v5359 = vadd.f32 %v5323, %v5358
  %v5360 = vpop.f32.mrb[0].mxu0
  %v5361 = vadd.f32 %v5323, %v5360
  %v5362 = vpop.f32.mrb[0].mxu0
  %v5363 = vpop.f32.mrb[0].mxu0
  %5364 = vdwg.mxu0
  %5365 = vmatprep.subr.bf16.mxu0 %v5260
  %5366 = vmatpush1.bf16.msra.mxu0 %v5259
  %5367 = vmatprep.subr.bf16.mxu0 %v5268
  %5368 = vmatpush1.bf16.msra.mxu0 %v5267
  %5369 = vmatprep.subr.bf16.mxu0 %v5276
  %5370 = vmatpush1.bf16.msra.mxu0 %v5275
  %5371 = vmatprep.subr.bf16.mxu0 %v5284
  %5372 = vmatpush1.bf16.msra.mxu0 %v5283
  %5373 = vmatprep.subr.bf16.mxu0 %v5292
  %5374 = vmatpush1.bf16.msra.mxu0 %v5291
  %5375 = vmatprep.subr.bf16.mxu0 %v5300
  %5376 = vmatpush1.bf16.msra.mxu0 %v5299
  %5377 = vmatprep.subr.bf16.mxu0 %v5308
  %5378 = vmatpush1.bf16.msra.mxu0 %v5307
  %5379 = vmatprep.subr.bf16.mxu0 %v5316
  %5380 = vmatpush1.bf16.msra.mxu0 %v5315
  %5381 = vmatprep.subr.bf16.mxu0 0
  %5382 = vmatpush1.bf16.msra.mxu0 0
  %5383 = vmatprep.subr.bf16.mxu0 0
  %5384 = vmatpush1.bf16.msra.mxu0 0
  %5385 = vmatprep.subr.bf16.mxu0 0
  %5386 = vmatpush1.bf16.msra.mxu0 0
  %5387 = vmatprep.subr.bf16.mxu0 0
  %5388 = vmatpush1.bf16.msra.mxu0 0
  %5389 = vmatprep.subr.bf16.mxu0 0
  %5390 = vmatpush1.bf16.msra.mxu0 0
  %5391 = vmatprep.subr.bf16.mxu0 0
  %5392 = vmatpush1.bf16.msra.mxu0 0
  %5393 = vmatprep.subr.bf16.mxu0 0
  %5394 = vmatpush1.bf16.msra.mxu0 0
  %5395 = vmatprep.subr.bf16.mxu0 0
  %5396 = vmatpush1.bf16.msra.mxu0 0
  %5397 = vmatprep.mubr.bf16.mxu0 0
  %5398 = vmatmul.mubr.bf16.gmra.mrb[0].mxu0 %v5321
  %v5399 = vpop.f32.mrb[0].mxu0
  %v5400 = vadd.f32 %v5323, %v5399
  %v5401 = vpop.f32.mrb[0].mxu0
  %v5402 = vadd.f32 %v5323, %v5401
  %v5403 = vpop.f32.mrb[0].mxu0
  %v5404 = vpop.f32.mrb[0].mxu0
  %5405 = vdwg.mxu0
  %5406 = vmatprep.subr.bf16.mxu0 %v5262
  %5407 = vmatpush1.bf16.msra.mxu0 %v5261
  %5408 = vmatprep.subr.bf16.mxu0 %v5270
  %5409 = vmatpush1.bf16.msra.mxu0 %v5269
  %5410 = vmatprep.subr.bf16.mxu0 %v5278
  %5411 = vmatpush1.bf16.msra.mxu0 %v5277
  %5412 = vmatprep.subr.bf16.mxu0 %v5286
  %5413 = vmatpush1.bf16.msra.mxu0 %v5285
  %5414 = vmatprep.subr.bf16.mxu0 %v5294
  %5415 = vmatpush1.bf16.msra.mxu0 %v5293
  %5416 = vmatprep.subr.bf16.mxu0 %v5302
  %5417 = vmatpush1.bf16.msra.mxu0 %v5301
  %5418 = vmatprep.subr.bf16.mxu0 %v5310
  %5419 = vmatpush1.bf16.msra.mxu0 %v5309
  %5420 = vmatprep.subr.bf16.mxu0 %v5318
  %5421 = vmatpush1.bf16.msra.mxu0 %v5317
  %5422 = vmatprep.subr.bf16.mxu0 0
  %5423 = vmatpush1.bf16.msra.mxu0 0
  %5424 = vmatprep.subr.bf16.mxu0 0
  %5425 = vmatpush1.bf16.msra.mxu0 0
  %5426 = vmatprep.subr.bf16.mxu0 0
  %5427 = vmatpush1.bf16.msra.mxu0 0
  %5428 = vmatprep.subr.bf16.mxu0 0
  %5429 = vmatpush1.bf16.msra.mxu0 0
  %5430 = vmatprep.subr.bf16.mxu0 0
  %5431 = vmatpush1.bf16.msra.mxu0 0
  %5432 = vmatprep.subr.bf16.mxu0 0
  %5433 = vmatpush1.bf16.msra.mxu0 0
  %5434 = vmatprep.subr.bf16.mxu0 0
  %5435 = vmatpush1.bf16.msra.mxu0 0
  %5436 = vmatprep.subr.bf16.mxu0 0
  %5437 = vmatpush1.bf16.msra.mxu0 0
  %5438 = vmatprep.mubr.bf16.mxu0 0
  %5439 = vmatmul.mubr.bf16.gmra.mrb[0].mxu0 %v5321
  %v5440 = vpop.f32.mrb[0].mxu0
  %v5441 = vadd.f32 %v5323, %v5440
  %v5442 = vpop.f32.mrb[0].mxu0
  %v5443 = vadd.f32 %v5323, %v5442
  %v5444 = vpop.f32.mrb[0].mxu0
  %v5445 = vpop.f32.mrb[0].mxu0
  %5446 = vdwg.mxu0
  %5447 = vmatprep.subr.bf16.mxu0 %v5264
  %5448 = vmatpush1.bf16.msra.mxu0 %v5263
  %5449 = vmatprep.subr.bf16.mxu0 %v5272
  %5450 = vmatpush1.bf16.msra.mxu0 %v5271
  %5451 = vmatprep.subr.bf16.mxu0 %v5280
  %5452 = vmatpush1.bf16.msra.mxu0 %v5279
  %5453 = vmatprep.subr.bf16.mxu0 %v5288
  %5454 = vmatpush1.bf16.msra.mxu0 %v5287
  %5455 = vmatprep.subr.bf16.mxu0 %v5296
  %5456 = vmatpush1.bf16.msra.mxu0 %v5295
  %5457 = vmatprep.subr.bf16.mxu0 %v5304
  %5458 = vmatpush1.bf16.msra.mxu0 %v5303
  %5459 = vmatprep.subr.bf16.mxu0 %v5312
  %5460 = vmatpush1.bf16.msra.mxu0 %v5311
  %5461 = vmatprep.subr.bf16.mxu0 %v5320
  %5462 = vmatpush1.bf16.msra.mxu0 %v5319
  %5463 = vmatprep.subr.bf16.mxu0 0
  %5464 = vmatpush1.bf16.msra.mxu0 0
  %5465 = vmatprep.subr.bf16.mxu0 0
  %5466 = vmatpush1.bf16.msra.mxu0 0
  %5467 = vmatprep.subr.bf16.mxu0 0
  %5468 = vmatpush1.bf16.msra.mxu0 0
  %5469 = vmatprep.subr.bf16.mxu0 0
  %5470 = vmatpush1.bf16.msra.mxu0 0
  %5471 = vmatprep.subr.bf16.mxu0 0
  %5472 = vmatpush1.bf16.msra.mxu0 0
  %5473 = vmatprep.subr.bf16.mxu0 0
  %5474 = vmatpush1.bf16.msra.mxu0 0
  %5475 = vmatprep.subr.bf16.mxu0 0
  %5476 = vmatpush1.bf16.msra.mxu0 0
  %5477 = vmatprep.subr.bf16.mxu0 0
  %5478 = vmatpush1.bf16.msra.mxu0 0
  %5479 = vmatprep.mubr.bf16.mxu0 0
  %5480 = vmatmul.mubr.bf16.gmra.mrb[0].mxu0 %v5321
  %v5481 = vpop.f32.mrb[0].mxu0
  %v5482 = vadd.f32 %v5323, %v5481
  %v5483 = vpop.f32.mrb[0].mxu0
  %v5484 = vadd.f32 %v5323, %v5483
  %v5485 = vpop.f32.mrb[0].mxu0
  %v5486 = vpop.f32.mrb[0].mxu0
  %5487 = vdwg.mxu0
  %v5496 = vcombine.low %v5359, %v5361
  %v5497 = vcombine.low %v5400, %v5402
  %v5498 = vcombine.low %v5441, %v5443
  %v5499 = vcombine.low %v5482, %v5484
  %v5501 = vunpack.c.l.s4 1966171168
  %v5502 = vunpack.c.0.s8 %v5501
  %v5503 = vlaneseq
  %v5504 = vshrl.u32 %v5503, 7
  %v5505 = vsub.s32 %v5502, %v5504
  %v5506 = vrot.slane %v5496, %v5505
  %v5508 = vunpack.c.l.s4 1966171168
  %v5509 = vunpack.c.0.s8 %v5508
  %v5510 = vlaneseq
  %v5511 = vshrl.u32 %v5510, 7
  %v5512 = vsub.s32 %v5509, %v5511
  %v5513 = vrot.slane %v5497, %v5512
  %v5515 = vunpack.c.l.s4 1966171168
  %v5516 = vunpack.c.0.s8 %v5515
  %v5517 = vlaneseq
  %v5518 = vshrl.u32 %v5517, 7
  %v5519 = vsub.s32 %v5516, %v5518
  %v5520 = vrot.slane %v5498, %v5519
  %v5522 = vunpack.c.l.s4 1966171168
  %v5523 = vunpack.c.0.s8 %v5522
  %v5524 = vlaneseq
  %v5525 = vshrl.u32 %v5524, 7
  %v5526 = vsub.s32 %v5523, %v5525
  %v5527 = vrot.slane %v5499, %v5526
  %v5528 = vcombine.low %v5506, %v5513
  %v5529 = vcombine.low %v5520, %v5527
  %v5531 = vunpack.c.l.s4 1966171168
  %v5532 = vunpack.c.0.s8 %v5531
  %v5533 = vlaneseq
  %v5534 = vshrl.u32 %v5533, 7
  %v5535 = vsub.s32 %v5532, %v5534
  %v5536 = vrot.slane %v5528, %v5535
  %v5538 = vunpack.c.l.s4 1966171168
  %v5539 = vunpack.c.0.s8 %v5538
  %v5540 = vlaneseq
  %v5541 = vshrl.u32 %v5540, 7
  %v5542 = vsub.s32 %v5539, %v5541
  %v5543 = vrot.slane %v5529, %v5542
  %v5544 = vcombine.low %v5536, %v5543
  %5546 = vst [vmem:[%s8] sm:$0xff] %v5544
  // Predicated region
  $region34: #{mglobal_discriminator.1} parent=0 // pred_check
    _
  $region35: #{mglobal_discriminator.1} parent=0 // pred_check_branch
    %5548 = sbr.rel (0) target = $region37
  $region36: #{mglobal_discriminator.1} parent=0 // pred_region
    _
  $region37: #{mglobal_discriminator.1} parent=0 // pred_fallthru
    _
  // Predicated region
  $region38: #{mglobal_discriminator.1} parent=0 // pred_check
    _
  $region39: #{mglobal_discriminator.1} parent=0 // pred_check_branch
    %5550 = sbr.rel (0) target = $region41
  $region40: #{mglobal_discriminator.1} parent=0 // pred_region
    _
  $region41: #{mglobal_discriminator.1} parent=0 // pred_fallthru
    _

</llo_original>
